<compile_context>
chip_gen: v6e
topology: v6e:2x2x1
jax: 0.10.0
libtpu: 0.0.40
codegen_flags: <defaults>
</compile_context>

<pallas_src>
import functools
import math

import jax
import jax.numpy as jnp
from jax.experimental import pallas as pl
from jax.experimental.pallas import tpu as pltpu


# ----------------------------- fused Pallas kernel ---------------------------

def _bert_fused_kernel(
    # activations / mask
    emb_ref, mask_bias_ref,
    # embedding LayerNorm
    emb_ln_g_ref, emb_ln_b_ref,
    # stacked per-layer encoder weights (leading axis = layer), bf16 weights / f32 biases
    wqkv_ref, bqkv_ref, wo_ref, bo_ref, ln1_g_ref, ln1_b_ref,
    wi_ref, bi_ref, wo2_ref, bo2_ref, ln2_g_ref, ln2_b_ref,
    # pooler + (lane-padded) classifier
    pool_w_ref, pool_b_ref, fc_w_ref, fc_b_ref,
    # output
    logits_ref,
    *, num_layers, num_heads, head_dim, batch, seq, hidden, eps,
):
    B, S, H, NH, DH = batch, seq, hidden, num_heads, head_dim
    bf16 = jnp.bfloat16

    def layer_norm(h, g, b):
        # f32 statistics
        mean = jnp.mean(h, axis=-1, keepdims=True)
        var = jnp.mean((h - mean) ** 2, axis=-1, keepdims=True)
        return (h - mean) * jax.lax.rsqrt(var + eps) * g + b

    def mm(x_f32, w_bf16):
        # bf16 MXU inputs, f32 accumulation.
        return jnp.dot(x_f32.astype(bf16), w_bf16, preferred_element_type=jnp.float32)

    # Embedding LayerNorm (no zeros-residual slab).
    x = layer_norm(emb_ref[...], emb_ln_g_ref[...], emb_ln_b_ref[...])          # (B*S, H) f32

    # Loop-invariant additive attention-mask bias; broadcast hoisted once: (B, 1, S).
    mask_bias = mask_bias_ref[...][:, None, :]

    for l in range(num_layers):              # static unroll (L is tiny)
        residual = x

        # Fused QKV projection: one MXU pass with N = 3H.  (1/sqrt(DH) pre-folded into Wq/bq.)
        qkv = mm(x, wqkv_ref[l]) + bqkv_ref[l]                                  # (B*S, 3H) f32
        q3 = qkv[:, 0 * H:1 * H].reshape(B, S, H)
        k3 = qkv[:, 1 * H:2 * H].reshape(B, S, H)
        v3 = qkv[:, 2 * H:3 * H].reshape(B, S, H)

        wo_l = wo_ref[l]                                                        # (H, H) bf16
        attn_out = None
        for h in range(NH):                  # static unroll; head split/merge stays in-kernel
            hs = slice(h * DH, (h + 1) * DH)
            qh = q3[:, :, hs].astype(bf16)                                      # (B, S, DH)
            kh = k3[:, :, hs].astype(bf16)
            vh = v3[:, :, hs].astype(bf16)

            scores = jnp.einsum("bqd,bkd->bqk", qh, kh,
                                preferred_element_type=jnp.float32)             # (B, S, S) f32
            scores = scores + mask_bias
            m = jnp.max(scores, axis=-1, keepdims=True)
            p = jnp.exp(scores - m)
            denom = jnp.sum(p, axis=-1, keepdims=True)
            probs = p * pl.reciprocal(denom, approx=True)                       # EUP slot
            ctx_h = jnp.einsum("bqk,bkd->bqd", probs.astype(bf16), vh,
                               preferred_element_type=jnp.float32)              # (B, S, DH)

            # Head merge fused with the output projection:
            #   ctx @ Wo == sum_h ctx_h @ Wo[h*DH:(h+1)*DH, :]
            part = jnp.dot(ctx_h.reshape(B * S, DH).astype(bf16), wo_l[hs, :],
                           preferred_element_type=jnp.float32)                  # (B*S, H)
            attn_out = part if attn_out is None else attn_out + part

        attn_out = attn_out + bo_ref[l]
        x = layer_norm(attn_out + residual, ln1_g_ref[l], ln1_b_ref[l])

        # Feed-forward (exact erf-based GELU, as in torch.nn.GELU default), fused.
        ffn_residual = x
        inter = mm(x, wi_ref[l]) + bi_ref[l]                                    # (B*S, I) f32
        inter = 0.5 * inter * (1.0 + jax.lax.erf(inter * 0.7071067811865476))
        ffn_out = mm(inter, wo2_ref[l]) + bo2_ref[l]
        x = layer_norm(ffn_out + ffn_residual, ln2_g_ref[l], ln2_b_ref[l])

    # Pooler: tanh(W * h_[CLS] + b); dropout(p=0.1) is identity at eval; classifier.
    cls = x.reshape(B, S, H)[:, 0, :]                                           # (B, H)
    pooled = jnp.tanh(mm(cls, pool_w_ref[...]) + pool_b_ref[...])               # (B, H) f32
    logits = mm(pooled, fc_w_ref[...]) + fc_b_ref[...]                          # (B, 128) f32
    logits_ref[...] = logits.astype(logits_ref.dtype)                           # lane-dense store


def _full_block(arr):
    nd = arr.ndim
    return pl.BlockSpec(arr.shape, lambda i: (0,) * nd)


# ----------------------------- parameter init --------------------------------

def init_params(key, cfg):
    H, I, L = cfg["hidden"], cfg["inter"], cfg["layers"]

    def dense(k, fan_in, fan_out):
        w = jax.random.normal(k, (fan_in, fan_out), jnp.float32) * 0.02
        b = jnp.zeros((fan_out,), jnp.float32)
        return w, b

    keys = iter(jax.random.split(key, 8 + L * 6))
    params = {
        "word_emb": jax.random.normal(next(keys), (cfg["vocab"], H), jnp.float32) * 0.02,
        "pos_emb": jax.random.normal(next(keys), (cfg["max_pos"], H), jnp.float32) * 0.02,
        "type_emb": jax.random.normal(next(keys), (2, H), jnp.float32) * 0.02,
        "emb_ln_g": jnp.ones((H,), jnp.float32),
        "emb_ln_b": jnp.zeros((H,), jnp.float32),
        "layers": [],
    }
    for _ in range(L):
        wq, bq = dense(next(keys), H, H)
        wk, bk = dense(next(keys), H, H)
        wv, bv = dense(next(keys), H, H)
        wo, bo = dense(next(keys), H, H)
        wi, bi = dense(next(keys), H, I)
        wo2, bo2 = dense(next(keys), I, H)
        params["layers"].append({
            "wq": wq, "bq": bq, "wk": wk, "bk": bk, "wv": wv, "bv": bv,
            "wo": wo, "bo": bo,
            "ln1_g": jnp.ones((H,), jnp.float32), "ln1_b": jnp.zeros((H,), jnp.float32),
            "wi": wi, "bi": bi, "wo2": wo2, "bo2": bo2,
            "ln2_g": jnp.ones((H,), jnp.float32), "ln2_b": jnp.zeros((H,), jnp.float32),
        })
    kp, kf = jax.random.split(next(keys))
    params["pool_w"], params["pool_b"] = dense(kp, H, H)
    params["fc_w"], params["fc_b"] = dense(kf, H, cfg["classes"])
    return params


def pack_params(params, cfg):
    """One-time packing: fuse/stack per-layer weights, fold q-scale, cast MXU inputs to bf16,
    lane-pad the classifier to 128 output columns."""
    H, NH = cfg["hidden"], cfg["heads"]
    DH = H // NH
    C = cfg["classes"]
    CPAD = 128                      # lane-pad classifier output to a full vreg width
    scale = 1.0 / math.sqrt(DH)     # fold 1/sqrt(DH) into Wq / bq
    bf16 = jnp.bfloat16

    def stack(fn):
        return jnp.stack([fn(lyr) for lyr in params["layers"]])

    return {
        # embeddings stay f32 (gather glue happens in XLA)
        "word_emb": params["word_emb"],
        "pos_emb": params["pos_emb"],
        "type_emb": params["type_emb"],
        "emb_ln_g": params["emb_ln_g"][None, :],
        "emb_ln_b": params["emb_ln_b"][None, :],
        # fused + stacked encoder weights: bf16 weights, f32 biases / LN params
        "wqkv": stack(lambda l: jnp.concatenate(
            [l["wq"] * scale, l["wk"], l["wv"]], axis=1)).astype(bf16),          # (L, H, 3H)
        "bqkv": stack(lambda l: jnp.concatenate(
            [l["bq"] * scale, l["bk"], l["bv"]])[None, :]),                      # (L, 1, 3H)
        "wo": stack(lambda l: l["wo"]).astype(bf16),                             # (L, H, H)
        "bo": stack(lambda l: l["bo"][None, :]),
        "ln1_g": stack(lambda l: l["ln1_g"][None, :]),
        "ln1_b": stack(lambda l: l["ln1_b"][None, :]),
        "wi": stack(lambda l: l["wi"]).astype(bf16),                             # (L, H, I)
        "bi": stack(lambda l: l["bi"][None, :]),
        "wo2": stack(lambda l: l["wo2"]).astype(bf16),                           # (L, I, H)
        "bo2": stack(lambda l: l["bo2"][None, :]),
        "ln2_g": stack(lambda l: l["ln2_g"][None, :]),
        "ln2_b": stack(lambda l: l["ln2_b"][None, :]),
        # pooler + lane-padded classifier
        "pool_w": params["pool_w"].astype(bf16),
        "pool_b": params["pool_b"][None, :],
        "fc_w": jnp.zeros((H, CPAD), jnp.float32).at[:, :C].set(params["fc_w"]).astype(bf16),
        "fc_b": jnp.zeros((1, CPAD), jnp.float32).at[0, :C].set(params["fc_b"]),
    }


# ----------------------------- forward (glue + fused kernel) -----------------

def bert_classifier_forward(packed, input_ids, attention_mask, cfg):
    B, S = input_ids.shape
    H, NH, L = cfg["hidden"], cfg["heads"], cfg["layers"]
    DH = H // NH
    C = cfg["classes"]
    CPAD = packed["fc_w"].shape[1]

    # --- glue: embedding lookup + sum (tiny gather, stays in XLA) ---
    word = jnp.take(packed["word_emb"], input_ids, axis=0)          # (B, S, H)
    pos = packed["pos_emb"][:S][None, :, :]                         # (1, S, H)
    tok = packed["type_emb"][0][None, None, :]                      # token_type_ids == 0
    emb = (word + pos + tok).reshape(B * S, H).astype(jnp.float32)

    # --- loop-invariant additive attention-mask bias (HF BERT semantics), computed once ---
    mask_bias = (1.0 - attention_mask.astype(jnp.float32)) * -10000.0   # (B, S)

    inputs = (
        emb, mask_bias,
        packed["emb_ln_g"], packed["emb_ln_b"],
        packed["wqkv"], packed["bqkv"], packed["wo"], packed["bo"],
        packed["ln1_g"], packed["ln1_b"],
        packed["wi"], packed["bi"], packed["wo2"], packed["bo2"],
        packed["ln2_g"], packed["ln2_b"],
        packed["pool_w"], packed["pool_b"], packed["fc_w"], packed["fc_b"],
    )

    kernel = functools.partial(
        _bert_fused_kernel,
        num_layers=L, num_heads=NH, head_dim=DH,
        batch=B, seq=S, hidden=H, eps=1e-12,
    )

    logits_pad = pl.pallas_call(
        kernel,
        grid=(1,),
        out_shape=jax.ShapeDtypeStruct((B, CPAD), jnp.float32),
        in_specs=[_full_block(a) for a in inputs],
        out_specs=pl.BlockSpec((B, CPAD), lambda i: (0, 0)),
        compiler_params=pltpu.CompilerParams(dimension_semantics=("arbitrary",)),
    )(*inputs)

    return logits_pad[:, :C]


# ----------------------------- main -------------------------------------------

if __name__ == "__main__":
    cfg = dict(vocab=100, hidden=32, heads=4, layers=2, inter=64, max_pos=16, classes=2)
    B, S = 2, 8

    key = jax.random.PRNGKey(0)
    pkey, ikey = jax.random.split(key)
    params = init_params(pkey, cfg)
    packed = pack_params(params, cfg)    # one-time weight fusion / bf16 cast / lane padding

    input_ids = jax.random.randint(ikey, (B, S), 0, cfg["vocab"], dtype=jnp.int32)
    attention_mask = jnp.ones((B, S), dtype=jnp.int32).at[1, 6:].set(0)  # pad tail of batch 1

    fwd = jax.jit(lambda p, ids, m: bert_classifier_forward(p, ids, m, cfg))
    logits = fwd(packed, input_ids, attention_mask)
    jax.block_until_ready(logits)

    assert logits.shape == (B, cfg["classes"]) and logits.dtype == jnp.float32
    assert bool(jnp.all(jnp.isfinite(logits)))
    print("KERNEL_OK")
</pallas_src>

<mosaic_0001>
module attributes {stable_mosaic.version = 11 : i64} {
  func.func @_bert_fused_kernel(%arg0: i32, %arg1: memref<16x32xf32, #tpu.memory_space<vmem>>, %arg2: memref<2x8xf32, #tpu.memory_space<vmem>>, %arg3: memref<1x32xf32, #tpu.memory_space<vmem>>, %arg4: memref<1x32xf32, #tpu.memory_space<vmem>>, %arg5: memref<2x32x96xbf16, #tpu.memory_space<vmem>>, %arg6: memref<2x1x96xf32, #tpu.memory_space<vmem>>, %arg7: memref<2x32x32xbf16, #tpu.memory_space<vmem>>, %arg8: memref<2x1x32xf32, #tpu.memory_space<vmem>>, %arg9: memref<2x1x32xf32, #tpu.memory_space<vmem>>, %arg10: memref<2x1x32xf32, #tpu.memory_space<vmem>>, %arg11: memref<2x32x64xbf16, #tpu.memory_space<vmem>>, %arg12: memref<2x1x64xf32, #tpu.memory_space<vmem>>, %arg13: memref<2x64x32xbf16, #tpu.memory_space<vmem>>, %arg14: memref<2x1x32xf32, #tpu.memory_space<vmem>>, %arg15: memref<2x1x32xf32, #tpu.memory_space<vmem>>, %arg16: memref<2x1x32xf32, #tpu.memory_space<vmem>>, %arg17: memref<32x32xbf16, #tpu.memory_space<vmem>>, %arg18: memref<1x32xf32, #tpu.memory_space<vmem>>, %arg19: memref<32x128xbf16, #tpu.memory_space<vmem>>, %arg20: memref<1x128xf32, #tpu.memory_space<vmem>>, %arg21: memref<2x128xf32, #tpu.memory_space<vmem>>) attributes {dimension_semantics = [#tpu.dimension_semantics<arbitrary>], iteration_bounds = array<i64: 1>, scalar_prefetch = 0 : i64, scratch_operands = 0 : i64, tpu.core_type = #tpu.core_type<tc>, window_params = [{pipeline_mode = #tpu.pipeline_mode<synchronous>, transform_indices = @transform_0, window_bounds = array<i64: 16, 32>}, {pipeline_mode = #tpu.pipeline_mode<synchronous>, transform_indices = @transform_1, window_bounds = array<i64: 2, 8>}, {pipeline_mode = #tpu.pipeline_mode<synchronous>, transform_indices = @transform_2, window_bounds = array<i64: 1, 32>}, {pipeline_mode = #tpu.pipeline_mode<synchronous>, transform_indices = @transform_3, window_bounds = array<i64: 1, 32>}, {pipeline_mode = #tpu.pipeline_mode<synchronous>, transform_indices = @transform_4, window_bounds = array<i64: 2, 32, 96>}, {pipeline_mode = #tpu.pipeline_mode<synchronous>, transform_indices = @transform_5, window_bounds = array<i64: 2, 1, 96>}, {pipeline_mode = #tpu.pipeline_mode<synchronous>, transform_indices = @transform_6, window_bounds = array<i64: 2, 32, 32>}, {pipeline_mode = #tpu.pipeline_mode<synchronous>, transform_indices = @transform_7, window_bounds = array<i64: 2, 1, 32>}, {pipeline_mode = #tpu.pipeline_mode<synchronous>, transform_indices = @transform_8, window_bounds = array<i64: 2, 1, 32>}, {pipeline_mode = #tpu.pipeline_mode<synchronous>, transform_indices = @transform_9, window_bounds = array<i64: 2, 1, 32>}, {pipeline_mode = #tpu.pipeline_mode<synchronous>, transform_indices = @transform_10, window_bounds = array<i64: 2, 32, 64>}, {pipeline_mode = #tpu.pipeline_mode<synchronous>, transform_indices = @transform_11, window_bounds = array<i64: 2, 1, 64>}, {pipeline_mode = #tpu.pipeline_mode<synchronous>, transform_indices = @transform_12, window_bounds = array<i64: 2, 64, 32>}, {pipeline_mode = #tpu.pipeline_mode<synchronous>, transform_indices = @transform_13, window_bounds = array<i64: 2, 1, 32>}, {pipeline_mode = #tpu.pipeline_mode<synchronous>, transform_indices = @transform_14, window_bounds = array<i64: 2, 1, 32>}, {pipeline_mode = #tpu.pipeline_mode<synchronous>, transform_indices = @transform_15, window_bounds = array<i64: 2, 1, 32>}, {pipeline_mode = #tpu.pipeline_mode<synchronous>, transform_indices = @transform_16, window_bounds = array<i64: 32, 32>}, {pipeline_mode = #tpu.pipeline_mode<synchronous>, transform_indices = @transform_17, window_bounds = array<i64: 1, 32>}, {pipeline_mode = #tpu.pipeline_mode<synchronous>, transform_indices = @transform_18, window_bounds = array<i64: 32, 128>}, {pipeline_mode = #tpu.pipeline_mode<synchronous>, transform_indices = @transform_19, window_bounds = array<i64: 1, 128>}, {pipeline_mode = #tpu.pipeline_mode<synchronous>, transform_indices = @transform_20, window_bounds = array<i64: 2, 128>}]} {
    %c0 = arith.constant 0 : index
    %c0_0 = arith.constant 0 : index
    %0 = vector.load %arg1[%c0, %c0_0] : memref<16x32xf32, #tpu.memory_space<vmem>>, vector<16x32xf32>
    %c0_1 = arith.constant 0 : index
    %c0_2 = arith.constant 0 : index
    %1 = vector.load %arg3[%c0_1, %c0_2] : memref<1x32xf32, #tpu.memory_space<vmem>>, vector<1x32xf32>
    %c0_3 = arith.constant 0 : index
    %c0_4 = arith.constant 0 : index
    %2 = vector.load %arg4[%c0_3, %c0_4] : memref<1x32xf32, #tpu.memory_space<vmem>>, vector<1x32xf32>
    %cst = arith.constant dense<0.000000e+00> : vector<16xf32>
    %3 = vector.multi_reduction <add>, %0, %cst [1] : vector<16x32xf32> to vector<16xf32>
    %4 = vector.shape_cast %3 : vector<16xf32> to vector<16x1xf32>
    %cst_5 = arith.constant 3.200000e+01 : f32
    %5 = vector.broadcast %cst_5 : f32 to vector<16x1xf32>
    %6 = arith.divf %4, %5 : vector<16x1xf32>
    %7 = vector.broadcast %6 : vector<16x1xf32> to vector<16x32xf32>
    %8 = arith.subf %0, %7 : vector<16x32xf32>
    %9 = arith.mulf %8, %8 : vector<16x32xf32>
    %cst_6 = arith.constant dense<0.000000e+00> : vector<16xf32>
    %10 = vector.multi_reduction <add>, %9, %cst_6 [1] : vector<16x32xf32> to vector<16xf32>
    %11 = vector.shape_cast %10 : vector<16xf32> to vector<16x1xf32>
    %cst_7 = arith.constant 3.200000e+01 : f32
    %12 = vector.broadcast %cst_7 : f32 to vector<16x1xf32>
    %13 = arith.divf %11, %12 : vector<16x1xf32>
    %14 = vector.broadcast %6 : vector<16x1xf32> to vector<16x32xf32>
    %15 = arith.subf %0, %14 : vector<16x32xf32>
    %cst_8 = arith.constant 9.99999996E-13 : f32
    %16 = vector.broadcast %cst_8 : f32 to vector<16x1xf32>
    %17 = arith.addf %13, %16 : vector<16x1xf32>
    %18 = math.rsqrt %17 : vector<16x1xf32>
    %19 = vector.broadcast %18 : vector<16x1xf32> to vector<16x32xf32>
    %20 = arith.mulf %15, %19 : vector<16x32xf32>
    %21 = vector.broadcast %1 : vector<1x32xf32> to vector<16x32xf32>
    %22 = arith.mulf %20, %21 : vector<16x32xf32>
    %23 = vector.broadcast %2 : vector<1x32xf32> to vector<16x32xf32>
    %24 = arith.addf %22, %23 : vector<16x32xf32>
    %c0_9 = arith.constant 0 : index
    %c0_10 = arith.constant 0 : index
    %25 = vector.load %arg2[%c0_9, %c0_10] : memref<2x8xf32, #tpu.memory_space<vmem>>, vector<2x8xf32>
    %26 = vector.shape_cast %25 : vector<2x8xf32> to vector<2x1x8xf32>
    %c0_11 = arith.constant 0 : index
    %c0_12 = arith.constant 0 : index
    %c0_13 = arith.constant 0 : index
    %27 = vector.load %arg5[%c0_11, %c0_12, %c0_13] : memref<2x32x96xbf16, #tpu.memory_space<vmem>>, vector<1x32x96xbf16>
    %28 = vector.shape_cast %27 : vector<1x32x96xbf16> to vector<32x96xbf16>
    %29 = arith.truncf %24 : vector<16x32xf32> to vector<16x32xbf16>
    %cst_14 = arith.constant dense<0.000000e+00> : vector<16x96xf32>
    %30 = tpu.matmul %29, %28, %cst_14 {dimension_numbers = #tpu.dot_dimension_numbers<[1], [0], [0], [1], [0, 0, 1, 1], [], []>} : vector<16x32xbf16>, vector<32x96xbf16>, vector<16x96xf32> -> vector<16x96xf32>
    %c0_15 = arith.constant 0 : index
    %c0_16 = arith.constant 0 : index
    %c0_17 = arith.constant 0 : index
    %31 = vector.load %arg6[%c0_15, %c0_16, %c0_17] : memref<2x1x96xf32, #tpu.memory_space<vmem>>, vector<1x1x96xf32>
    %32 = vector.shape_cast %31 : vector<1x1x96xf32> to vector<1x96xf32>
    %33 = vector.broadcast %32 : vector<1x96xf32> to vector<16x96xf32>
    %34 = arith.addf %30, %33 : vector<16x96xf32>
    %35 = vector.extract_strided_slice %34 {offsets = [0, 0], sizes = [16, 32], strides = [1, 1]} : vector<16x96xf32> to vector<16x32xf32>
    %36 = vector.shape_cast %35 : vector<16x32xf32> to vector<2x8x32xf32>
    %37 = vector.extract_strided_slice %34 {offsets = [0, 32], sizes = [16, 32], strides = [1, 1]} : vector<16x96xf32> to vector<16x32xf32>
    %38 = vector.shape_cast %37 : vector<16x32xf32> to vector<2x8x32xf32>
    %39 = vector.extract_strided_slice %34 {offsets = [0, 64], sizes = [16, 32], strides = [1, 1]} : vector<16x96xf32> to vector<16x32xf32>
    %40 = vector.shape_cast %39 : vector<16x32xf32> to vector<2x8x32xf32>
    %c0_18 = arith.constant 0 : index
    %c0_19 = arith.constant 0 : index
    %c0_20 = arith.constant 0 : index
    %41 = vector.load %arg7[%c0_18, %c0_19, %c0_20] : memref<2x32x32xbf16, #tpu.memory_space<vmem>>, vector<1x32x32xbf16>
    %42 = vector.shape_cast %41 : vector<1x32x32xbf16> to vector<32x32xbf16>
    %43 = vector.extract_strided_slice %36 {offsets = [0, 0, 0], sizes = [2, 8, 8], strides = [1, 1, 1]} : vector<2x8x32xf32> to vector<2x8x8xf32>
    %44 = arith.truncf %43 : vector<2x8x8xf32> to vector<2x8x8xbf16>
    %45 = vector.extract_strided_slice %38 {offsets = [0, 0, 0], sizes = [2, 8, 8], strides = [1, 1, 1]} : vector<2x8x32xf32> to vector<2x8x8xf32>
    %46 = arith.truncf %45 : vector<2x8x8xf32> to vector<2x8x8xbf16>
    %47 = vector.extract_strided_slice %40 {offsets = [0, 0, 0], sizes = [2, 8, 8], strides = [1, 1, 1]} : vector<2x8x32xf32> to vector<2x8x8xf32>
    %48 = arith.truncf %47 : vector<2x8x8xf32> to vector<2x8x8xbf16>
    "tpu.trace_start"() <{level = 10 : i32, message = "bqd,bkd->bqk"}> : () -> ()
    %cst_21 = arith.constant dense<0.000000e+00> : vector<2x8x8xf32>
    %49 = tpu.matmul %44, %46, %cst_21 {dimension_numbers = #tpu.dot_dimension_numbers<[2], [2], [1], [1], [0, 0, 0, 1, 1, 1], [0], [0]>} : vector<2x8x8xbf16>, vector<2x8x8xbf16>, vector<2x8x8xf32> -> vector<2x8x8xf32>
    "tpu.trace_stop"() : () -> ()
    %50 = vector.broadcast %26 : vector<2x1x8xf32> to vector<2x8x8xf32>
    %51 = arith.addf %49, %50 : vector<2x8x8xf32>
    %cst_22 = arith.constant dense<0xFF800000> : vector<2x8xf32>
    %52 = vector.multi_reduction <maximumf>, %51, %cst_22 [2] : vector<2x8x8xf32> to vector<2x8xf32>
    %53 = vector.shape_cast %52 : vector<2x8xf32> to vector<2x8x1xf32>
    %54 = vector.broadcast %53 : vector<2x8x1xf32> to vector<2x8x8xf32>
    %55 = arith.subf %51, %54 : vector<2x8x8xf32>
    %56 = math.exp %55 : vector<2x8x8xf32>
    %cst_23 = arith.constant dense<0.000000e+00> : vector<2x8xf32>
    %57 = vector.multi_reduction <add>, %56, %cst_23 [2] : vector<2x8x8xf32> to vector<2x8xf32>
    %58 = vector.shape_cast %57 : vector<2x8xf32> to vector<2x8x1xf32>
    %59 = tpu.reciprocal %58 {approx = true} : vector<2x8x1xf32> -> vector<2x8x1xf32>
    %60 = vector.broadcast %59 : vector<2x8x1xf32> to vector<2x8x8xf32>
    %61 = arith.mulf %56, %60 : vector<2x8x8xf32>
    %62 = arith.truncf %61 : vector<2x8x8xf32> to vector<2x8x8xbf16>
    "tpu.trace_start"() <{level = 10 : i32, message = "bqk,bkd->bqd"}> : () -> ()
    %cst_24 = arith.constant dense<0.000000e+00> : vector<2x8x8xf32>
    %63 = tpu.matmul %62, %48, %cst_24 {dimension_numbers = #tpu.dot_dimension_numbers<[2], [1], [1], [2], [0, 0, 0, 1, 1, 2], [0], [0]>} : vector<2x8x8xbf16>, vector<2x8x8xbf16>, vector<2x8x8xf32> -> vector<2x8x8xf32>
    "tpu.trace_stop"() : () -> ()
    %64 = vector.shape_cast %63 : vector<2x8x8xf32> to vector<16x8xf32>
    %65 = arith.truncf %64 : vector<16x8xf32> to vector<16x8xbf16>
    %66 = vector.extract_strided_slice %42 {offsets = [0, 0], sizes = [8, 32], strides = [1, 1]} : vector<32x32xbf16> to vector<8x32xbf16>
    %cst_25 = arith.constant dense<0.000000e+00> : vector<16x32xf32>
    %67 = tpu.matmul %65, %66, %cst_25 {dimension_numbers = #tpu.dot_dimension_numbers<[1], [0], [0], [1], [0, 0, 1, 1], [], []>} : vector<16x8xbf16>, vector<8x32xbf16>, vector<16x32xf32> -> vector<16x32xf32>
    %68 = vector.extract_strided_slice %36 {offsets = [0, 0, 8], sizes = [2, 8, 8], strides = [1, 1, 1]} : vector<2x8x32xf32> to vector<2x8x8xf32>
    %69 = arith.truncf %68 : vector<2x8x8xf32> to vector<2x8x8xbf16>
    %70 = vector.extract_strided_slice %38 {offsets = [0, 0, 8], sizes = [2, 8, 8], strides = [1, 1, 1]} : vector<2x8x32xf32> to vector<2x8x8xf32>
    %71 = arith.truncf %70 : vector<2x8x8xf32> to vector<2x8x8xbf16>
    %72 = vector.extract_strided_slice %40 {offsets = [0, 0, 8], sizes = [2, 8, 8], strides = [1, 1, 1]} : vector<2x8x32xf32> to vector<2x8x8xf32>
    %73 = arith.truncf %72 : vector<2x8x8xf32> to vector<2x8x8xbf16>
    "tpu.trace_start"() <{level = 10 : i32, message = "bqd,bkd->bqk"}> : () -> ()
    %cst_26 = arith.constant dense<0.000000e+00> : vector<2x8x8xf32>
    %74 = tpu.matmul %69, %71, %cst_26 {dimension_numbers = #tpu.dot_dimension_numbers<[2], [2], [1], [1], [0, 0, 0, 1, 1, 1], [0], [0]>} : vector<2x8x8xbf16>, vector<2x8x8xbf16>, vector<2x8x8xf32> -> vector<2x8x8xf32>
    "tpu.trace_stop"() : () -> ()
    %75 = vector.broadcast %26 : vector<2x1x8xf32> to vector<2x8x8xf32>
    %76 = arith.addf %74, %75 : vector<2x8x8xf32>
    %cst_27 = arith.constant dense<0xFF800000> : vector<2x8xf32>
    %77 = vector.multi_reduction <maximumf>, %76, %cst_27 [2] : vector<2x8x8xf32> to vector<2x8xf32>
    %78 = vector.shape_cast %77 : vector<2x8xf32> to vector<2x8x1xf32>
    %79 = vector.broadcast %78 : vector<2x8x1xf32> to vector<2x8x8xf32>
    %80 = arith.subf %76, %79 : vector<2x8x8xf32>
    %81 = math.exp %80 : vector<2x8x8xf32>
    %cst_28 = arith.constant dense<0.000000e+00> : vector<2x8xf32>
    %82 = vector.multi_reduction <add>, %81, %cst_28 [2] : vector<2x8x8xf32> to vector<2x8xf32>
    %83 = vector.shape_cast %82 : vector<2x8xf32> to vector<2x8x1xf32>
    %84 = tpu.reciprocal %83 {approx = true} : vector<2x8x1xf32> -> vector<2x8x1xf32>
    %85 = vector.broadcast %84 : vector<2x8x1xf32> to vector<2x8x8xf32>
    %86 = arith.mulf %81, %85 : vector<2x8x8xf32>
    %87 = arith.truncf %86 : vector<2x8x8xf32> to vector<2x8x8xbf16>
    "tpu.trace_start"() <{level = 10 : i32, message = "bqk,bkd->bqd"}> : () -> ()
    %cst_29 = arith.constant dense<0.000000e+00> : vector<2x8x8xf32>
    %88 = tpu.matmul %87, %73, %cst_29 {dimension_numbers = #tpu.dot_dimension_numbers<[2], [1], [1], [2], [0, 0, 0, 1, 1, 2], [0], [0]>} : vector<2x8x8xbf16>, vector<2x8x8xbf16>, vector<2x8x8xf32> -> vector<2x8x8xf32>
    "tpu.trace_stop"() : () -> ()
    %89 = vector.shape_cast %88 : vector<2x8x8xf32> to vector<16x8xf32>
    %90 = arith.truncf %89 : vector<16x8xf32> to vector<16x8xbf16>
    %91 = vector.extract_strided_slice %42 {offsets = [8, 0], sizes = [8, 32], strides = [1, 1]} : vector<32x32xbf16> to vector<8x32xbf16>
    %cst_30 = arith.constant dense<0.000000e+00> : vector<16x32xf32>
    %92 = tpu.matmul %90, %91, %cst_30 {dimension_numbers = #tpu.dot_dimension_numbers<[1], [0], [0], [1], [0, 0, 1, 1], [], []>} : vector<16x8xbf16>, vector<8x32xbf16>, vector<16x32xf32> -> vector<16x32xf32>
    %93 = arith.addf %67, %92 : vector<16x32xf32>
    %94 = vector.extract_strided_slice %36 {offsets = [0, 0, 16], sizes = [2, 8, 8], strides = [1, 1, 1]} : vector<2x8x32xf32> to vector<2x8x8xf32>
    %95 = arith.truncf %94 : vector<2x8x8xf32> to vector<2x8x8xbf16>
    %96 = vector.extract_strided_slice %38 {offsets = [0, 0, 16], sizes = [2, 8, 8], strides = [1, 1, 1]} : vector<2x8x32xf32> to vector<2x8x8xf32>
    %97 = arith.truncf %96 : vector<2x8x8xf32> to vector<2x8x8xbf16>
    %98 = vector.extract_strided_slice %40 {offsets = [0, 0, 16], sizes = [2, 8, 8], strides = [1, 1, 1]} : vector<2x8x32xf32> to vector<2x8x8xf32>
    %99 = arith.truncf %98 : vector<2x8x8xf32> to vector<2x8x8xbf16>
    "tpu.trace_start"() <{level = 10 : i32, message = "bqd,bkd->bqk"}> : () -> ()
    %cst_31 = arith.constant dense<0.000000e+00> : vector<2x8x8xf32>
    %100 = tpu.matmul %95, %97, %cst_31 {dimension_numbers = #tpu.dot_dimension_numbers<[2], [2], [1], [1], [0, 0, 0, 1, 1, 1], [0], [0]>} : vector<2x8x8xbf16>, vector<2x8x8xbf16>, vector<2x8x8xf32> -> vector<2x8x8xf32>
    "tpu.trace_stop"() : () -> ()
    %101 = vector.broadcast %26 : vector<2x1x8xf32> to vector<2x8x8xf32>
    %102 = arith.addf %100, %101 : vector<2x8x8xf32>
    %cst_32 = arith.constant dense<0xFF800000> : vector<2x8xf32>
    %103 = vector.multi_reduction <maximumf>, %102, %cst_32 [2] : vector<2x8x8xf32> to vector<2x8xf32>
    %104 = vector.shape_cast %103 : vector<2x8xf32> to vector<2x8x1xf32>
    %105 = vector.broadcast %104 : vector<2x8x1xf32> to vector<2x8x8xf32>
    %106 = arith.subf %102, %105 : vector<2x8x8xf32>
    %107 = math.exp %106 : vector<2x8x8xf32>
    %cst_33 = arith.constant dense<0.000000e+00> : vector<2x8xf32>
    %108 = vector.multi_reduction <add>, %107, %cst_33 [2] : vector<2x8x8xf32> to vector<2x8xf32>
    %109 = vector.shape_cast %108 : vector<2x8xf32> to vector<2x8x1xf32>
    %110 = tpu.reciprocal %109 {approx = true} : vector<2x8x1xf32> -> vector<2x8x1xf32>
    %111 = vector.broadcast %110 : vector<2x8x1xf32> to vector<2x8x8xf32>
    %112 = arith.mulf %107, %111 : vector<2x8x8xf32>
    %113 = arith.truncf %112 : vector<2x8x8xf32> to vector<2x8x8xbf16>
    "tpu.trace_start"() <{level = 10 : i32, message = "bqk,bkd->bqd"}> : () -> ()
    %cst_34 = arith.constant dense<0.000000e+00> : vector<2x8x8xf32>
    %114 = tpu.matmul %113, %99, %cst_34 {dimension_numbers = #tpu.dot_dimension_numbers<[2], [1], [1], [2], [0, 0, 0, 1, 1, 2], [0], [0]>} : vector<2x8x8xbf16>, vector<2x8x8xbf16>, vector<2x8x8xf32> -> vector<2x8x8xf32>
    "tpu.trace_stop"() : () -> ()
    %115 = vector.shape_cast %114 : vector<2x8x8xf32> to vector<16x8xf32>
    %116 = arith.truncf %115 : vector<16x8xf32> to vector<16x8xbf16>
    %117 = vector.extract_strided_slice %42 {offsets = [16, 0], sizes = [8, 32], strides = [1, 1]} : vector<32x32xbf16> to vector<8x32xbf16>
    %cst_35 = arith.constant dense<0.000000e+00> : vector<16x32xf32>
    %118 = tpu.matmul %116, %117, %cst_35 {dimension_numbers = #tpu.dot_dimension_numbers<[1], [0], [0], [1], [0, 0, 1, 1], [], []>} : vector<16x8xbf16>, vector<8x32xbf16>, vector<16x32xf32> -> vector<16x32xf32>
    %119 = arith.addf %93, %118 : vector<16x32xf32>
    %120 = vector.extract_strided_slice %36 {offsets = [0, 0, 24], sizes = [2, 8, 8], strides = [1, 1, 1]} : vector<2x8x32xf32> to vector<2x8x8xf32>
    %121 = arith.truncf %120 : vector<2x8x8xf32> to vector<2x8x8xbf16>
    %122 = vector.extract_strided_slice %38 {offsets = [0, 0, 24], sizes = [2, 8, 8], strides = [1, 1, 1]} : vector<2x8x32xf32> to vector<2x8x8xf32>
    %123 = arith.truncf %122 : vector<2x8x8xf32> to vector<2x8x8xbf16>
    %124 = vector.extract_strided_slice %40 {offsets = [0, 0, 24], sizes = [2, 8, 8], strides = [1, 1, 1]} : vector<2x8x32xf32> to vector<2x8x8xf32>
    %125 = arith.truncf %124 : vector<2x8x8xf32> to vector<2x8x8xbf16>
    "tpu.trace_start"() <{level = 10 : i32, message = "bqd,bkd->bqk"}> : () -> ()
    %cst_36 = arith.constant dense<0.000000e+00> : vector<2x8x8xf32>
    %126 = tpu.matmul %121, %123, %cst_36 {dimension_numbers = #tpu.dot_dimension_numbers<[2], [2], [1], [1], [0, 0, 0, 1, 1, 1], [0], [0]>} : vector<2x8x8xbf16>, vector<2x8x8xbf16>, vector<2x8x8xf32> -> vector<2x8x8xf32>
    "tpu.trace_stop"() : () -> ()
    %127 = vector.broadcast %26 : vector<2x1x8xf32> to vector<2x8x8xf32>
    %128 = arith.addf %126, %127 : vector<2x8x8xf32>
    %cst_37 = arith.constant dense<0xFF800000> : vector<2x8xf32>
    %129 = vector.multi_reduction <maximumf>, %128, %cst_37 [2] : vector<2x8x8xf32> to vector<2x8xf32>
    %130 = vector.shape_cast %129 : vector<2x8xf32> to vector<2x8x1xf32>
    %131 = vector.broadcast %130 : vector<2x8x1xf32> to vector<2x8x8xf32>
    %132 = arith.subf %128, %131 : vector<2x8x8xf32>
    %133 = math.exp %132 : vector<2x8x8xf32>
    %cst_38 = arith.constant dense<0.000000e+00> : vector<2x8xf32>
    %134 = vector.multi_reduction <add>, %133, %cst_38 [2] : vector<2x8x8xf32> to vector<2x8xf32>
    %135 = vector.shape_cast %134 : vector<2x8xf32> to vector<2x8x1xf32>
    %136 = tpu.reciprocal %135 {approx = true} : vector<2x8x1xf32> -> vector<2x8x1xf32>
    %137 = vector.broadcast %136 : vector<2x8x1xf32> to vector<2x8x8xf32>
    %138 = arith.mulf %133, %137 : vector<2x8x8xf32>
    %139 = arith.truncf %138 : vector<2x8x8xf32> to vector<2x8x8xbf16>
    "tpu.trace_start"() <{level = 10 : i32, message = "bqk,bkd->bqd"}> : () -> ()
    %cst_39 = arith.constant dense<0.000000e+00> : vector<2x8x8xf32>
    %140 = tpu.matmul %139, %125, %cst_39 {dimension_numbers = #tpu.dot_dimension_numbers<[2], [1], [1], [2], [0, 0, 0, 1, 1, 2], [0], [0]>} : vector<2x8x8xbf16>, vector<2x8x8xbf16>, vector<2x8x8xf32> -> vector<2x8x8xf32>
    "tpu.trace_stop"() : () -> ()
    %141 = vector.shape_cast %140 : vector<2x8x8xf32> to vector<16x8xf32>
    %142 = arith.truncf %141 : vector<16x8xf32> to vector<16x8xbf16>
    %143 = vector.extract_strided_slice %42 {offsets = [24, 0], sizes = [8, 32], strides = [1, 1]} : vector<32x32xbf16> to vector<8x32xbf16>
    %cst_40 = arith.constant dense<0.000000e+00> : vector<16x32xf32>
    %144 = tpu.matmul %142, %143, %cst_40 {dimension_numbers = #tpu.dot_dimension_numbers<[1], [0], [0], [1], [0, 0, 1, 1], [], []>} : vector<16x8xbf16>, vector<8x32xbf16>, vector<16x32xf32> -> vector<16x32xf32>
    %145 = arith.addf %119, %144 : vector<16x32xf32>
    %c0_41 = arith.constant 0 : index
    %c0_42 = arith.constant 0 : index
    %c0_43 = arith.constant 0 : index
    %146 = vector.load %arg8[%c0_41, %c0_42, %c0_43] : memref<2x1x32xf32, #tpu.memory_space<vmem>>, vector<1x1x32xf32>
    %147 = vector.shape_cast %146 : vector<1x1x32xf32> to vector<1x32xf32>
    %148 = vector.broadcast %147 : vector<1x32xf32> to vector<16x32xf32>
    %149 = arith.addf %145, %148 : vector<16x32xf32>
    %150 = arith.addf %149, %24 : vector<16x32xf32>
    %c0_44 = arith.constant 0 : index
    %c0_45 = arith.constant 0 : index
    %c0_46 = arith.constant 0 : index
    %151 = vector.load %arg9[%c0_44, %c0_45, %c0_46] : memref<2x1x32xf32, #tpu.memory_space<vmem>>, vector<1x1x32xf32>
    %152 = vector.shape_cast %151 : vector<1x1x32xf32> to vector<1x32xf32>
    %c0_47 = arith.constant 0 : index
    %c0_48 = arith.constant 0 : index
    %c0_49 = arith.constant 0 : index
    %153 = vector.load %arg10[%c0_47, %c0_48, %c0_49] : memref<2x1x32xf32, #tpu.memory_space<vmem>>, vector<1x1x32xf32>
    %154 = vector.shape_cast %153 : vector<1x1x32xf32> to vector<1x32xf32>
    %cst_50 = arith.constant dense<0.000000e+00> : vector<16xf32>
    %155 = vector.multi_reduction <add>, %150, %cst_50 [1] : vector<16x32xf32> to vector<16xf32>
    %156 = vector.shape_cast %155 : vector<16xf32> to vector<16x1xf32>
    %cst_51 = arith.constant 3.200000e+01 : f32
    %157 = vector.broadcast %cst_51 : f32 to vector<16x1xf32>
    %158 = arith.divf %156, %157 : vector<16x1xf32>
    %159 = vector.broadcast %158 : vector<16x1xf32> to vector<16x32xf32>
    %160 = arith.subf %150, %159 : vector<16x32xf32>
    %161 = arith.mulf %160, %160 : vector<16x32xf32>
    %cst_52 = arith.constant dense<0.000000e+00> : vector<16xf32>
    %162 = vector.multi_reduction <add>, %161, %cst_52 [1] : vector<16x32xf32> to vector<16xf32>
    %163 = vector.shape_cast %162 : vector<16xf32> to vector<16x1xf32>
    %cst_53 = arith.constant 3.200000e+01 : f32
    %164 = vector.broadcast %cst_53 : f32 to vector<16x1xf32>
    %165 = arith.divf %163, %164 : vector<16x1xf32>
    %166 = vector.broadcast %158 : vector<16x1xf32> to vector<16x32xf32>
    %167 = arith.subf %150, %166 : vector<16x32xf32>
    %cst_54 = arith.constant 9.99999996E-13 : f32
    %168 = vector.broadcast %cst_54 : f32 to vector<16x1xf32>
    %169 = arith.addf %165, %168 : vector<16x1xf32>
    %170 = math.rsqrt %169 : vector<16x1xf32>
    %171 = vector.broadcast %170 : vector<16x1xf32> to vector<16x32xf32>
    %172 = arith.mulf %167, %171 : vector<16x32xf32>
    %173 = vector.broadcast %152 : vector<1x32xf32> to vector<16x32xf32>
    %174 = arith.mulf %172, %173 : vector<16x32xf32>
    %175 = vector.broadcast %154 : vector<1x32xf32> to vector<16x32xf32>
    %176 = arith.addf %174, %175 : vector<16x32xf32>
    %c0_55 = arith.constant 0 : index
    %c0_56 = arith.constant 0 : index
    %c0_57 = arith.constant 0 : index
    %177 = vector.load %arg11[%c0_55, %c0_56, %c0_57] : memref<2x32x64xbf16, #tpu.memory_space<vmem>>, vector<1x32x64xbf16>
    %178 = vector.shape_cast %177 : vector<1x32x64xbf16> to vector<32x64xbf16>
    %179 = arith.truncf %176 : vector<16x32xf32> to vector<16x32xbf16>
    %cst_58 = arith.constant dense<0.000000e+00> : vector<16x64xf32>
    %180 = tpu.matmul %179, %178, %cst_58 {dimension_numbers = #tpu.dot_dimension_numbers<[1], [0], [0], [1], [0, 0, 1, 1], [], []>} : vector<16x32xbf16>, vector<32x64xbf16>, vector<16x64xf32> -> vector<16x64xf32>
    %c0_59 = arith.constant 0 : index
    %c0_60 = arith.constant 0 : index
    %c0_61 = arith.constant 0 : index
    %181 = vector.load %arg12[%c0_59, %c0_60, %c0_61] : memref<2x1x64xf32, #tpu.memory_space<vmem>>, vector<1x1x64xf32>
    %182 = vector.shape_cast %181 : vector<1x1x64xf32> to vector<1x64xf32>
    %183 = vector.broadcast %182 : vector<1x64xf32> to vector<16x64xf32>
    %184 = arith.addf %180, %183 : vector<16x64xf32>
    %cst_62 = arith.constant 5.000000e-01 : f32
    %185 = vector.broadcast %cst_62 : f32 to vector<16x64xf32>
    %186 = arith.mulf %185, %184 : vector<16x64xf32>
    %cst_63 = arith.constant 0.707106769 : f32
    %187 = vector.broadcast %cst_63 : f32 to vector<16x64xf32>
    %188 = arith.mulf %184, %187 : vector<16x64xf32>
    %189 = math.erf %188 : vector<16x64xf32>
    %cst_64 = arith.constant 1.000000e+00 : f32
    %190 = vector.broadcast %cst_64 : f32 to vector<16x64xf32>
    %191 = arith.addf %190, %189 : vector<16x64xf32>
    %192 = arith.mulf %186, %191 : vector<16x64xf32>
    %c0_65 = arith.constant 0 : index
    %c0_66 = arith.constant 0 : index
    %c0_67 = arith.constant 0 : index
    %193 = vector.load %arg13[%c0_65, %c0_66, %c0_67] : memref<2x64x32xbf16, #tpu.memory_space<vmem>>, vector<1x64x32xbf16>
    %194 = vector.shape_cast %193 : vector<1x64x32xbf16> to vector<64x32xbf16>
    %195 = arith.truncf %192 : vector<16x64xf32> to vector<16x64xbf16>
    %cst_68 = arith.constant dense<0.000000e+00> : vector<16x32xf32>
    %196 = tpu.matmul %195, %194, %cst_68 {dimension_numbers = #tpu.dot_dimension_numbers<[1], [0], [0], [1], [0, 0, 1, 1], [], []>} : vector<16x64xbf16>, vector<64x32xbf16>, vector<16x32xf32> -> vector<16x32xf32>
    %c0_69 = arith.constant 0 : index
    %c0_70 = arith.constant 0 : index
    %c0_71 = arith.constant 0 : index
    %197 = vector.load %arg14[%c0_69, %c0_70, %c0_71] : memref<2x1x32xf32, #tpu.memory_space<vmem>>, vector<1x1x32xf32>
    %198 = vector.shape_cast %197 : vector<1x1x32xf32> to vector<1x32xf32>
    %199 = vector.broadcast %198 : vector<1x32xf32> to vector<16x32xf32>
    %200 = arith.addf %196, %199 : vector<16x32xf32>
    %201 = arith.addf %200, %176 : vector<16x32xf32>
    %c0_72 = arith.constant 0 : index
    %c0_73 = arith.constant 0 : index
    %c0_74 = arith.constant 0 : index
    %202 = vector.load %arg15[%c0_72, %c0_73, %c0_74] : memref<2x1x32xf32, #tpu.memory_space<vmem>>, vector<1x1x32xf32>
    %203 = vector.shape_cast %202 : vector<1x1x32xf32> to vector<1x32xf32>
    %c0_75 = arith.constant 0 : index
    %c0_76 = arith.constant 0 : index
    %c0_77 = arith.constant 0 : index
    %204 = vector.load %arg16[%c0_75, %c0_76, %c0_77] : memref<2x1x32xf32, #tpu.memory_space<vmem>>, vector<1x1x32xf32>
    %205 = vector.shape_cast %204 : vector<1x1x32xf32> to vector<1x32xf32>
    %cst_78 = arith.constant dense<0.000000e+00> : vector<16xf32>
    %206 = vector.multi_reduction <add>, %201, %cst_78 [1] : vector<16x32xf32> to vector<16xf32>
    %207 = vector.shape_cast %206 : vector<16xf32> to vector<16x1xf32>
    %cst_79 = arith.constant 3.200000e+01 : f32
    %208 = vector.broadcast %cst_79 : f32 to vector<16x1xf32>
    %209 = arith.divf %207, %208 : vector<16x1xf32>
    %210 = vector.broadcast %209 : vector<16x1xf32> to vector<16x32xf32>
    %211 = arith.subf %201, %210 : vector<16x32xf32>
    %212 = arith.mulf %211, %211 : vector<16x32xf32>
    %cst_80 = arith.constant dense<0.000000e+00> : vector<16xf32>
    %213 = vector.multi_reduction <add>, %212, %cst_80 [1] : vector<16x32xf32> to vector<16xf32>
    %214 = vector.shape_cast %213 : vector<16xf32> to vector<16x1xf32>
    %cst_81 = arith.constant 3.200000e+01 : f32
    %215 = vector.broadcast %cst_81 : f32 to vector<16x1xf32>
    %216 = arith.divf %214, %215 : vector<16x1xf32>
    %217 = vector.broadcast %209 : vector<16x1xf32> to vector<16x32xf32>
    %218 = arith.subf %201, %217 : vector<16x32xf32>
    %cst_82 = arith.constant 9.99999996E-13 : f32
    %219 = vector.broadcast %cst_82 : f32 to vector<16x1xf32>
    %220 = arith.addf %216, %219 : vector<16x1xf32>
    %221 = math.rsqrt %220 : vector<16x1xf32>
    %222 = vector.broadcast %221 : vector<16x1xf32> to vector<16x32xf32>
    %223 = arith.mulf %218, %222 : vector<16x32xf32>
    %224 = vector.broadcast %203 : vector<1x32xf32> to vector<16x32xf32>
    %225 = arith.mulf %223, %224 : vector<16x32xf32>
    %226 = vector.broadcast %205 : vector<1x32xf32> to vector<16x32xf32>
    %227 = arith.addf %225, %226 : vector<16x32xf32>
    %c1 = arith.constant 1 : index
    %c0_83 = arith.constant 0 : index
    %c0_84 = arith.constant 0 : index
    %228 = vector.load %arg5[%c1, %c0_83, %c0_84] : memref<2x32x96xbf16, #tpu.memory_space<vmem>>, vector<1x32x96xbf16>
    %229 = vector.shape_cast %228 : vector<1x32x96xbf16> to vector<32x96xbf16>
    %230 = arith.truncf %227 : vector<16x32xf32> to vector<16x32xbf16>
    %cst_85 = arith.constant dense<0.000000e+00> : vector<16x96xf32>
    %231 = tpu.matmul %230, %229, %cst_85 {dimension_numbers = #tpu.dot_dimension_numbers<[1], [0], [0], [1], [0, 0, 1, 1], [], []>} : vector<16x32xbf16>, vector<32x96xbf16>, vector<16x96xf32> -> vector<16x96xf32>
    %c1_86 = arith.constant 1 : index
    %c0_87 = arith.constant 0 : index
    %c0_88 = arith.constant 0 : index
    %232 = vector.load %arg6[%c1_86, %c0_87, %c0_88] : memref<2x1x96xf32, #tpu.memory_space<vmem>>, vector<1x1x96xf32>
    %233 = vector.shape_cast %232 : vector<1x1x96xf32> to vector<1x96xf32>
    %234 = vector.broadcast %233 : vector<1x96xf32> to vector<16x96xf32>
    %235 = arith.addf %231, %234 : vector<16x96xf32>
    %236 = vector.extract_strided_slice %235 {offsets = [0, 0], sizes = [16, 32], strides = [1, 1]} : vector<16x96xf32> to vector<16x32xf32>
    %237 = vector.shape_cast %236 : vector<16x32xf32> to vector<2x8x32xf32>
    %238 = vector.extract_strided_slice %235 {offsets = [0, 32], sizes = [16, 32], strides = [1, 1]} : vector<16x96xf32> to vector<16x32xf32>
    %239 = vector.shape_cast %238 : vector<16x32xf32> to vector<2x8x32xf32>
    %240 = vector.extract_strided_slice %235 {offsets = [0, 64], sizes = [16, 32], strides = [1, 1]} : vector<16x96xf32> to vector<16x32xf32>
    %241 = vector.shape_cast %240 : vector<16x32xf32> to vector<2x8x32xf32>
    %c1_89 = arith.constant 1 : index
    %c0_90 = arith.constant 0 : index
    %c0_91 = arith.constant 0 : index
    %242 = vector.load %arg7[%c1_89, %c0_90, %c0_91] : memref<2x32x32xbf16, #tpu.memory_space<vmem>>, vector<1x32x32xbf16>
    %243 = vector.shape_cast %242 : vector<1x32x32xbf16> to vector<32x32xbf16>
    %244 = vector.extract_strided_slice %237 {offsets = [0, 0, 0], sizes = [2, 8, 8], strides = [1, 1, 1]} : vector<2x8x32xf32> to vector<2x8x8xf32>
    %245 = arith.truncf %244 : vector<2x8x8xf32> to vector<2x8x8xbf16>
    %246 = vector.extract_strided_slice %239 {offsets = [0, 0, 0], sizes = [2, 8, 8], strides = [1, 1, 1]} : vector<2x8x32xf32> to vector<2x8x8xf32>
    %247 = arith.truncf %246 : vector<2x8x8xf32> to vector<2x8x8xbf16>
    %248 = vector.extract_strided_slice %241 {offsets = [0, 0, 0], sizes = [2, 8, 8], strides = [1, 1, 1]} : vector<2x8x32xf32> to vector<2x8x8xf32>
    %249 = arith.truncf %248 : vector<2x8x8xf32> to vector<2x8x8xbf16>
    "tpu.trace_start"() <{level = 10 : i32, message = "bqd,bkd->bqk"}> : () -> ()
    %cst_92 = arith.constant dense<0.000000e+00> : vector<2x8x8xf32>
    %250 = tpu.matmul %245, %247, %cst_92 {dimension_numbers = #tpu.dot_dimension_numbers<[2], [2], [1], [1], [0, 0, 0, 1, 1, 1], [0], [0]>} : vector<2x8x8xbf16>, vector<2x8x8xbf16>, vector<2x8x8xf32> -> vector<2x8x8xf32>
    "tpu.trace_stop"() : () -> ()
    %251 = vector.broadcast %26 : vector<2x1x8xf32> to vector<2x8x8xf32>
    %252 = arith.addf %250, %251 : vector<2x8x8xf32>
    %cst_93 = arith.constant dense<0xFF800000> : vector<2x8xf32>
    %253 = vector.multi_reduction <maximumf>, %252, %cst_93 [2] : vector<2x8x8xf32> to vector<2x8xf32>
    %254 = vector.shape_cast %253 : vector<2x8xf32> to vector<2x8x1xf32>
    %255 = vector.broadcast %254 : vector<2x8x1xf32> to vector<2x8x8xf32>
    %256 = arith.subf %252, %255 : vector<2x8x8xf32>
    %257 = math.exp %256 : vector<2x8x8xf32>
    %cst_94 = arith.constant dense<0.000000e+00> : vector<2x8xf32>
    %258 = vector.multi_reduction <add>, %257, %cst_94 [2] : vector<2x8x8xf32> to vector<2x8xf32>
    %259 = vector.shape_cast %258 : vector<2x8xf32> to vector<2x8x1xf32>
    %260 = tpu.reciprocal %259 {approx = true} : vector<2x8x1xf32> -> vector<2x8x1xf32>
    %261 = vector.broadcast %260 : vector<2x8x1xf32> to vector<2x8x8xf32>
    %262 = arith.mulf %257, %261 : vector<2x8x8xf32>
    %263 = arith.truncf %262 : vector<2x8x8xf32> to vector<2x8x8xbf16>
    "tpu.trace_start"() <{level = 10 : i32, message = "bqk,bkd->bqd"}> : () -> ()
    %cst_95 = arith.constant dense<0.000000e+00> : vector<2x8x8xf32>
    %264 = tpu.matmul %263, %249, %cst_95 {dimension_numbers = #tpu.dot_dimension_numbers<[2], [1], [1], [2], [0, 0, 0, 1, 1, 2], [0], [0]>} : vector<2x8x8xbf16>, vector<2x8x8xbf16>, vector<2x8x8xf32> -> vector<2x8x8xf32>
    "tpu.trace_stop"() : () -> ()
    %265 = vector.shape_cast %264 : vector<2x8x8xf32> to vector<16x8xf32>
    %266 = arith.truncf %265 : vector<16x8xf32> to vector<16x8xbf16>
    %267 = vector.extract_strided_slice %243 {offsets = [0, 0], sizes = [8, 32], strides = [1, 1]} : vector<32x32xbf16> to vector<8x32xbf16>
    %cst_96 = arith.constant dense<0.000000e+00> : vector<16x32xf32>
    %268 = tpu.matmul %266, %267, %cst_96 {dimension_numbers = #tpu.dot_dimension_numbers<[1], [0], [0], [1], [0, 0, 1, 1], [], []>} : vector<16x8xbf16>, vector<8x32xbf16>, vector<16x32xf32> -> vector<16x32xf32>
    %269 = vector.extract_strided_slice %237 {offsets = [0, 0, 8], sizes = [2, 8, 8], strides = [1, 1, 1]} : vector<2x8x32xf32> to vector<2x8x8xf32>
    %270 = arith.truncf %269 : vector<2x8x8xf32> to vector<2x8x8xbf16>
    %271 = vector.extract_strided_slice %239 {offsets = [0, 0, 8], sizes = [2, 8, 8], strides = [1, 1, 1]} : vector<2x8x32xf32> to vector<2x8x8xf32>
    %272 = arith.truncf %271 : vector<2x8x8xf32> to vector<2x8x8xbf16>
    %273 = vector.extract_strided_slice %241 {offsets = [0, 0, 8], sizes = [2, 8, 8], strides = [1, 1, 1]} : vector<2x8x32xf32> to vector<2x8x8xf32>
    %274 = arith.truncf %273 : vector<2x8x8xf32> to vector<2x8x8xbf16>
    "tpu.trace_start"() <{level = 10 : i32, message = "bqd,bkd->bqk"}> : () -> ()
    %cst_97 = arith.constant dense<0.000000e+00> : vector<2x8x8xf32>
    %275 = tpu.matmul %270, %272, %cst_97 {dimension_numbers = #tpu.dot_dimension_numbers<[2], [2], [1], [1], [0, 0, 0, 1, 1, 1], [0], [0]>} : vector<2x8x8xbf16>, vector<2x8x8xbf16>, vector<2x8x8xf32> -> vector<2x8x8xf32>
    "tpu.trace_stop"() : () -> ()
    %276 = vector.broadcast %26 : vector<2x1x8xf32> to vector<2x8x8xf32>
    %277 = arith.addf %275, %276 : vector<2x8x8xf32>
    %cst_98 = arith.constant dense<0xFF800000> : vector<2x8xf32>
    %278 = vector.multi_reduction <maximumf>, %277, %cst_98 [2] : vector<2x8x8xf32> to vector<2x8xf32>
    %279 = vector.shape_cast %278 : vector<2x8xf32> to vector<2x8x1xf32>
    %280 = vector.broadcast %279 : vector<2x8x1xf32> to vector<2x8x8xf32>
    %281 = arith.subf %277, %280 : vector<2x8x8xf32>
    %282 = math.exp %281 : vector<2x8x8xf32>
    %cst_99 = arith.constant dense<0.000000e+00> : vector<2x8xf32>
    %283 = vector.multi_reduction <add>, %282, %cst_99 [2] : vector<2x8x8xf32> to vector<2x8xf32>
    %284 = vector.shape_cast %283 : vector<2x8xf32> to vector<2x8x1xf32>
    %285 = tpu.reciprocal %284 {approx = true} : vector<2x8x1xf32> -> vector<2x8x1xf32>
    %286 = vector.broadcast %285 : vector<2x8x1xf32> to vector<2x8x8xf32>
    %287 = arith.mulf %282, %286 : vector<2x8x8xf32>
    %288 = arith.truncf %287 : vector<2x8x8xf32> to vector<2x8x8xbf16>
    "tpu.trace_start"() <{level = 10 : i32, message = "bqk,bkd->bqd"}> : () -> ()
    %cst_100 = arith.constant dense<0.000000e+00> : vector<2x8x8xf32>
    %289 = tpu.matmul %288, %274, %cst_100 {dimension_numbers = #tpu.dot_dimension_numbers<[2], [1], [1], [2], [0, 0, 0, 1, 1, 2], [0], [0]>} : vector<2x8x8xbf16>, vector<2x8x8xbf16>, vector<2x8x8xf32> -> vector<2x8x8xf32>
    "tpu.trace_stop"() : () -> ()
    %290 = vector.shape_cast %289 : vector<2x8x8xf32> to vector<16x8xf32>
    %291 = arith.truncf %290 : vector<16x8xf32> to vector<16x8xbf16>
    %292 = vector.extract_strided_slice %243 {offsets = [8, 0], sizes = [8, 32], strides = [1, 1]} : vector<32x32xbf16> to vector<8x32xbf16>
    %cst_101 = arith.constant dense<0.000000e+00> : vector<16x32xf32>
    %293 = tpu.matmul %291, %292, %cst_101 {dimension_numbers = #tpu.dot_dimension_numbers<[1], [0], [0], [1], [0, 0, 1, 1], [], []>} : vector<16x8xbf16>, vector<8x32xbf16>, vector<16x32xf32> -> vector<16x32xf32>
    %294 = arith.addf %268, %293 : vector<16x32xf32>
    %295 = vector.extract_strided_slice %237 {offsets = [0, 0, 16], sizes = [2, 8, 8], strides = [1, 1, 1]} : vector<2x8x32xf32> to vector<2x8x8xf32>
    %296 = arith.truncf %295 : vector<2x8x8xf32> to vector<2x8x8xbf16>
    %297 = vector.extract_strided_slice %239 {offsets = [0, 0, 16], sizes = [2, 8, 8], strides = [1, 1, 1]} : vector<2x8x32xf32> to vector<2x8x8xf32>
    %298 = arith.truncf %297 : vector<2x8x8xf32> to vector<2x8x8xbf16>
    %299 = vector.extract_strided_slice %241 {offsets = [0, 0, 16], sizes = [2, 8, 8], strides = [1, 1, 1]} : vector<2x8x32xf32> to vector<2x8x8xf32>
    %300 = arith.truncf %299 : vector<2x8x8xf32> to vector<2x8x8xbf16>
    "tpu.trace_start"() <{level = 10 : i32, message = "bqd,bkd->bqk"}> : () -> ()
    %cst_102 = arith.constant dense<0.000000e+00> : vector<2x8x8xf32>
    %301 = tpu.matmul %296, %298, %cst_102 {dimension_numbers = #tpu.dot_dimension_numbers<[2], [2], [1], [1], [0, 0, 0, 1, 1, 1], [0], [0]>} : vector<2x8x8xbf16>, vector<2x8x8xbf16>, vector<2x8x8xf32> -> vector<2x8x8xf32>
    "tpu.trace_stop"() : () -> ()
    %302 = vector.broadcast %26 : vector<2x1x8xf32> to vector<2x8x8xf32>
    %303 = arith.addf %301, %302 : vector<2x8x8xf32>
    %cst_103 = arith.constant dense<0xFF800000> : vector<2x8xf32>
    %304 = vector.multi_reduction <maximumf>, %303, %cst_103 [2] : vector<2x8x8xf32> to vector<2x8xf32>
    %305 = vector.shape_cast %304 : vector<2x8xf32> to vector<2x8x1xf32>
    %306 = vector.broadcast %305 : vector<2x8x1xf32> to vector<2x8x8xf32>
    %307 = arith.subf %303, %306 : vector<2x8x8xf32>
    %308 = math.exp %307 : vector<2x8x8xf32>
    %cst_104 = arith.constant dense<0.000000e+00> : vector<2x8xf32>
    %309 = vector.multi_reduction <add>, %308, %cst_104 [2] : vector<2x8x8xf32> to vector<2x8xf32>
    %310 = vector.shape_cast %309 : vector<2x8xf32> to vector<2x8x1xf32>
    %311 = tpu.reciprocal %310 {approx = true} : vector<2x8x1xf32> -> vector<2x8x1xf32>
    %312 = vector.broadcast %311 : vector<2x8x1xf32> to vector<2x8x8xf32>
    %313 = arith.mulf %308, %312 : vector<2x8x8xf32>
    %314 = arith.truncf %313 : vector<2x8x8xf32> to vector<2x8x8xbf16>
    "tpu.trace_start"() <{level = 10 : i32, message = "bqk,bkd->bqd"}> : () -> ()
    %cst_105 = arith.constant dense<0.000000e+00> : vector<2x8x8xf32>
    %315 = tpu.matmul %314, %300, %cst_105 {dimension_numbers = #tpu.dot_dimension_numbers<[2], [1], [1], [2], [0, 0, 0, 1, 1, 2], [0], [0]>} : vector<2x8x8xbf16>, vector<2x8x8xbf16>, vector<2x8x8xf32> -> vector<2x8x8xf32>
    "tpu.trace_stop"() : () -> ()
    %316 = vector.shape_cast %315 : vector<2x8x8xf32> to vector<16x8xf32>
    %317 = arith.truncf %316 : vector<16x8xf32> to vector<16x8xbf16>
    %318 = vector.extract_strided_slice %243 {offsets = [16, 0], sizes = [8, 32], strides = [1, 1]} : vector<32x32xbf16> to vector<8x32xbf16>
    %cst_106 = arith.constant dense<0.000000e+00> : vector<16x32xf32>
    %319 = tpu.matmul %317, %318, %cst_106 {dimension_numbers = #tpu.dot_dimension_numbers<[1], [0], [0], [1], [0, 0, 1, 1], [], []>} : vector<16x8xbf16>, vector<8x32xbf16>, vector<16x32xf32> -> vector<16x32xf32>
    %320 = arith.addf %294, %319 : vector<16x32xf32>
    %321 = vector.extract_strided_slice %237 {offsets = [0, 0, 24], sizes = [2, 8, 8], strides = [1, 1, 1]} : vector<2x8x32xf32> to vector<2x8x8xf32>
    %322 = arith.truncf %321 : vector<2x8x8xf32> to vector<2x8x8xbf16>
    %323 = vector.extract_strided_slice %239 {offsets = [0, 0, 24], sizes = [2, 8, 8], strides = [1, 1, 1]} : vector<2x8x32xf32> to vector<2x8x8xf32>
    %324 = arith.truncf %323 : vector<2x8x8xf32> to vector<2x8x8xbf16>
    %325 = vector.extract_strided_slice %241 {offsets = [0, 0, 24], sizes = [2, 8, 8], strides = [1, 1, 1]} : vector<2x8x32xf32> to vector<2x8x8xf32>
    %326 = arith.truncf %325 : vector<2x8x8xf32> to vector<2x8x8xbf16>
    "tpu.trace_start"() <{level = 10 : i32, message = "bqd,bkd->bqk"}> : () -> ()
    %cst_107 = arith.constant dense<0.000000e+00> : vector<2x8x8xf32>
    %327 = tpu.matmul %322, %324, %cst_107 {dimension_numbers = #tpu.dot_dimension_numbers<[2], [2], [1], [1], [0, 0, 0, 1, 1, 1], [0], [0]>} : vector<2x8x8xbf16>, vector<2x8x8xbf16>, vector<2x8x8xf32> -> vector<2x8x8xf32>
    "tpu.trace_stop"() : () -> ()
    %328 = vector.broadcast %26 : vector<2x1x8xf32> to vector<2x8x8xf32>
    %329 = arith.addf %327, %328 : vector<2x8x8xf32>
    %cst_108 = arith.constant dense<0xFF800000> : vector<2x8xf32>
    %330 = vector.multi_reduction <maximumf>, %329, %cst_108 [2] : vector<2x8x8xf32> to vector<2x8xf32>
    %331 = vector.shape_cast %330 : vector<2x8xf32> to vector<2x8x1xf32>
    %332 = vector.broadcast %331 : vector<2x8x1xf32> to vector<2x8x8xf32>
    %333 = arith.subf %329, %332 : vector<2x8x8xf32>
    %334 = math.exp %333 : vector<2x8x8xf32>
    %cst_109 = arith.constant dense<0.000000e+00> : vector<2x8xf32>
    %335 = vector.multi_reduction <add>, %334, %cst_109 [2] : vector<2x8x8xf32> to vector<2x8xf32>
    %336 = vector.shape_cast %335 : vector<2x8xf32> to vector<2x8x1xf32>
    %337 = tpu.reciprocal %336 {approx = true} : vector<2x8x1xf32> -> vector<2x8x1xf32>
    %338 = vector.broadcast %337 : vector<2x8x1xf32> to vector<2x8x8xf32>
    %339 = arith.mulf %334, %338 : vector<2x8x8xf32>
    %340 = arith.truncf %339 : vector<2x8x8xf32> to vector<2x8x8xbf16>
    "tpu.trace_start"() <{level = 10 : i32, message = "bqk,bkd->bqd"}> : () -> ()
    %cst_110 = arith.constant dense<0.000000e+00> : vector<2x8x8xf32>
    %341 = tpu.matmul %340, %326, %cst_110 {dimension_numbers = #tpu.dot_dimension_numbers<[2], [1], [1], [2], [0, 0, 0, 1, 1, 2], [0], [0]>} : vector<2x8x8xbf16>, vector<2x8x8xbf16>, vector<2x8x8xf32> -> vector<2x8x8xf32>
    "tpu.trace_stop"() : () -> ()
    %342 = vector.shape_cast %341 : vector<2x8x8xf32> to vector<16x8xf32>
    %343 = arith.truncf %342 : vector<16x8xf32> to vector<16x8xbf16>
    %344 = vector.extract_strided_slice %243 {offsets = [24, 0], sizes = [8, 32], strides = [1, 1]} : vector<32x32xbf16> to vector<8x32xbf16>
    %cst_111 = arith.constant dense<0.000000e+00> : vector<16x32xf32>
    %345 = tpu.matmul %343, %344, %cst_111 {dimension_numbers = #tpu.dot_dimension_numbers<[1], [0], [0], [1], [0, 0, 1, 1], [], []>} : vector<16x8xbf16>, vector<8x32xbf16>, vector<16x32xf32> -> vector<16x32xf32>
    %346 = arith.addf %320, %345 : vector<16x32xf32>
    %c1_112 = arith.constant 1 : index
    %c0_113 = arith.constant 0 : index
    %c0_114 = arith.constant 0 : index
    %347 = vector.load %arg8[%c1_112, %c0_113, %c0_114] : memref<2x1x32xf32, #tpu.memory_space<vmem>>, vector<1x1x32xf32>
    %348 = vector.shape_cast %347 : vector<1x1x32xf32> to vector<1x32xf32>
    %349 = vector.broadcast %348 : vector<1x32xf32> to vector<16x32xf32>
    %350 = arith.addf %346, %349 : vector<16x32xf32>
    %351 = arith.addf %350, %227 : vector<16x32xf32>
    %c1_115 = arith.constant 1 : index
    %c0_116 = arith.constant 0 : index
    %c0_117 = arith.constant 0 : index
    %352 = vector.load %arg9[%c1_115, %c0_116, %c0_117] : memref<2x1x32xf32, #tpu.memory_space<vmem>>, vector<1x1x32xf32>
    %353 = vector.shape_cast %352 : vector<1x1x32xf32> to vector<1x32xf32>
    %c1_118 = arith.constant 1 : index
    %c0_119 = arith.constant 0 : index
    %c0_120 = arith.constant 0 : index
    %354 = vector.load %arg10[%c1_118, %c0_119, %c0_120] : memref<2x1x32xf32, #tpu.memory_space<vmem>>, vector<1x1x32xf32>
    %355 = vector.shape_cast %354 : vector<1x1x32xf32> to vector<1x32xf32>
    %cst_121 = arith.constant dense<0.000000e+00> : vector<16xf32>
    %356 = vector.multi_reduction <add>, %351, %cst_121 [1] : vector<16x32xf32> to vector<16xf32>
    %357 = vector.shape_cast %356 : vector<16xf32> to vector<16x1xf32>
    %cst_122 = arith.constant 3.200000e+01 : f32
    %358 = vector.broadcast %cst_122 : f32 to vector<16x1xf32>
    %359 = arith.divf %357, %358 : vector<16x1xf32>
    %360 = vector.broadcast %359 : vector<16x1xf32> to vector<16x32xf32>
    %361 = arith.subf %351, %360 : vector<16x32xf32>
    %362 = arith.mulf %361, %361 : vector<16x32xf32>
    %cst_123 = arith.constant dense<0.000000e+00> : vector<16xf32>
    %363 = vector.multi_reduction <add>, %362, %cst_123 [1] : vector<16x32xf32> to vector<16xf32>
    %364 = vector.shape_cast %363 : vector<16xf32> to vector<16x1xf32>
    %cst_124 = arith.constant 3.200000e+01 : f32
    %365 = vector.broadcast %cst_124 : f32 to vector<16x1xf32>
    %366 = arith.divf %364, %365 : vector<16x1xf32>
    %367 = vector.broadcast %359 : vector<16x1xf32> to vector<16x32xf32>
    %368 = arith.subf %351, %367 : vector<16x32xf32>
    %cst_125 = arith.constant 9.99999996E-13 : f32
    %369 = vector.broadcast %cst_125 : f32 to vector<16x1xf32>
    %370 = arith.addf %366, %369 : vector<16x1xf32>
    %371 = math.rsqrt %370 : vector<16x1xf32>
    %372 = vector.broadcast %371 : vector<16x1xf32> to vector<16x32xf32>
    %373 = arith.mulf %368, %372 : vector<16x32xf32>
    %374 = vector.broadcast %353 : vector<1x32xf32> to vector<16x32xf32>
    %375 = arith.mulf %373, %374 : vector<16x32xf32>
    %376 = vector.broadcast %355 : vector<1x32xf32> to vector<16x32xf32>
    %377 = arith.addf %375, %376 : vector<16x32xf32>
    %c1_126 = arith.constant 1 : index
    %c0_127 = arith.constant 0 : index
    %c0_128 = arith.constant 0 : index
    %378 = vector.load %arg11[%c1_126, %c0_127, %c0_128] : memref<2x32x64xbf16, #tpu.memory_space<vmem>>, vector<1x32x64xbf16>
    %379 = vector.shape_cast %378 : vector<1x32x64xbf16> to vector<32x64xbf16>
    %380 = arith.truncf %377 : vector<16x32xf32> to vector<16x32xbf16>
    %cst_129 = arith.constant dense<0.000000e+00> : vector<16x64xf32>
    %381 = tpu.matmul %380, %379, %cst_129 {dimension_numbers = #tpu.dot_dimension_numbers<[1], [0], [0], [1], [0, 0, 1, 1], [], []>} : vector<16x32xbf16>, vector<32x64xbf16>, vector<16x64xf32> -> vector<16x64xf32>
    %c1_130 = arith.constant 1 : index
    %c0_131 = arith.constant 0 : index
    %c0_132 = arith.constant 0 : index
    %382 = vector.load %arg12[%c1_130, %c0_131, %c0_132] : memref<2x1x64xf32, #tpu.memory_space<vmem>>, vector<1x1x64xf32>
    %383 = vector.shape_cast %382 : vector<1x1x64xf32> to vector<1x64xf32>
    %384 = vector.broadcast %383 : vector<1x64xf32> to vector<16x64xf32>
    %385 = arith.addf %381, %384 : vector<16x64xf32>
    %cst_133 = arith.constant 5.000000e-01 : f32
    %386 = vector.broadcast %cst_133 : f32 to vector<16x64xf32>
    %387 = arith.mulf %386, %385 : vector<16x64xf32>
    %cst_134 = arith.constant 0.707106769 : f32
    %388 = vector.broadcast %cst_134 : f32 to vector<16x64xf32>
    %389 = arith.mulf %385, %388 : vector<16x64xf32>
    %390 = math.erf %389 : vector<16x64xf32>
    %cst_135 = arith.constant 1.000000e+00 : f32
    %391 = vector.broadcast %cst_135 : f32 to vector<16x64xf32>
    %392 = arith.addf %391, %390 : vector<16x64xf32>
    %393 = arith.mulf %387, %392 : vector<16x64xf32>
    %c1_136 = arith.constant 1 : index
    %c0_137 = arith.constant 0 : index
    %c0_138 = arith.constant 0 : index
    %394 = vector.load %arg13[%c1_136, %c0_137, %c0_138] : memref<2x64x32xbf16, #tpu.memory_space<vmem>>, vector<1x64x32xbf16>
    %395 = vector.shape_cast %394 : vector<1x64x32xbf16> to vector<64x32xbf16>
    %396 = arith.truncf %393 : vector<16x64xf32> to vector<16x64xbf16>
    %cst_139 = arith.constant dense<0.000000e+00> : vector<16x32xf32>
    %397 = tpu.matmul %396, %395, %cst_139 {dimension_numbers = #tpu.dot_dimension_numbers<[1], [0], [0], [1], [0, 0, 1, 1], [], []>} : vector<16x64xbf16>, vector<64x32xbf16>, vector<16x32xf32> -> vector<16x32xf32>
    %c1_140 = arith.constant 1 : index
    %c0_141 = arith.constant 0 : index
    %c0_142 = arith.constant 0 : index
    %398 = vector.load %arg14[%c1_140, %c0_141, %c0_142] : memref<2x1x32xf32, #tpu.memory_space<vmem>>, vector<1x1x32xf32>
    %399 = vector.shape_cast %398 : vector<1x1x32xf32> to vector<1x32xf32>
    %400 = vector.broadcast %399 : vector<1x32xf32> to vector<16x32xf32>
    %401 = arith.addf %397, %400 : vector<16x32xf32>
    %402 = arith.addf %401, %377 : vector<16x32xf32>
    %c1_143 = arith.constant 1 : index
    %c0_144 = arith.constant 0 : index
    %c0_145 = arith.constant 0 : index
    %403 = vector.load %arg15[%c1_143, %c0_144, %c0_145] : memref<2x1x32xf32, #tpu.memory_space<vmem>>, vector<1x1x32xf32>
    %404 = vector.shape_cast %403 : vector<1x1x32xf32> to vector<1x32xf32>
    %c1_146 = arith.constant 1 : index
    %c0_147 = arith.constant 0 : index
    %c0_148 = arith.constant 0 : index
    %405 = vector.load %arg16[%c1_146, %c0_147, %c0_148] : memref<2x1x32xf32, #tpu.memory_space<vmem>>, vector<1x1x32xf32>
    %406 = vector.shape_cast %405 : vector<1x1x32xf32> to vector<1x32xf32>
    %cst_149 = arith.constant dense<0.000000e+00> : vector<16xf32>
    %407 = vector.multi_reduction <add>, %402, %cst_149 [1] : vector<16x32xf32> to vector<16xf32>
    %408 = vector.shape_cast %407 : vector<16xf32> to vector<16x1xf32>
    %cst_150 = arith.constant 3.200000e+01 : f32
    %409 = vector.broadcast %cst_150 : f32 to vector<16x1xf32>
    %410 = arith.divf %408, %409 : vector<16x1xf32>
    %411 = vector.broadcast %410 : vector<16x1xf32> to vector<16x32xf32>
    %412 = arith.subf %402, %411 : vector<16x32xf32>
    %413 = arith.mulf %412, %412 : vector<16x32xf32>
    %cst_151 = arith.constant dense<0.000000e+00> : vector<16xf32>
    %414 = vector.multi_reduction <add>, %413, %cst_151 [1] : vector<16x32xf32> to vector<16xf32>
    %415 = vector.shape_cast %414 : vector<16xf32> to vector<16x1xf32>
    %cst_152 = arith.constant 3.200000e+01 : f32
    %416 = vector.broadcast %cst_152 : f32 to vector<16x1xf32>
    %417 = arith.divf %415, %416 : vector<16x1xf32>
    %418 = vector.broadcast %410 : vector<16x1xf32> to vector<16x32xf32>
    %419 = arith.subf %402, %418 : vector<16x32xf32>
    %cst_153 = arith.constant 9.99999996E-13 : f32
    %420 = vector.broadcast %cst_153 : f32 to vector<16x1xf32>
    %421 = arith.addf %417, %420 : vector<16x1xf32>
    %422 = math.rsqrt %421 : vector<16x1xf32>
    %423 = vector.broadcast %422 : vector<16x1xf32> to vector<16x32xf32>
    %424 = arith.mulf %419, %423 : vector<16x32xf32>
    %425 = vector.broadcast %404 : vector<1x32xf32> to vector<16x32xf32>
    %426 = arith.mulf %424, %425 : vector<16x32xf32>
    %427 = vector.broadcast %406 : vector<1x32xf32> to vector<16x32xf32>
    %428 = arith.addf %426, %427 : vector<16x32xf32>
    %429 = vector.shape_cast %428 : vector<16x32xf32> to vector<2x8x32xf32>
    %430 = vector.extract_strided_slice %429 {offsets = [0, 0, 0], sizes = [2, 1, 32], strides = [1, 1, 1]} : vector<2x8x32xf32> to vector<2x1x32xf32>
    %431 = vector.shape_cast %430 : vector<2x1x32xf32> to vector<2x32xf32>
    %c0_154 = arith.constant 0 : index
    %c0_155 = arith.constant 0 : index
    %432 = vector.load %arg17[%c0_154, %c0_155] : memref<32x32xbf16, #tpu.memory_space<vmem>>, vector<32x32xbf16>
    %433 = arith.truncf %431 : vector<2x32xf32> to vector<2x32xbf16>
    %cst_156 = arith.constant dense<0.000000e+00> : vector<2x32xf32>
    %434 = tpu.matmul %433, %432, %cst_156 {dimension_numbers = #tpu.dot_dimension_numbers<[1], [0], [0], [1], [0, 0, 1, 1], [], []>} : vector<2x32xbf16>, vector<32x32xbf16>, vector<2x32xf32> -> vector<2x32xf32>
    %c0_157 = arith.constant 0 : index
    %c0_158 = arith.constant 0 : index
    %435 = vector.load %arg18[%c0_157, %c0_158] : memref<1x32xf32, #tpu.memory_space<vmem>>, vector<1x32xf32>
    %436 = vector.broadcast %435 : vector<1x32xf32> to vector<2x32xf32>
    %437 = arith.addf %434, %436 : vector<2x32xf32>
    %438 = math.tanh %437 : vector<2x32xf32>
    %c0_159 = arith.constant 0 : index
    %c0_160 = arith.constant 0 : index
    %439 = vector.load %arg19[%c0_159, %c0_160] : memref<32x128xbf16, #tpu.memory_space<vmem>>, vector<32x128xbf16>
    %440 = arith.truncf %438 : vector<2x32xf32> to vector<2x32xbf16>
    %cst_161 = arith.constant dense<0.000000e+00> : vector<2x128xf32>
    %441 = tpu.matmul %440, %439, %cst_161 {dimension_numbers = #tpu.dot_dimension_numbers<[1], [0], [0], [1], [0, 0, 1, 1], [], []>} : vector<2x32xbf16>, vector<32x128xbf16>, vector<2x128xf32> -> vector<2x128xf32>
    %c0_162 = arith.constant 0 : index
    %c0_163 = arith.constant 0 : index
    %442 = vector.load %arg20[%c0_162, %c0_163] : memref<1x128xf32, #tpu.memory_space<vmem>>, vector<1x128xf32>
    %443 = vector.broadcast %442 : vector<1x128xf32> to vector<2x128xf32>
    %444 = arith.addf %441, %443 : vector<2x128xf32>
    %c0_164 = arith.constant 0 : index
    %c0_165 = arith.constant 0 : index
    %445 = vector.load %arg21[%c0_164, %c0_165] : memref<2x128xf32, #tpu.memory_space<vmem>>, vector<2x128xf32>
    tpu.vector_store %arg21[%c0_164, %c0_165], %444 {strides = array<i32>} : memref<2x128xf32, #tpu.memory_space<vmem>>, vector<2x128xf32>,
    return
  }
  func.func @transform_0(%arg0: i32) -> (i32, i32) {
    %c0_i32 = arith.constant 0 : i32
    %c0_i32_0 = arith.constant 0 : i32
    %c0_i32_1 = arith.constant 0 : i32
    return %c0_i32, %c0_i32_0 : i32, i32
  }
  func.func @transform_1(%arg0: i32) -> (i32, i32) {
    %c0_i32 = arith.constant 0 : i32
    %c0_i32_0 = arith.constant 0 : i32
    %c0_i32_1 = arith.constant 0 : i32
    return %c0_i32, %c0_i32_0 : i32, i32
  }
  func.func @transform_2(%arg0: i32) -> (i32, i32) {
    %c0_i32 = arith.constant 0 : i32
    %c0_i32_0 = arith.constant 0 : i32
    %c0_i32_1 = arith.constant 0 : i32
    return %c0_i32, %c0_i32_0 : i32, i32
  }
  func.func @transform_3(%arg0: i32) -> (i32, i32) {
    %c0_i32 = arith.constant 0 : i32
    %c0_i32_0 = arith.constant 0 : i32
    %c0_i32_1 = arith.constant 0 : i32
    return %c0_i32, %c0_i32_0 : i32, i32
  }
  func.func @transform_4(%arg0: i32) -> (i32, i32, i32) {
    %c0_i32 = arith.constant 0 : i32
    %c0_i32_0 = arith.constant 0 : i32
    %c0_i32_1 = arith.constant 0 : i32
    %c0_i32_2 = arith.constant 0 : i32
    return %c0_i32, %c0_i32_0, %c0_i32_1 : i32, i32, i32
  }
  func.func @transform_5(%arg0: i32) -> (i32, i32, i32) {
    %c0_i32 = arith.constant 0 : i32
    %c0_i32_0 = arith.constant 0 : i32
    %c0_i32_1 = arith.constant 0 : i32
    %c0_i32_2 = arith.constant 0 : i32
    return %c0_i32, %c0_i32_0, %c0_i32_1 : i32, i32, i32
  }
  func.func @transform_6(%arg0: i32) -> (i32, i32, i32) {
    %c0_i32 = arith.constant 0 : i32
    %c0_i32_0 = arith.constant 0 : i32
    %c0_i32_1 = arith.constant 0 : i32
    %c0_i32_2 = arith.constant 0 : i32
    return %c0_i32, %c0_i32_0, %c0_i32_1 : i32, i32, i32
  }
  func.func @transform_7(%arg0: i32) -> (i32, i32, i32) {
    %c0_i32 = arith.constant 0 : i32
    %c0_i32_0 = arith.constant 0 : i32
    %c0_i32_1 = arith.constant 0 : i32
    %c0_i32_2 = arith.constant 0 : i32
    return %c0_i32, %c0_i32_0, %c0_i32_1 : i32, i32, i32
  }
  func.func @transform_8(%arg0: i32) -> (i32, i32, i32) {
    %c0_i32 = arith.constant 0 : i32
    %c0_i32_0 = arith.constant 0 : i32
    %c0_i32_1 = arith.constant 0 : i32
    %c0_i32_2 = arith.constant 0 : i32
    return %c0_i32, %c0_i32_0, %c0_i32_1 : i32, i32, i32
  }
  func.func @transform_9(%arg0: i32) -> (i32, i32, i32) {
    %c0_i32 = arith.constant 0 : i32
    %c0_i32_0 = arith.constant 0 : i32
    %c0_i32_1 = arith.constant 0 : i32
    %c0_i32_2 = arith.constant 0 : i32
    return %c0_i32, %c0_i32_0, %c0_i32_1 : i32, i32, i32
  }
  func.func @transform_10(%arg0: i32) -> (i32, i32, i32) {
    %c0_i32 = arith.constant 0 : i32
    %c0_i32_0 = arith.constant 0 : i32
    %c0_i32_1 = arith.constant 0 : i32
    %c0_i32_2 = arith.constant 0 : i32
    return %c0_i32, %c0_i32_0, %c0_i32_1 : i32, i32, i32
  }
  func.func @transform_11(%arg0: i32) -> (i32, i32, i32) {
    %c0_i32 = arith.constant 0 : i32
    %c0_i32_0 = arith.constant 0 : i32
    %c0_i32_1 = arith.constant 0 : i32
    %c0_i32_2 = arith.constant 0 : i32
    return %c0_i32, %c0_i32_0, %c0_i32_1 : i32, i32, i32
  }
  func.func @transform_12(%arg0: i32) -> (i32, i32, i32) {
    %c0_i32 = arith.constant 0 : i32
    %c0_i32_0 = arith.constant 0 : i32
    %c0_i32_1 = arith.constant 0 : i32
    %c0_i32_2 = arith.constant 0 : i32
    return %c0_i32, %c0_i32_0, %c0_i32_1 : i32, i32, i32
  }
  func.func @transform_13(%arg0: i32) -> (i32, i32, i32) {
    %c0_i32 = arith.constant 0 : i32
    %c0_i32_0 = arith.constant 0 : i32
    %c0_i32_1 = arith.constant 0 : i32
    %c0_i32_2 = arith.constant 0 : i32
    return %c0_i32, %c0_i32_0, %c0_i32_1 : i32, i32, i32
  }
  func.func @transform_14(%arg0: i32) -> (i32, i32, i32) {
    %c0_i32 = arith.constant 0 : i32
    %c0_i32_0 = arith.constant 0 : i32
    %c0_i32_1 = arith.constant 0 : i32
    %c0_i32_2 = arith.constant 0 : i32
    return %c0_i32, %c0_i32_0, %c0_i32_1 : i32, i32, i32
  }
  func.func @transform_15(%arg0: i32) -> (i32, i32, i32) {
    %c0_i32 = arith.constant 0 : i32
    %c0_i32_0 = arith.constant 0 : i32
    %c0_i32_1 = arith.constant 0 : i32
    %c0_i32_2 = arith.constant 0 : i32
    return %c0_i32, %c0_i32_0, %c0_i32_1 : i32, i32, i32
  }
  func.func @transform_16(%arg0: i32) -> (i32, i32) {
    %c0_i32 = arith.constant 0 : i32
    %c0_i32_0 = arith.constant 0 : i32
    %c0_i32_1 = arith.constant 0 : i32
    return %c0_i32, %c0_i32_0 : i32, i32
  }
  func.func @transform_17(%arg0: i32) -> (i32, i32) {
    %c0_i32 = arith.constant 0 : i32
    %c0_i32_0 = arith.constant 0 : i32
    %c0_i32_1 = arith.constant 0 : i32
    return %c0_i32, %c0_i32_0 : i32, i32
  }
  func.func @transform_18(%arg0: i32) -> (i32, i32) {
    %c0_i32 = arith.constant 0 : i32
    %c0_i32_0 = arith.constant 0 : i32
    %c0_i32_1 = arith.constant 0 : i32
    return %c0_i32, %c0_i32_0 : i32, i32
  }
  func.func @transform_19(%arg0: i32) -> (i32, i32) {
    %c0_i32 = arith.constant 0 : i32
    %c0_i32_0 = arith.constant 0 : i32
    %c0_i32_1 = arith.constant 0 : i32
    return %c0_i32, %c0_i32_0 : i32, i32
  }
  func.func @transform_20(%arg0: i32) -> (i32, i32) {
    %c0_i32 = arith.constant 0 : i32
    %c0_i32_0 = arith.constant 0 : i32
    %c0_i32_1 = arith.constant 0 : i32
    return %c0_i32, %c0_i32_0 : i32, i32
  }
}

</mosaic_0001>

<llo_original>
// kernel: _lambda_.1
$region0: #{_lambda_.1}
  #allocation0 [shape = 'u32[]', space=smem, size = 0x4, offset = 0x4, fixed_abs, tag = 'smem constant byte address 0x4 - core index']
  #allocation1 [shape = 'u32[144,128]{1,0:T(1,128)}', space=vmem, size = 0x12000, scoped, tag = 'internal scratch']
  %s0 = inlined_call_operand.vmem [shape: f32[16,32], index: 0, kind: input, shape index: {}]
  %s1 = inlined_call_operand.vmem [shape: f32[2,8], index: 1, kind: input, shape index: {}]
  %s2 = inlined_call_operand.vmem [shape: f32[1,32], index: 2, kind: input, shape index: {}]
  %s3 = inlined_call_operand.vmem [shape: f32[1,32], index: 3, kind: input, shape index: {}]
  %s4 = inlined_call_operand.vmem [shape: bf16[2,32,96], index: 4, kind: input, shape index: {}]
  %s5 = inlined_call_operand.vmem [shape: f32[2,1,96], index: 5, kind: input, shape index: {}]
  %s6 = inlined_call_operand.vmem [shape: bf16[2,32,32], index: 6, kind: input, shape index: {}]
  %s7 = inlined_call_operand.vmem [shape: f32[2,1,32], index: 7, kind: input, shape index: {}]
  %s8 = inlined_call_operand.vmem [shape: f32[2,1,32], index: 8, kind: input, shape index: {}]
  %s9 = inlined_call_operand.vmem [shape: f32[2,1,32], index: 9, kind: input, shape index: {}]
  %s10 = inlined_call_operand.vmem [shape: bf16[2,32,64], index: 10, kind: input, shape index: {}]
  %s11 = inlined_call_operand.vmem [shape: f32[2,1,64], index: 11, kind: input, shape index: {}]
  %s12 = inlined_call_operand.vmem [shape: bf16[2,64,32], index: 12, kind: input, shape index: {}]
  %s13 = inlined_call_operand.vmem [shape: f32[2,1,32], index: 13, kind: input, shape index: {}]
  %s14 = inlined_call_operand.vmem [shape: f32[2,1,32], index: 14, kind: input, shape index: {}]
  %s15 = inlined_call_operand.vmem [shape: f32[2,1,32], index: 15, kind: input, shape index: {}]
  %s16 = inlined_call_operand.vmem [shape: bf16[32,32], index: 16, kind: input, shape index: {}]
  %s17 = inlined_call_operand.vmem [shape: f32[1,32], index: 17, kind: input, shape index: {}]
  %s18 = inlined_call_operand.vmem [shape: bf16[32,128], index: 18, kind: input, shape index: {}]
  %s19 = inlined_call_operand.vmem [shape: f32[1,128], index: 19, kind: input, shape index: {}]
  %s20 = inlined_call_operand.hbm [shape: f32[2,128], index: 20, kind: output, shape index: {}]
  %s21 = sld [smem:[#allocation0]]
  $region90: #{_lambda_.1} parent=0
    _
  %s23 = ssub.s32 1, %s21
  %s24 = scalar_select 0, %s23, %s21
  $region1: #{_lambda_.1} parent=0
    #allocation2 [shape = 'u8[1024]{0}', space=vmem, size = 0x400, scoped, tag = 'output window, operand 0, single buffered']
    #allocation3 [shape = 's32[1]{0}', space=sflag, size = 0x4, scoped, tag = 'scoped memory for _lambda_.1']
    %25 = vsyncpa [#allocation3], 0
    // Predicated region
    $region2: #{_lambda_.1} parent=1 // pred_check
      _
    $region3: #{_lambda_.1} parent=1 // pred_check_branch
      %27 = sbr.rel (0) target = $region5
    $region4: #{_lambda_.1} parent=1 // pred_region
      _
    $region5: #{_lambda_.1} parent=1 // pred_fallthru
      _
    // Predicated region
    $region6: #{_lambda_.1} parent=1 // pred_check
      _
    $region7: #{_lambda_.1} parent=1 // pred_check_branch
      %29 = sbr.rel (0) target = $region9
    $region8: #{_lambda_.1} parent=1 // pred_region
      _
    $region9: #{_lambda_.1} parent=1 // pred_fallthru
      _
    // Predicated region
    $region10: #{_lambda_.1} parent=1 // pred_check
      _
    $region11: #{_lambda_.1} parent=1 // pred_check_branch
      %31 = sbr.rel (0) target = $region13
    $region12: #{_lambda_.1} parent=1 // pred_region
      _
    $region13: #{_lambda_.1} parent=1 // pred_fallthru
      _
    // Predicated region
    $region14: #{_lambda_.1} parent=1 // pred_check
      _
    $region15: #{_lambda_.1} parent=1 // pred_check_branch
      %33 = sbr.rel (0) target = $region17
    $region16: #{_lambda_.1} parent=1 // pred_region
      _
    $region17: #{_lambda_.1} parent=1 // pred_fallthru
      _
    // Predicated region
    $region18: #{_lambda_.1} parent=1 // pred_check
      _
    $region19: #{_lambda_.1} parent=1 // pred_check_branch
      %35 = sbr.rel (0) target = $region21
    $region20: #{_lambda_.1} parent=1 // pred_region
      _
    $region21: #{_lambda_.1} parent=1 // pred_fallthru
      _
    // Predicated region
    $region22: #{_lambda_.1} parent=1 // pred_check
      _
    $region23: #{_lambda_.1} parent=1 // pred_check_branch
      %37 = sbr.rel (0) target = $region25
    $region24: #{_lambda_.1} parent=1 // pred_region
      _
    $region25: #{_lambda_.1} parent=1 // pred_fallthru
      _
    // Predicated region
    $region26: #{_lambda_.1} parent=1 // pred_check
      _
    $region27: #{_lambda_.1} parent=1 // pred_check_branch
      %39 = sbr.rel (0) target = $region29
    $region28: #{_lambda_.1} parent=1 // pred_region
      _
    $region29: #{_lambda_.1} parent=1 // pred_fallthru
      _
    // Predicated region
    $region30: #{_lambda_.1} parent=1 // pred_check
      _
    $region31: #{_lambda_.1} parent=1 // pred_check_branch
      %41 = sbr.rel (0) target = $region33
    $region32: #{_lambda_.1} parent=1 // pred_region
      _
    $region33: #{_lambda_.1} parent=1 // pred_fallthru
      _
    // Predicated region
    $region34: #{_lambda_.1} parent=1 // pred_check
      _
    $region35: #{_lambda_.1} parent=1 // pred_check_branch
      %43 = sbr.rel (0) target = $region37
    $region36: #{_lambda_.1} parent=1 // pred_region
      _
    $region37: #{_lambda_.1} parent=1 // pred_fallthru
      _
    // Predicated region
    $region38: #{_lambda_.1} parent=1 // pred_check
      _
    $region39: #{_lambda_.1} parent=1 // pred_check_branch
      %45 = sbr.rel (0) target = $region41
    $region40: #{_lambda_.1} parent=1 // pred_region
      _
    $region41: #{_lambda_.1} parent=1 // pred_fallthru
      _
    // Predicated region
    $region42: #{_lambda_.1} parent=1 // pred_check
      _
    $region43: #{_lambda_.1} parent=1 // pred_check_branch
      %47 = sbr.rel (0) target = $region45
    $region44: #{_lambda_.1} parent=1 // pred_region
      _
    $region45: #{_lambda_.1} parent=1 // pred_fallthru
      _
    // Predicated region
    $region46: #{_lambda_.1} parent=1 // pred_check
      _
    $region47: #{_lambda_.1} parent=1 // pred_check_branch
      %49 = sbr.rel (0) target = $region49
    $region48: #{_lambda_.1} parent=1 // pred_region
      _
    $region49: #{_lambda_.1} parent=1 // pred_fallthru
      _
    // Predicated region
    $region50: #{_lambda_.1} parent=1 // pred_check
      _
    $region51: #{_lambda_.1} parent=1 // pred_check_branch
      %51 = sbr.rel (0) target = $region53
    $region52: #{_lambda_.1} parent=1 // pred_region
      _
    $region53: #{_lambda_.1} parent=1 // pred_fallthru
      _
    // Predicated region
    $region54: #{_lambda_.1} parent=1 // pred_check
      _
    $region55: #{_lambda_.1} parent=1 // pred_check_branch
      %53 = sbr.rel (0) target = $region57
    $region56: #{_lambda_.1} parent=1 // pred_region
      _
    $region57: #{_lambda_.1} parent=1 // pred_fallthru
      _
    // Predicated region
    $region58: #{_lambda_.1} parent=1 // pred_check
      _
    $region59: #{_lambda_.1} parent=1 // pred_check_branch
      %55 = sbr.rel (0) target = $region61
    $region60: #{_lambda_.1} parent=1 // pred_region
      _
    $region61: #{_lambda_.1} parent=1 // pred_fallthru
      _
    // Predicated region
    $region62: #{_lambda_.1} parent=1 // pred_check
      _
    $region63: #{_lambda_.1} parent=1 // pred_check_branch
      %57 = sbr.rel (0) target = $region65
    $region64: #{_lambda_.1} parent=1 // pred_region
      _
    $region65: #{_lambda_.1} parent=1 // pred_fallthru
      _
    // Predicated region
    $region66: #{_lambda_.1} parent=1 // pred_check
      _
    $region67: #{_lambda_.1} parent=1 // pred_check_branch
      %59 = sbr.rel (0) target = $region69
    $region68: #{_lambda_.1} parent=1 // pred_region
      _
    $region69: #{_lambda_.1} parent=1 // pred_fallthru
      _
    // Predicated region
    $region70: #{_lambda_.1} parent=1 // pred_check
      _
    $region71: #{_lambda_.1} parent=1 // pred_check_branch
      %61 = sbr.rel (0) target = $region73
    $region72: #{_lambda_.1} parent=1 // pred_region
      _
    $region73: #{_lambda_.1} parent=1 // pred_fallthru
      _
    // Predicated region
    $region74: #{_lambda_.1} parent=1 // pred_check
      _
    $region75: #{_lambda_.1} parent=1 // pred_check_branch
      %63 = sbr.rel (0) target = $region77
    $region76: #{_lambda_.1} parent=1 // pred_region
      _
    $region77: #{_lambda_.1} parent=1 // pred_fallthru
      _
    // Predicated region
    $region78: #{_lambda_.1} parent=1 // pred_check
      _
    $region79: #{_lambda_.1} parent=1 // pred_check_branch
      %65 = sbr.rel (0) target = $region81
    $region80: #{_lambda_.1} parent=1 // pred_region
      _
    $region81: #{_lambda_.1} parent=1 // pred_fallthru
      _
    %v67 = vld [vmem:[%s0] sm:$0xff]
    %v68 = vld [vmem:[%s0 + $0x8] sm:$0xff]
    %v69 = vld [vmem:[%s2] sm:$0x1]
    %v70 = vld [vmem:[%s3] sm:$0x1]
    %vm71 = vcmask 261120
    %v72 = vsel %vm71, %v67, 0.0
    %73 = vadd.xlane.f32.xlu0 %v72
    %v74 = vpop.xlane.xlu0 %73
    %v75 = vsel %vm71, %v68, 0.0
    %76 = vadd.xlane.f32.xlu0 %v75
    %v77 = vpop.xlane.xlu0 %76
    %v78 = vrcp.pop 32.0
    %v79 = vmul.f32 %v74, %v78
    %v80 = vmul.f32 %v77, %v78
    %v81 = vsub.f32 %v67, %v79
    %v82 = vsub.f32 %v68, %v80
    %v83 = vmul.f32 %v81, %v81
    %v84 = vmul.f32 %v82, %v82
    %v85 = vsel %vm71, %v83, 0.0
    %86 = vadd.xlane.f32.xlu0 %v85
    %v87 = vpop.xlane.xlu0 %86
    %v88 = vsel %vm71, %v84, 0.0
    %89 = vadd.xlane.f32.xlu0 %v88
    %v90 = vpop.xlane.xlu0 %89
    %v91 = vmul.f32 %v87, %v78
    %v92 = vmul.f32 %v90, %v78
    %v93 = vadd.f32 %v91, 1e-12
    %v94 = vadd.f32 %v92, 1e-12
    %v95 = vrsqrt.pop %v93
    %v96 = vrsqrt.pop %v94
    %v97 = vmul.f32 %v81, %v95
    %v98 = vmul.f32 %v82, %v96
    %v100 = vlaneseq
    %v101 = vshrl.u32 %v100, 7
    %v102 = vsub.s32 0, %v101
    %v103 = vrot.slane %v69, %v102
    %v105 = vmul.f32 %v97, %v103
    %v106 = vmul.f32 %v98, %v103
    %v108 = vlaneseq
    %v109 = vshrl.u32 %v108, 7
    %v110 = vsub.s32 0, %v109
    %v111 = vrot.slane %v70, %v110
    %v113 = vadd.f32 %v105, %v111
    %v114 = vadd.f32 %v106, %v111
    %v115 = vld [vmem:[%s1] sm:$0x3]
    %v118 = vunpack.c.l.s4 1966171168
    %v119 = vunpack.c.0.s8 %v118
    %v120 = vlaneseq
    %v121 = vshrl.u32 %v120, 7
    %v122 = vsub.s32 %v119, %v121
    %v123 = vrot.slane %v115, %v122
    %v124 = vcombine.high %v123, %v123
    %v126 = vunpack.c.l.s4 1966171168
    %v127 = vunpack.c.0.s8 %v126
    %v128 = vlaneseq
    %v129 = vshrl.u32 %v128, 7
    %v130 = vsub.s32 %v127, %v129
    %v131 = vrot.slane %v123, %v130
    %v133 = vunpack.c.l.s4 1966171168
    %v134 = vunpack.c.0.s8 %v133
    %v135 = vlaneseq
    %v136 = vshrl.u32 %v135, 7
    %v137 = vsub.s32 %v134, %v136
    %v138 = vrot.slane %v124, %v137
    %v139 = vld [vmem:[%s4] sm:$0xf]
    %v140 = vld [vmem:[%s4 + $0x4] sm:$0xf]
    %v141 = vld [vmem:[%s4 + $0x8] sm:$0xf]
    %v142 = vld [vmem:[%s4 + $0xc] sm:$0xf]
    %v143 = vpack.c.bf16 %v114, %v113
    %v144 = vld [vmem:[%s5] sm:$0x1]
    %v146 = vlaneseq
    %v147 = vshrl.u32 %v146, 7
    %v148 = vsub.s32 0, %v147
    %v149 = vrot.slane %v144, %v148
    %v155 = vunpack.c.l.b16 %v139
    %v156 = vunpack.c.l.b16 %v140
    %v157 = vunpack.c.l.b16 %v141
    %v158 = vunpack.c.l.b16 %v142
    %v159 = vpack.c.b16 %v156, %v155
    %v160 = vpack.c.b16 %v158, %v157
    %v164 = vsel %vm71, %v143, 0
    %166 = vmatprep.subr.bf16.mxu0 0
    %167 = vmatpush1.bf16.msra.mxu0 0
    %168 = vmatprep.subr.bf16.mxu0 0
    %169 = vmatpush1.bf16.msra.mxu0 0
    %170 = vmatprep.subr.bf16.mxu0 0
    %171 = vmatpush1.bf16.msra.mxu0 0
    %172 = vmatprep.subr.bf16.mxu0 0
    %173 = vmatpush1.bf16.msra.mxu0 0
    %174 = vmatprep.subr.bf16.mxu0 0
    %175 = vmatpush1.bf16.msra.mxu0 0
    %176 = vmatprep.subr.bf16.mxu0 0
    %177 = vmatpush1.bf16.msra.mxu0 0
    %178 = vmatprep.subr.bf16.mxu0 0
    %179 = vmatpush1.bf16.msra.mxu0 %v160
    %180 = vmatprep.subr.bf16.mxu0 0
    %181 = vmatpush1.bf16.msra.mxu0 %v159
    %182 = vmatprep.subr.bf16.mxu0 0
    %183 = vmatpush2.bf16.msra.mxu0 0
    %184 = vmatprep.subr.bf16.mxu0 0
    %185 = vmatpush2.bf16.msra.mxu0 0
    %186 = vmatprep.subr.bf16.mxu0 0
    %187 = vmatpush2.bf16.msra.mxu0 0
    %188 = vmatprep.subr.bf16.mxu0 0
    %189 = vmatpush2.bf16.msra.mxu0 0
    %190 = vmatprep.subr.bf16.mxu0 0
    %191 = vmatpush2.bf16.msra.mxu0 0
    %192 = vmatprep.subr.bf16.mxu0 0
    %193 = vmatpush2.bf16.msra.mxu0 0
    %194 = vmatprep.subr.bf16.mxu0 0
    %195 = vmatpush2.bf16.msra.mxu0 0
    %196 = vmatprep.subr.bf16.mxu0 0
    %197 = vmatpush2.bf16.msra.mxu0 0
    %198 = vmatprep.mubr.bf16.mxu0 0
    %199 = vmatmul.mubr.bf16.gmra.mxu0 %v164
    %v200 = vpop.f32.mrf.mxu0
    %v201 = vadd.f32 %v149, %v200
    %v202 = vpop.f32.mrf.mxu0
    %v203 = vpop.f32.mrf.mxu0
    %v204 = vadd.f32 %v149, %v203
    %v205 = vpop.f32.mrf.mxu0
    %206 = vdwg.mxu0
    %v207 = vld [vmem:[%s6] sm:$0xf]
    %v208 = vld [vmem:[%s6 + $0x4] sm:$0xf]
    %v209 = vld [vmem:[%s6 + $0x8] sm:$0xf]
    %v210 = vld [vmem:[%s6 + $0xc] sm:$0xf]
    %v211 = vpack.c.bf16 %v201, %v201
    %v212 = vpack.c.bf16 %v204, %v204
    %v213 = vlaneseq
    %v214 = vshrl.u32 %v213, 7
    %v215 = vsub.s32 0, %v214
    %v216 = vrot.slane %v131, %v215
    %v217 = vlaneseq
    %v218 = vshrl.u32 %v217, 7
    %v219 = vsub.s32 0, %v218
    %v220 = vrot.slane %v138, %v219
    %224 = vrot.lane.b32.xlu0 %v211, 96
    %v225 = vpop.permute.xlu0 %224
    %vm226 = vcmask 64512
    %v228 = vsel %vm226, %v211, 0
    %v231 = vsel %vm226, %v225, 0
    %233 = vmatprep.subr.bf16.mxu0 0
    %234 = vmatpush1.bf16.xpose.msra.mxu0 0
    %235 = vmatprep.subr.bf16.mxu0 0
    %236 = vmatpush1.bf16.xpose.msra.mxu0 0
    %237 = vmatprep.subr.bf16.mxu0 0
    %238 = vmatpush1.bf16.xpose.msra.mxu0 0
    %239 = vmatprep.subr.bf16.mxu0 0
    %240 = vmatpush1.bf16.xpose.msra.mxu0 0
    %241 = vmatprep.subr.bf16.mxu0 0
    %242 = vmatpush1.bf16.xpose.msra.mxu0 0
    %243 = vmatprep.subr.bf16.mxu0 0
    %244 = vmatpush1.bf16.xpose.msra.mxu0 0
    %245 = vmatprep.subr.bf16.mxu0 0
    %246 = vmatpush1.bf16.xpose.msra.mxu0 0
    %247 = vmatprep.subr.bf16.mxu0 0
    %248 = vmatpush1.bf16.xpose.msra.mxu0 %v231
    %249 = vmatprep.subr.bf16.mxu0 0
    %250 = vmatpush2.bf16.xpose.msra.mxu0 0
    %251 = vmatprep.subr.bf16.mxu0 0
    %252 = vmatpush2.bf16.xpose.msra.mxu0 0
    %253 = vmatprep.subr.bf16.mxu0 0
    %254 = vmatpush2.bf16.xpose.msra.mxu0 0
    %255 = vmatprep.subr.bf16.mxu0 0
    %256 = vmatpush2.bf16.xpose.msra.mxu0 0
    %257 = vmatprep.subr.bf16.mxu0 0
    %258 = vmatpush2.bf16.xpose.msra.mxu0 0
    %259 = vmatprep.subr.bf16.mxu0 0
    %260 = vmatpush2.bf16.xpose.msra.mxu0 0
    %261 = vmatprep.subr.bf16.mxu0 0
    %262 = vmatpush2.bf16.xpose.msra.mxu0 0
    %263 = vmatprep.subr.bf16.mxu0 0
    %264 = vmatpush2.bf16.xpose.msra.mxu0 0
    %265 = vmatprep.mubr.bf16.mxu0 0
    %266 = vmatmul.mubr.bf16.gmra.mxu0 %v228
    %v267 = vpop.f32.mrf.mxu0
    %v268 = vadd.f32 %v216, %v267
    %v269 = vpop.f32.mrf.mxu0
    %v270 = vpop.f32.mrf.mxu0
    %v271 = vpop.f32.mrf.mxu0
    %272 = vdwg.mxu0
    %274 = vrot.lane.b32.xlu0 %v212, 96
    %v275 = vpop.permute.xlu0 %274
    %v277 = vsel %vm226, %v212, 0
    %v280 = vsel %vm226, %v275, 0
    %282 = vmatprep.subr.bf16.mxu0 0
    %283 = vmatpush1.bf16.xpose.msra.mxu0 0
    %284 = vmatprep.subr.bf16.mxu0 0
    %285 = vmatpush1.bf16.xpose.msra.mxu0 0
    %286 = vmatprep.subr.bf16.mxu0 0
    %287 = vmatpush1.bf16.xpose.msra.mxu0 0
    %288 = vmatprep.subr.bf16.mxu0 0
    %289 = vmatpush1.bf16.xpose.msra.mxu0 0
    %290 = vmatprep.subr.bf16.mxu0 0
    %291 = vmatpush1.bf16.xpose.msra.mxu0 0
    %292 = vmatprep.subr.bf16.mxu0 0
    %293 = vmatpush1.bf16.xpose.msra.mxu0 0
    %294 = vmatprep.subr.bf16.mxu0 0
    %295 = vmatpush1.bf16.xpose.msra.mxu0 0
    %296 = vmatprep.subr.bf16.mxu0 0
    %297 = vmatpush1.bf16.xpose.msra.mxu0 %v280
    %298 = vmatprep.subr.bf16.mxu0 0
    %299 = vmatpush2.bf16.xpose.msra.mxu0 0
    %300 = vmatprep.subr.bf16.mxu0 0
    %301 = vmatpush2.bf16.xpose.msra.mxu0 0
    %302 = vmatprep.subr.bf16.mxu0 0
    %303 = vmatpush2.bf16.xpose.msra.mxu0 0
    %304 = vmatprep.subr.bf16.mxu0 0
    %305 = vmatpush2.bf16.xpose.msra.mxu0 0
    %306 = vmatprep.subr.bf16.mxu0 0
    %307 = vmatpush2.bf16.xpose.msra.mxu0 0
    %308 = vmatprep.subr.bf16.mxu0 0
    %309 = vmatpush2.bf16.xpose.msra.mxu0 0
    %310 = vmatprep.subr.bf16.mxu0 0
    %311 = vmatpush2.bf16.xpose.msra.mxu0 0
    %312 = vmatprep.subr.bf16.mxu0 0
    %313 = vmatpush2.bf16.xpose.msra.mxu0 0
    %314 = vmatprep.mubr.bf16.mxu0 0
    %315 = vmatmul.mubr.bf16.gmra.mxu0 %v277
    %v316 = vpop.f32.mrf.mxu0
    %v317 = vadd.f32 %v220, %v316
    %v318 = vpop.f32.mrf.mxu0
    %v319 = vpop.f32.mrf.mxu0
    %v320 = vpop.f32.mrf.mxu0
    %321 = vdwg.mxu0
    %v322 = vsel %vm226, %v268, -inf
    %323 = vmax.xlane.f32.xlu0 %v322
    %v324 = vpop.xlane.xlu0 %323
    %v325 = vsel %vm226, %v317, -inf
    %326 = vmax.xlane.f32.xlu0 %v325
    %v327 = vpop.xlane.xlu0 %326
    %v328 = vsub.f32 %v268, %v324
    %v329 = vsub.f32 %v317, %v327
    %v330 = vmul.f32 %v328, 1.442695
    %v331 = vpow.pop %v330
    %v332 = vmul.f32 %v329, 1.442695
    %v333 = vpow.pop %v332
    %v334 = vsel %vm226, %v331, 0.0
    %335 = vadd.xlane.f32.xlu0 %v334
    %v336 = vpop.xlane.xlu0 %335
    %v337 = vsel %vm226, %v333, 0.0
    %338 = vadd.xlane.f32.xlu0 %v337
    %v339 = vpop.xlane.xlu0 %338
    %v340 = vrcp.pop %v336
    %v341 = vrcp.pop %v339
    %v342 = vmul.f32 %v331, %v340
    %v343 = vmul.f32 %v333, %v341
    %v344 = vpack.c.bf16 %v342, %v342
    %v345 = vpack.c.bf16 %v343, %v343
    %346 = vrot.lane.b32.xlu0 %v211, 64
    %v347 = vpop.permute.xlu0 %346
    %v349 = vsel %vm226, %v344, 0
    %vm351 = vcmask 1043456
    %v353 = vsel %vm351, %v347, 0
    %355 = vmatprep.subr.bf16.mxu0 0
    %356 = vmatpush1.bf16.msra.mxu0 0
    %357 = vmatprep.subr.bf16.mxu0 0
    %358 = vmatpush1.bf16.msra.mxu0 0
    %359 = vmatprep.subr.bf16.mxu0 0
    %360 = vmatpush1.bf16.msra.mxu0 0
    %361 = vmatprep.subr.bf16.mxu0 0
    %362 = vmatpush1.bf16.msra.mxu0 0
    %363 = vmatprep.subr.bf16.mxu0 0
    %364 = vmatpush1.bf16.msra.mxu0 0
    %365 = vmatprep.subr.bf16.mxu0 0
    %366 = vmatpush1.bf16.msra.mxu0 0
    %367 = vmatprep.subr.bf16.mxu0 0
    %368 = vmatpush1.bf16.msra.mxu0 0
    %369 = vmatprep.subr.bf16.mxu0 0
    %370 = vmatpush1.bf16.msra.mxu0 %v353
    %371 = vmatprep.subr.bf16.mxu0 0
    %372 = vmatpush2.bf16.msra.mxu0 0
    %373 = vmatprep.subr.bf16.mxu0 0
    %374 = vmatpush2.bf16.msra.mxu0 0
    %375 = vmatprep.subr.bf16.mxu0 0
    %376 = vmatpush2.bf16.msra.mxu0 0
    %377 = vmatprep.subr.bf16.mxu0 0
    %378 = vmatpush2.bf16.msra.mxu0 0
    %379 = vmatprep.subr.bf16.mxu0 0
    %380 = vmatpush2.bf16.msra.mxu0 0
    %381 = vmatprep.subr.bf16.mxu0 0
    %382 = vmatpush2.bf16.msra.mxu0 0
    %383 = vmatprep.subr.bf16.mxu0 0
    %384 = vmatpush2.bf16.msra.mxu0 0
    %385 = vmatprep.subr.bf16.mxu0 0
    %386 = vmatpush2.bf16.msra.mxu0 0
    %387 = vmatprep.mubr.bf16.mxu0 0
    %388 = vmatmul.mubr.bf16.gmra.mxu0 %v349
    %v389 = vpop.f32.mrf.mxu0
    %v390 = vadd.f32 0.0, %v389
    %v391 = vpop.f32.mrf.mxu0
    %v392 = vpop.f32.mrf.mxu0
    %v393 = vpop.f32.mrf.mxu0
    %394 = vdwg.mxu0
    %395 = vrot.lane.b32.xlu0 %v212, 64
    %v396 = vpop.permute.xlu0 %395
    %v398 = vsel %vm226, %v345, 0
    %v401 = vsel %vm351, %v396, 0
    %403 = vmatprep.subr.bf16.mxu0 0
    %404 = vmatpush1.bf16.msra.mxu0 0
    %405 = vmatprep.subr.bf16.mxu0 0
    %406 = vmatpush1.bf16.msra.mxu0 0
    %407 = vmatprep.subr.bf16.mxu0 0
    %408 = vmatpush1.bf16.msra.mxu0 0
    %409 = vmatprep.subr.bf16.mxu0 0
    %410 = vmatpush1.bf16.msra.mxu0 0
    %411 = vmatprep.subr.bf16.mxu0 0
    %412 = vmatpush1.bf16.msra.mxu0 0
    %413 = vmatprep.subr.bf16.mxu0 0
    %414 = vmatpush1.bf16.msra.mxu0 0
    %415 = vmatprep.subr.bf16.mxu0 0
    %416 = vmatpush1.bf16.msra.mxu0 0
    %417 = vmatprep.subr.bf16.mxu0 0
    %418 = vmatpush1.bf16.msra.mxu0 %v401
    %419 = vmatprep.subr.bf16.mxu0 0
    %420 = vmatpush2.bf16.msra.mxu0 0
    %421 = vmatprep.subr.bf16.mxu0 0
    %422 = vmatpush2.bf16.msra.mxu0 0
    %423 = vmatprep.subr.bf16.mxu0 0
    %424 = vmatpush2.bf16.msra.mxu0 0
    %425 = vmatprep.subr.bf16.mxu0 0
    %426 = vmatpush2.bf16.msra.mxu0 0
    %427 = vmatprep.subr.bf16.mxu0 0
    %428 = vmatpush2.bf16.msra.mxu0 0
    %429 = vmatprep.subr.bf16.mxu0 0
    %430 = vmatpush2.bf16.msra.mxu0 0
    %431 = vmatprep.subr.bf16.mxu0 0
    %432 = vmatpush2.bf16.msra.mxu0 0
    %433 = vmatprep.subr.bf16.mxu0 0
    %434 = vmatpush2.bf16.msra.mxu0 0
    %435 = vmatprep.mubr.bf16.mxu0 0
    %436 = vmatmul.mubr.bf16.gmra.mxu0 %v398
    %v437 = vpop.f32.mrf.mxu0
    %v438 = vadd.f32 0.0, %v437
    %v439 = vpop.f32.mrf.mxu0
    %v440 = vpop.f32.mrf.mxu0
    %v441 = vpop.f32.mrf.mxu0
    %442 = vdwg.mxu0
    %v443 = vpack.c.bf16 %v438, %v390
    %444 = vrot.lane.b32.xlu0 %v211, 120
    %v445 = vpop.permute.xlu0 %444
    %446 = vrot.lane.b32.xlu0 %v211, 88
    %v447 = vpop.permute.xlu0 %446
    %v449 = vsel %vm226, %v445, 0
    %v452 = vsel %vm226, %v447, 0
    %454 = vmatprep.subr.bf16.mxu0 0
    %455 = vmatpush1.bf16.xpose.msra.mxu0 0
    %456 = vmatprep.subr.bf16.mxu0 0
    %457 = vmatpush1.bf16.xpose.msra.mxu0 0
    %458 = vmatprep.subr.bf16.mxu0 0
    %459 = vmatpush1.bf16.xpose.msra.mxu0 0
    %460 = vmatprep.subr.bf16.mxu0 0
    %461 = vmatpush1.bf16.xpose.msra.mxu0 0
    %462 = vmatprep.subr.bf16.mxu0 0
    %463 = vmatpush1.bf16.xpose.msra.mxu0 0
    %464 = vmatprep.subr.bf16.mxu0 0
    %465 = vmatpush1.bf16.xpose.msra.mxu0 0
    %466 = vmatprep.subr.bf16.mxu0 0
    %467 = vmatpush1.bf16.xpose.msra.mxu0 0
    %468 = vmatprep.subr.bf16.mxu0 0
    %469 = vmatpush1.bf16.xpose.msra.mxu0 %v452
    %470 = vmatprep.subr.bf16.mxu0 0
    %471 = vmatpush2.bf16.xpose.msra.mxu0 0
    %472 = vmatprep.subr.bf16.mxu0 0
    %473 = vmatpush2.bf16.xpose.msra.mxu0 0
    %474 = vmatprep.subr.bf16.mxu0 0
    %475 = vmatpush2.bf16.xpose.msra.mxu0 0
    %476 = vmatprep.subr.bf16.mxu0 0
    %477 = vmatpush2.bf16.xpose.msra.mxu0 0
    %478 = vmatprep.subr.bf16.mxu0 0
    %479 = vmatpush2.bf16.xpose.msra.mxu0 0
    %480 = vmatprep.subr.bf16.mxu0 0
    %481 = vmatpush2.bf16.xpose.msra.mxu0 0
    %482 = vmatprep.subr.bf16.mxu0 0
    %483 = vmatpush2.bf16.xpose.msra.mxu0 0
    %484 = vmatprep.subr.bf16.mxu0 0
    %485 = vmatpush2.bf16.xpose.msra.mxu0 0
    %486 = vmatprep.mubr.bf16.mxu0 0
    %487 = vmatmul.mubr.bf16.gmra.mxu0 %v449
    %v488 = vpop.f32.mrf.mxu0
    %v489 = vadd.f32 %v216, %v488
    %v490 = vpop.f32.mrf.mxu0
    %v491 = vpop.f32.mrf.mxu0
    %v492 = vpop.f32.mrf.mxu0
    %493 = vdwg.mxu0
    %494 = vrot.lane.b32.xlu0 %v212, 120
    %v495 = vpop.permute.xlu0 %494
    %496 = vrot.lane.b32.xlu0 %v212, 88
    %v497 = vpop.permute.xlu0 %496
    %v499 = vsel %vm226, %v495, 0
    %v502 = vsel %vm226, %v497, 0
    %504 = vmatprep.subr.bf16.mxu0 0
    %505 = vmatpush1.bf16.xpose.msra.mxu0 0
    %506 = vmatprep.subr.bf16.mxu0 0
    %507 = vmatpush1.bf16.xpose.msra.mxu0 0
    %508 = vmatprep.subr.bf16.mxu0 0
    %509 = vmatpush1.bf16.xpose.msra.mxu0 0
    %510 = vmatprep.subr.bf16.mxu0 0
    %511 = vmatpush1.bf16.xpose.msra.mxu0 0
    %512 = vmatprep.subr.bf16.mxu0 0
    %513 = vmatpush1.bf16.xpose.msra.mxu0 0
    %514 = vmatprep.subr.bf16.mxu0 0
    %515 = vmatpush1.bf16.xpose.msra.mxu0 0
    %516 = vmatprep.subr.bf16.mxu0 0
    %517 = vmatpush1.bf16.xpose.msra.mxu0 0
    %518 = vmatprep.subr.bf16.mxu0 0
    %519 = vmatpush1.bf16.xpose.msra.mxu0 %v502
    %520 = vmatprep.subr.bf16.mxu0 0
    %521 = vmatpush2.bf16.xpose.msra.mxu0 0
    %522 = vmatprep.subr.bf16.mxu0 0
    %523 = vmatpush2.bf16.xpose.msra.mxu0 0
    %524 = vmatprep.subr.bf16.mxu0 0
    %525 = vmatpush2.bf16.xpose.msra.mxu0 0
    %526 = vmatprep.subr.bf16.mxu0 0
    %527 = vmatpush2.bf16.xpose.msra.mxu0 0
    %528 = vmatprep.subr.bf16.mxu0 0
    %529 = vmatpush2.bf16.xpose.msra.mxu0 0
    %530 = vmatprep.subr.bf16.mxu0 0
    %531 = vmatpush2.bf16.xpose.msra.mxu0 0
    %532 = vmatprep.subr.bf16.mxu0 0
    %533 = vmatpush2.bf16.xpose.msra.mxu0 0
    %534 = vmatprep.subr.bf16.mxu0 0
    %535 = vmatpush2.bf16.xpose.msra.mxu0 0
    %536 = vmatprep.mubr.bf16.mxu0 0
    %537 = vmatmul.mubr.bf16.gmra.mxu0 %v499
    %v538 = vpop.f32.mrf.mxu0
    %v539 = vadd.f32 %v220, %v538
    %v540 = vpop.f32.mrf.mxu0
    %v541 = vpop.f32.mrf.mxu0
    %v542 = vpop.f32.mrf.mxu0
    %543 = vdwg.mxu0
    %v544 = vsel %vm226, %v489, -inf
    %545 = vmax.xlane.f32.xlu0 %v544
    %v546 = vpop.xlane.xlu0 %545
    %v547 = vsel %vm226, %v539, -inf
    %548 = vmax.xlane.f32.xlu0 %v547
    %v549 = vpop.xlane.xlu0 %548
    %v550 = vsub.f32 %v489, %v546
    %v551 = vsub.f32 %v539, %v549
    %v552 = vmul.f32 %v550, 1.442695
    %v553 = vpow.pop %v552
    %v554 = vmul.f32 %v551, 1.442695
    %v555 = vpow.pop %v554
    %v556 = vsel %vm226, %v553, 0.0
    %557 = vadd.xlane.f32.xlu0 %v556
    %v558 = vpop.xlane.xlu0 %557
    %v559 = vsel %vm226, %v555, 0.0
    %560 = vadd.xlane.f32.xlu0 %v559
    %v561 = vpop.xlane.xlu0 %560
    %v562 = vrcp.pop %v558
    %v563 = vrcp.pop %v561
    %v564 = vmul.f32 %v553, %v562
    %v565 = vmul.f32 %v555, %v563
    %v566 = vpack.c.bf16 %v564, %v564
    %v567 = vpack.c.bf16 %v565, %v565
    %568 = vrot.lane.b32.xlu0 %v211, 56
    %v569 = vpop.permute.xlu0 %568
    %v571 = vsel %vm226, %v566, 0
    %v574 = vsel %vm351, %v569, 0
    %576 = vmatprep.subr.bf16.mxu0 0
    %577 = vmatpush1.bf16.msra.mxu0 0
    %578 = vmatprep.subr.bf16.mxu0 0
    %579 = vmatpush1.bf16.msra.mxu0 0
    %580 = vmatprep.subr.bf16.mxu0 0
    %581 = vmatpush1.bf16.msra.mxu0 0
    %582 = vmatprep.subr.bf16.mxu0 0
    %583 = vmatpush1.bf16.msra.mxu0 0
    %584 = vmatprep.subr.bf16.mxu0 0
    %585 = vmatpush1.bf16.msra.mxu0 0
    %586 = vmatprep.subr.bf16.mxu0 0
    %587 = vmatpush1.bf16.msra.mxu0 0
    %588 = vmatprep.subr.bf16.mxu0 0
    %589 = vmatpush1.bf16.msra.mxu0 0
    %590 = vmatprep.subr.bf16.mxu0 0
    %591 = vmatpush1.bf16.msra.mxu0 %v574
    %592 = vmatprep.subr.bf16.mxu0 0
    %593 = vmatpush2.bf16.msra.mxu0 0
    %594 = vmatprep.subr.bf16.mxu0 0
    %595 = vmatpush2.bf16.msra.mxu0 0
    %596 = vmatprep.subr.bf16.mxu0 0
    %597 = vmatpush2.bf16.msra.mxu0 0
    %598 = vmatprep.subr.bf16.mxu0 0
    %599 = vmatpush2.bf16.msra.mxu0 0
    %600 = vmatprep.subr.bf16.mxu0 0
    %601 = vmatpush2.bf16.msra.mxu0 0
    %602 = vmatprep.subr.bf16.mxu0 0
    %603 = vmatpush2.bf16.msra.mxu0 0
    %604 = vmatprep.subr.bf16.mxu0 0
    %605 = vmatpush2.bf16.msra.mxu0 0
    %606 = vmatprep.subr.bf16.mxu0 0
    %607 = vmatpush2.bf16.msra.mxu0 0
    %608 = vmatprep.mubr.bf16.mxu0 0
    %609 = vmatmul.mubr.bf16.gmra.mxu0 %v571
    %v610 = vpop.f32.mrf.mxu0
    %v611 = vadd.f32 0.0, %v610
    %v612 = vpop.f32.mrf.mxu0
    %v613 = vpop.f32.mrf.mxu0
    %v614 = vpop.f32.mrf.mxu0
    %615 = vdwg.mxu0
    %616 = vrot.lane.b32.xlu0 %v212, 56
    %v617 = vpop.permute.xlu0 %616
    %v619 = vsel %vm226, %v567, 0
    %v622 = vsel %vm351, %v617, 0
    %624 = vmatprep.subr.bf16.mxu0 0
    %625 = vmatpush1.bf16.msra.mxu0 0
    %626 = vmatprep.subr.bf16.mxu0 0
    %627 = vmatpush1.bf16.msra.mxu0 0
    %628 = vmatprep.subr.bf16.mxu0 0
    %629 = vmatpush1.bf16.msra.mxu0 0
    %630 = vmatprep.subr.bf16.mxu0 0
    %631 = vmatpush1.bf16.msra.mxu0 0
    %632 = vmatprep.subr.bf16.mxu0 0
    %633 = vmatpush1.bf16.msra.mxu0 0
    %634 = vmatprep.subr.bf16.mxu0 0
    %635 = vmatpush1.bf16.msra.mxu0 0
    %636 = vmatprep.subr.bf16.mxu0 0
    %637 = vmatpush1.bf16.msra.mxu0 0
    %638 = vmatprep.subr.bf16.mxu0 0
    %639 = vmatpush1.bf16.msra.mxu0 %v622
    %640 = vmatprep.subr.bf16.mxu0 0
    %641 = vmatpush2.bf16.msra.mxu0 0
    %642 = vmatprep.subr.bf16.mxu0 0
    %643 = vmatpush2.bf16.msra.mxu0 0
    %644 = vmatprep.subr.bf16.mxu0 0
    %645 = vmatpush2.bf16.msra.mxu0 0
    %646 = vmatprep.subr.bf16.mxu0 0
    %647 = vmatpush2.bf16.msra.mxu0 0
    %648 = vmatprep.subr.bf16.mxu0 0
    %649 = vmatpush2.bf16.msra.mxu0 0
    %650 = vmatprep.subr.bf16.mxu0 0
    %651 = vmatpush2.bf16.msra.mxu0 0
    %652 = vmatprep.subr.bf16.mxu0 0
    %653 = vmatpush2.bf16.msra.mxu0 0
    %654 = vmatprep.subr.bf16.mxu0 0
    %655 = vmatpush2.bf16.msra.mxu0 0
    %656 = vmatprep.mubr.bf16.mxu0 0
    %657 = vmatmul.mubr.bf16.gmra.mxu0 %v619
    %v658 = vpop.f32.mrf.mxu0
    %v659 = vadd.f32 0.0, %v658
    %v660 = vpop.f32.mrf.mxu0
    %v661 = vpop.f32.mrf.mxu0
    %v662 = vpop.f32.mrf.mxu0
    %663 = vdwg.mxu0
    %v664 = vpack.c.bf16 %v659, %v611
    %v666 = vsel %vm226, %v664, 0
    %v669 = vsel %vm351, %v208, 0
    %671 = vmatprep.subr.bf16.mxu0 0
    %672 = vmatpush1.bf16.msra.mxu0 0
    %673 = vmatprep.subr.bf16.mxu0 0
    %674 = vmatpush1.bf16.msra.mxu0 0
    %675 = vmatprep.subr.bf16.mxu0 0
    %676 = vmatpush1.bf16.msra.mxu0 0
    %677 = vmatprep.subr.bf16.mxu0 0
    %678 = vmatpush1.bf16.msra.mxu0 0
    %679 = vmatprep.subr.bf16.mxu0 0
    %680 = vmatpush1.bf16.msra.mxu0 0
    %681 = vmatprep.subr.bf16.mxu0 0
    %682 = vmatpush1.bf16.msra.mxu0 0
    %683 = vmatprep.subr.bf16.mxu0 0
    %684 = vmatpush1.bf16.msra.mxu0 0
    %685 = vmatprep.subr.bf16.mxu0 0
    %686 = vmatpush1.bf16.msra.mxu0 %v669
    %687 = vmatprep.subr.bf16.mxu0 0
    %688 = vmatpush2.bf16.msra.mxu0 0
    %689 = vmatprep.subr.bf16.mxu0 0
    %690 = vmatpush2.bf16.msra.mxu0 0
    %691 = vmatprep.subr.bf16.mxu0 0
    %692 = vmatpush2.bf16.msra.mxu0 0
    %693 = vmatprep.subr.bf16.mxu0 0
    %694 = vmatpush2.bf16.msra.mxu0 0
    %695 = vmatprep.subr.bf16.mxu0 0
    %696 = vmatpush2.bf16.msra.mxu0 0
    %697 = vmatprep.subr.bf16.mxu0 0
    %698 = vmatpush2.bf16.msra.mxu0 0
    %699 = vmatprep.subr.bf16.mxu0 0
    %700 = vmatpush2.bf16.msra.mxu0 0
    %701 = vmatprep.subr.bf16.mxu0 0
    %702 = vmatpush2.bf16.msra.mxu0 0
    %703 = vmatprep.mubr.bf16.mxu0 0
    %704 = vmatmul.mubr.bf16.gmra.mxu0 %v666
    %v705 = vpop.f32.mrf.mxu0
    %v706 = vadd.f32 0.0, %v705
    %v707 = vpop.f32.mrf.mxu0
    %v708 = vpop.f32.mrf.mxu0
    %v709 = vadd.f32 0.0, %v708
    %v710 = vpop.f32.mrf.mxu0
    %711 = vdwg.mxu0
    %v713 = vsel %vm226, %v443, 0
    %v716 = vsel %vm351, %v207, 0
    %718 = vmatprep.subr.bf16.mxu0 0
    %719 = vmatpush1.bf16.msra.mxu0 0
    %720 = vmatprep.subr.bf16.mxu0 0
    %721 = vmatpush1.bf16.msra.mxu0 0
    %722 = vmatprep.subr.bf16.mxu0 0
    %723 = vmatpush1.bf16.msra.mxu0 0
    %724 = vmatprep.subr.bf16.mxu0 0
    %725 = vmatpush1.bf16.msra.mxu0 0
    %726 = vmatprep.subr.bf16.mxu0 0
    %727 = vmatpush1.bf16.msra.mxu0 0
    %728 = vmatprep.subr.bf16.mxu0 0
    %729 = vmatpush1.bf16.msra.mxu0 0
    %730 = vmatprep.subr.bf16.mxu0 0
    %731 = vmatpush1.bf16.msra.mxu0 0
    %732 = vmatprep.subr.bf16.mxu0 0
    %733 = vmatpush1.bf16.msra.mxu0 %v716
    %734 = vmatprep.subr.bf16.mxu0 0
    %735 = vmatpush2.bf16.msra.mxu0 0
    %736 = vmatprep.subr.bf16.mxu0 0
    %737 = vmatpush2.bf16.msra.mxu0 0
    %738 = vmatprep.subr.bf16.mxu0 0
    %739 = vmatpush2.bf16.msra.mxu0 0
    %740 = vmatprep.subr.bf16.mxu0 0
    %741 = vmatpush2.bf16.msra.mxu0 0
    %742 = vmatprep.subr.bf16.mxu0 0
    %743 = vmatpush2.bf16.msra.mxu0 0
    %744 = vmatprep.subr.bf16.mxu0 0
    %745 = vmatpush2.bf16.msra.mxu0 0
    %746 = vmatprep.subr.bf16.mxu0 0
    %747 = vmatpush2.bf16.msra.mxu0 0
    %748 = vmatprep.subr.bf16.mxu0 0
    %749 = vmatpush2.bf16.msra.mxu0 0
    %750 = vmatprep.mubr.bf16.mxu0 0
    %751 = vmatmul.mubr.bf16.gmra.mxu0 %v713
    %v752 = vpop.f32.mrf.mxu0
    %v753 = vadd.f32 %v706, %v752
    %v754 = vpop.f32.mrf.mxu0
    %v755 = vpop.f32.mrf.mxu0
    %v756 = vadd.f32 %v709, %v755
    %v757 = vpop.f32.mrf.mxu0
    %758 = vdwg.mxu0
    %759 = vrot.lane.b32.xlu0 %v211, 112
    %v760 = vpop.permute.xlu0 %759
    %761 = vrot.lane.b32.xlu0 %v211, 80
    %v762 = vpop.permute.xlu0 %761
    %v764 = vsel %vm226, %v760, 0
    %v767 = vsel %vm226, %v762, 0
    %769 = vmatprep.subr.bf16.mxu0 0
    %770 = vmatpush1.bf16.xpose.msra.mxu0 0
    %771 = vmatprep.subr.bf16.mxu0 0
    %772 = vmatpush1.bf16.xpose.msra.mxu0 0
    %773 = vmatprep.subr.bf16.mxu0 0
    %774 = vmatpush1.bf16.xpose.msra.mxu0 0
    %775 = vmatprep.subr.bf16.mxu0 0
    %776 = vmatpush1.bf16.xpose.msra.mxu0 0
    %777 = vmatprep.subr.bf16.mxu0 0
    %778 = vmatpush1.bf16.xpose.msra.mxu0 0
    %779 = vmatprep.subr.bf16.mxu0 0
    %780 = vmatpush1.bf16.xpose.msra.mxu0 0
    %781 = vmatprep.subr.bf16.mxu0 0
    %782 = vmatpush1.bf16.xpose.msra.mxu0 0
    %783 = vmatprep.subr.bf16.mxu0 0
    %784 = vmatpush1.bf16.xpose.msra.mxu0 %v767
    %785 = vmatprep.subr.bf16.mxu0 0
    %786 = vmatpush2.bf16.xpose.msra.mxu0 0
    %787 = vmatprep.subr.bf16.mxu0 0
    %788 = vmatpush2.bf16.xpose.msra.mxu0 0
    %789 = vmatprep.subr.bf16.mxu0 0
    %790 = vmatpush2.bf16.xpose.msra.mxu0 0
    %791 = vmatprep.subr.bf16.mxu0 0
    %792 = vmatpush2.bf16.xpose.msra.mxu0 0
    %793 = vmatprep.subr.bf16.mxu0 0
    %794 = vmatpush2.bf16.xpose.msra.mxu0 0
    %795 = vmatprep.subr.bf16.mxu0 0
    %796 = vmatpush2.bf16.xpose.msra.mxu0 0
    %797 = vmatprep.subr.bf16.mxu0 0
    %798 = vmatpush2.bf16.xpose.msra.mxu0 0
    %799 = vmatprep.subr.bf16.mxu0 0
    %800 = vmatpush2.bf16.xpose.msra.mxu0 0
    %801 = vmatprep.mubr.bf16.mxu0 0
    %802 = vmatmul.mubr.bf16.gmra.mxu0 %v764
    %v803 = vpop.f32.mrf.mxu0
    %v804 = vadd.f32 %v216, %v803
    %v805 = vpop.f32.mrf.mxu0
    %v806 = vpop.f32.mrf.mxu0
    %v807 = vpop.f32.mrf.mxu0
    %808 = vdwg.mxu0
    %809 = vrot.lane.b32.xlu0 %v212, 112
    %v810 = vpop.permute.xlu0 %809
    %811 = vrot.lane.b32.xlu0 %v212, 80
    %v812 = vpop.permute.xlu0 %811
    %v814 = vsel %vm226, %v810, 0
    %v817 = vsel %vm226, %v812, 0
    %819 = vmatprep.subr.bf16.mxu0 0
    %820 = vmatpush1.bf16.xpose.msra.mxu0 0
    %821 = vmatprep.subr.bf16.mxu0 0
    %822 = vmatpush1.bf16.xpose.msra.mxu0 0
    %823 = vmatprep.subr.bf16.mxu0 0
    %824 = vmatpush1.bf16.xpose.msra.mxu0 0
    %825 = vmatprep.subr.bf16.mxu0 0
    %826 = vmatpush1.bf16.xpose.msra.mxu0 0
    %827 = vmatprep.subr.bf16.mxu0 0
    %828 = vmatpush1.bf16.xpose.msra.mxu0 0
    %829 = vmatprep.subr.bf16.mxu0 0
    %830 = vmatpush1.bf16.xpose.msra.mxu0 0
    %831 = vmatprep.subr.bf16.mxu0 0
    %832 = vmatpush1.bf16.xpose.msra.mxu0 0
    %833 = vmatprep.subr.bf16.mxu0 0
    %834 = vmatpush1.bf16.xpose.msra.mxu0 %v817
    %835 = vmatprep.subr.bf16.mxu0 0
    %836 = vmatpush2.bf16.xpose.msra.mxu0 0
    %837 = vmatprep.subr.bf16.mxu0 0
    %838 = vmatpush2.bf16.xpose.msra.mxu0 0
    %839 = vmatprep.subr.bf16.mxu0 0
    %840 = vmatpush2.bf16.xpose.msra.mxu0 0
    %841 = vmatprep.subr.bf16.mxu0 0
    %842 = vmatpush2.bf16.xpose.msra.mxu0 0
    %843 = vmatprep.subr.bf16.mxu0 0
    %844 = vmatpush2.bf16.xpose.msra.mxu0 0
    %845 = vmatprep.subr.bf16.mxu0 0
    %846 = vmatpush2.bf16.xpose.msra.mxu0 0
    %847 = vmatprep.subr.bf16.mxu0 0
    %848 = vmatpush2.bf16.xpose.msra.mxu0 0
    %849 = vmatprep.subr.bf16.mxu0 0
    %850 = vmatpush2.bf16.xpose.msra.mxu0 0
    %851 = vmatprep.mubr.bf16.mxu0 0
    %852 = vmatmul.mubr.bf16.gmra.mxu0 %v814
    %v853 = vpop.f32.mrf.mxu0
    %v854 = vadd.f32 %v220, %v853
    %v855 = vpop.f32.mrf.mxu0
    %v856 = vpop.f32.mrf.mxu0
    %v857 = vpop.f32.mrf.mxu0
    %858 = vdwg.mxu0
    %v859 = vsel %vm226, %v804, -inf
    %860 = vmax.xlane.f32.xlu0 %v859
    %v861 = vpop.xlane.xlu0 %860
    %v862 = vsel %vm226, %v854, -inf
    %863 = vmax.xlane.f32.xlu0 %v862
    %v864 = vpop.xlane.xlu0 %863
    %v865 = vsub.f32 %v804, %v861
    %v866 = vsub.f32 %v854, %v864
    %v867 = vmul.f32 %v865, 1.442695
    %v868 = vpow.pop %v867
    %v869 = vmul.f32 %v866, 1.442695
    %v870 = vpow.pop %v869
    %v871 = vsel %vm226, %v868, 0.0
    %872 = vadd.xlane.f32.xlu0 %v871
    %v873 = vpop.xlane.xlu0 %872
    %v874 = vsel %vm226, %v870, 0.0
    %875 = vadd.xlane.f32.xlu0 %v874
    %v876 = vpop.xlane.xlu0 %875
    %v877 = vrcp.pop %v873
    %v878 = vrcp.pop %v876
    %v879 = vmul.f32 %v868, %v877
    %v880 = vmul.f32 %v870, %v878
    %v881 = vpack.c.bf16 %v879, %v879
    %v882 = vpack.c.bf16 %v880, %v880
    %883 = vrot.lane.b32.xlu0 %v211, 48
    %v884 = vpop.permute.xlu0 %883
    %v886 = vsel %vm226, %v881, 0
    %v889 = vsel %vm351, %v884, 0
    %891 = vmatprep.subr.bf16.mxu0 0
    %892 = vmatpush1.bf16.msra.mxu0 0
    %893 = vmatprep.subr.bf16.mxu0 0
    %894 = vmatpush1.bf16.msra.mxu0 0
    %895 = vmatprep.subr.bf16.mxu0 0
    %896 = vmatpush1.bf16.msra.mxu0 0
    %897 = vmatprep.subr.bf16.mxu0 0
    %898 = vmatpush1.bf16.msra.mxu0 0
    %899 = vmatprep.subr.bf16.mxu0 0
    %900 = vmatpush1.bf16.msra.mxu0 0
    %901 = vmatprep.subr.bf16.mxu0 0
    %902 = vmatpush1.bf16.msra.mxu0 0
    %903 = vmatprep.subr.bf16.mxu0 0
    %904 = vmatpush1.bf16.msra.mxu0 0
    %905 = vmatprep.subr.bf16.mxu0 0
    %906 = vmatpush1.bf16.msra.mxu0 %v889
    %907 = vmatprep.subr.bf16.mxu0 0
    %908 = vmatpush2.bf16.msra.mxu0 0
    %909 = vmatprep.subr.bf16.mxu0 0
    %910 = vmatpush2.bf16.msra.mxu0 0
    %911 = vmatprep.subr.bf16.mxu0 0
    %912 = vmatpush2.bf16.msra.mxu0 0
    %913 = vmatprep.subr.bf16.mxu0 0
    %914 = vmatpush2.bf16.msra.mxu0 0
    %915 = vmatprep.subr.bf16.mxu0 0
    %916 = vmatpush2.bf16.msra.mxu0 0
    %917 = vmatprep.subr.bf16.mxu0 0
    %918 = vmatpush2.bf16.msra.mxu0 0
    %919 = vmatprep.subr.bf16.mxu0 0
    %920 = vmatpush2.bf16.msra.mxu0 0
    %921 = vmatprep.subr.bf16.mxu0 0
    %922 = vmatpush2.bf16.msra.mxu0 0
    %923 = vmatprep.mubr.bf16.mxu0 0
    %924 = vmatmul.mubr.bf16.gmra.mxu0 %v886
    %v925 = vpop.f32.mrf.mxu0
    %v926 = vadd.f32 0.0, %v925
    %v927 = vpop.f32.mrf.mxu0
    %v928 = vpop.f32.mrf.mxu0
    %v929 = vpop.f32.mrf.mxu0
    %930 = vdwg.mxu0
    %931 = vrot.lane.b32.xlu0 %v212, 48
    %v932 = vpop.permute.xlu0 %931
    %v934 = vsel %vm226, %v882, 0
    %v937 = vsel %vm351, %v932, 0
    %939 = vmatprep.subr.bf16.mxu0 0
    %940 = vmatpush1.bf16.msra.mxu0 0
    %941 = vmatprep.subr.bf16.mxu0 0
    %942 = vmatpush1.bf16.msra.mxu0 0
    %943 = vmatprep.subr.bf16.mxu0 0
    %944 = vmatpush1.bf16.msra.mxu0 0
    %945 = vmatprep.subr.bf16.mxu0 0
    %946 = vmatpush1.bf16.msra.mxu0 0
    %947 = vmatprep.subr.bf16.mxu0 0
    %948 = vmatpush1.bf16.msra.mxu0 0
    %949 = vmatprep.subr.bf16.mxu0 0
    %950 = vmatpush1.bf16.msra.mxu0 0
    %951 = vmatprep.subr.bf16.mxu0 0
    %952 = vmatpush1.bf16.msra.mxu0 0
    %953 = vmatprep.subr.bf16.mxu0 0
    %954 = vmatpush1.bf16.msra.mxu0 %v937
    %955 = vmatprep.subr.bf16.mxu0 0
    %956 = vmatpush2.bf16.msra.mxu0 0
    %957 = vmatprep.subr.bf16.mxu0 0
    %958 = vmatpush2.bf16.msra.mxu0 0
    %959 = vmatprep.subr.bf16.mxu0 0
    %960 = vmatpush2.bf16.msra.mxu0 0
    %961 = vmatprep.subr.bf16.mxu0 0
    %962 = vmatpush2.bf16.msra.mxu0 0
    %963 = vmatprep.subr.bf16.mxu0 0
    %964 = vmatpush2.bf16.msra.mxu0 0
    %965 = vmatprep.subr.bf16.mxu0 0
    %966 = vmatpush2.bf16.msra.mxu0 0
    %967 = vmatprep.subr.bf16.mxu0 0
    %968 = vmatpush2.bf16.msra.mxu0 0
    %969 = vmatprep.subr.bf16.mxu0 0
    %970 = vmatpush2.bf16.msra.mxu0 0
    %971 = vmatprep.mubr.bf16.mxu0 0
    %972 = vmatmul.mubr.bf16.gmra.mxu0 %v934
    %v973 = vpop.f32.mrf.mxu0
    %v974 = vadd.f32 0.0, %v973
    %v975 = vpop.f32.mrf.mxu0
    %v976 = vpop.f32.mrf.mxu0
    %v977 = vpop.f32.mrf.mxu0
    %978 = vdwg.mxu0
    %v979 = vpack.c.bf16 %v974, %v926
    %v981 = vsel %vm226, %v979, 0
    %v984 = vsel %vm351, %v209, 0
    %986 = vmatprep.subr.bf16.mxu0 0
    %987 = vmatpush1.bf16.msra.mxu0 0
    %988 = vmatprep.subr.bf16.mxu0 0
    %989 = vmatpush1.bf16.msra.mxu0 0
    %990 = vmatprep.subr.bf16.mxu0 0
    %991 = vmatpush1.bf16.msra.mxu0 0
    %992 = vmatprep.subr.bf16.mxu0 0
    %993 = vmatpush1.bf16.msra.mxu0 0
    %994 = vmatprep.subr.bf16.mxu0 0
    %995 = vmatpush1.bf16.msra.mxu0 0
    %996 = vmatprep.subr.bf16.mxu0 0
    %997 = vmatpush1.bf16.msra.mxu0 0
    %998 = vmatprep.subr.bf16.mxu0 0
    %999 = vmatpush1.bf16.msra.mxu0 0
    %1000 = vmatprep.subr.bf16.mxu0 0
    %1001 = vmatpush1.bf16.msra.mxu0 %v984
    %1002 = vmatprep.subr.bf16.mxu0 0
    %1003 = vmatpush2.bf16.msra.mxu0 0
    %1004 = vmatprep.subr.bf16.mxu0 0
    %1005 = vmatpush2.bf16.msra.mxu0 0
    %1006 = vmatprep.subr.bf16.mxu0 0
    %1007 = vmatpush2.bf16.msra.mxu0 0
    %1008 = vmatprep.subr.bf16.mxu0 0
    %1009 = vmatpush2.bf16.msra.mxu0 0
    %1010 = vmatprep.subr.bf16.mxu0 0
    %1011 = vmatpush2.bf16.msra.mxu0 0
    %1012 = vmatprep.subr.bf16.mxu0 0
    %1013 = vmatpush2.bf16.msra.mxu0 0
    %1014 = vmatprep.subr.bf16.mxu0 0
    %1015 = vmatpush2.bf16.msra.mxu0 0
    %1016 = vmatprep.subr.bf16.mxu0 0
    %1017 = vmatpush2.bf16.msra.mxu0 0
    %1018 = vmatprep.mubr.bf16.mxu0 0
    %1019 = vmatmul.mubr.bf16.gmra.mxu0 %v981
    %v1020 = vpop.f32.mrf.mxu0
    %v1021 = vadd.f32 0.0, %v1020
    %v1022 = vpop.f32.mrf.mxu0
    %v1023 = vpop.f32.mrf.mxu0
    %v1024 = vadd.f32 0.0, %v1023
    %v1025 = vpop.f32.mrf.mxu0
    %1026 = vdwg.mxu0
    %v1027 = vadd.f32 %v753, %v1021
    %v1028 = vadd.f32 %v756, %v1024
    %1029 = vrot.lane.b32.xlu0 %v211, 104
    %v1030 = vpop.permute.xlu0 %1029
    %1031 = vrot.lane.b32.xlu0 %v211, 72
    %v1032 = vpop.permute.xlu0 %1031
    %v1034 = vsel %vm226, %v1030, 0
    %v1037 = vsel %vm226, %v1032, 0
    %1039 = vmatprep.subr.bf16.mxu0 0
    %1040 = vmatpush1.bf16.xpose.msra.mxu0 0
    %1041 = vmatprep.subr.bf16.mxu0 0
    %1042 = vmatpush1.bf16.xpose.msra.mxu0 0
    %1043 = vmatprep.subr.bf16.mxu0 0
    %1044 = vmatpush1.bf16.xpose.msra.mxu0 0
    %1045 = vmatprep.subr.bf16.mxu0 0
    %1046 = vmatpush1.bf16.xpose.msra.mxu0 0
    %1047 = vmatprep.subr.bf16.mxu0 0
    %1048 = vmatpush1.bf16.xpose.msra.mxu0 0
    %1049 = vmatprep.subr.bf16.mxu0 0
    %1050 = vmatpush1.bf16.xpose.msra.mxu0 0
    %1051 = vmatprep.subr.bf16.mxu0 0
    %1052 = vmatpush1.bf16.xpose.msra.mxu0 0
    %1053 = vmatprep.subr.bf16.mxu0 0
    %1054 = vmatpush1.bf16.xpose.msra.mxu0 %v1037
    %1055 = vmatprep.subr.bf16.mxu0 0
    %1056 = vmatpush2.bf16.xpose.msra.mxu0 0
    %1057 = vmatprep.subr.bf16.mxu0 0
    %1058 = vmatpush2.bf16.xpose.msra.mxu0 0
    %1059 = vmatprep.subr.bf16.mxu0 0
    %1060 = vmatpush2.bf16.xpose.msra.mxu0 0
    %1061 = vmatprep.subr.bf16.mxu0 0
    %1062 = vmatpush2.bf16.xpose.msra.mxu0 0
    %1063 = vmatprep.subr.bf16.mxu0 0
    %1064 = vmatpush2.bf16.xpose.msra.mxu0 0
    %1065 = vmatprep.subr.bf16.mxu0 0
    %1066 = vmatpush2.bf16.xpose.msra.mxu0 0
    %1067 = vmatprep.subr.bf16.mxu0 0
    %1068 = vmatpush2.bf16.xpose.msra.mxu0 0
    %1069 = vmatprep.subr.bf16.mxu0 0
    %1070 = vmatpush2.bf16.xpose.msra.mxu0 0
    %1071 = vmatprep.mubr.bf16.mxu0 0
    %1072 = vmatmul.mubr.bf16.gmra.mxu0 %v1034
    %v1073 = vpop.f32.mrf.mxu0
    %v1074 = vadd.f32 %v216, %v1073
    %v1075 = vpop.f32.mrf.mxu0
    %v1076 = vpop.f32.mrf.mxu0
    %v1077 = vpop.f32.mrf.mxu0
    %1078 = vdwg.mxu0
    %1079 = vrot.lane.b32.xlu0 %v212, 104
    %v1080 = vpop.permute.xlu0 %1079
    %1081 = vrot.lane.b32.xlu0 %v212, 72
    %v1082 = vpop.permute.xlu0 %1081
    %v1084 = vsel %vm226, %v1080, 0
    %v1087 = vsel %vm226, %v1082, 0
    %1089 = vmatprep.subr.bf16.mxu0 0
    %1090 = vmatpush1.bf16.xpose.msra.mxu0 0
    %1091 = vmatprep.subr.bf16.mxu0 0
    %1092 = vmatpush1.bf16.xpose.msra.mxu0 0
    %1093 = vmatprep.subr.bf16.mxu0 0
    %1094 = vmatpush1.bf16.xpose.msra.mxu0 0
    %1095 = vmatprep.subr.bf16.mxu0 0
    %1096 = vmatpush1.bf16.xpose.msra.mxu0 0
    %1097 = vmatprep.subr.bf16.mxu0 0
    %1098 = vmatpush1.bf16.xpose.msra.mxu0 0
    %1099 = vmatprep.subr.bf16.mxu0 0
    %1100 = vmatpush1.bf16.xpose.msra.mxu0 0
    %1101 = vmatprep.subr.bf16.mxu0 0
    %1102 = vmatpush1.bf16.xpose.msra.mxu0 0
    %1103 = vmatprep.subr.bf16.mxu0 0
    %1104 = vmatpush1.bf16.xpose.msra.mxu0 %v1087
    %1105 = vmatprep.subr.bf16.mxu0 0
    %1106 = vmatpush2.bf16.xpose.msra.mxu0 0
    %1107 = vmatprep.subr.bf16.mxu0 0
    %1108 = vmatpush2.bf16.xpose.msra.mxu0 0
    %1109 = vmatprep.subr.bf16.mxu0 0
    %1110 = vmatpush2.bf16.xpose.msra.mxu0 0
    %1111 = vmatprep.subr.bf16.mxu0 0
    %1112 = vmatpush2.bf16.xpose.msra.mxu0 0
    %1113 = vmatprep.subr.bf16.mxu0 0
    %1114 = vmatpush2.bf16.xpose.msra.mxu0 0
    %1115 = vmatprep.subr.bf16.mxu0 0
    %1116 = vmatpush2.bf16.xpose.msra.mxu0 0
    %1117 = vmatprep.subr.bf16.mxu0 0
    %1118 = vmatpush2.bf16.xpose.msra.mxu0 0
    %1119 = vmatprep.subr.bf16.mxu0 0
    %1120 = vmatpush2.bf16.xpose.msra.mxu0 0
    %1121 = vmatprep.mubr.bf16.mxu0 0
    %1122 = vmatmul.mubr.bf16.gmra.mxu0 %v1084
    %v1123 = vpop.f32.mrf.mxu0
    %v1124 = vadd.f32 %v220, %v1123
    %v1125 = vpop.f32.mrf.mxu0
    %v1126 = vpop.f32.mrf.mxu0
    %v1127 = vpop.f32.mrf.mxu0
    %1128 = vdwg.mxu0
    %v1129 = vsel %vm226, %v1074, -inf
    %1130 = vmax.xlane.f32.xlu0 %v1129
    %v1131 = vpop.xlane.xlu0 %1130
    %v1132 = vsel %vm226, %v1124, -inf
    %1133 = vmax.xlane.f32.xlu0 %v1132
    %v1134 = vpop.xlane.xlu0 %1133
    %v1135 = vsub.f32 %v1074, %v1131
    %v1136 = vsub.f32 %v1124, %v1134
    %v1137 = vmul.f32 %v1135, 1.442695
    %v1138 = vpow.pop %v1137
    %v1139 = vmul.f32 %v1136, 1.442695
    %v1140 = vpow.pop %v1139
    %v1141 = vsel %vm226, %v1138, 0.0
    %1142 = vadd.xlane.f32.xlu0 %v1141
    %v1143 = vpop.xlane.xlu0 %1142
    %v1144 = vsel %vm226, %v1140, 0.0
    %1145 = vadd.xlane.f32.xlu0 %v1144
    %v1146 = vpop.xlane.xlu0 %1145
    %v1147 = vrcp.pop %v1143
    %v1148 = vrcp.pop %v1146
    %v1149 = vmul.f32 %v1138, %v1147
    %v1150 = vmul.f32 %v1140, %v1148
    %v1151 = vpack.c.bf16 %v1149, %v1149
    %v1152 = vpack.c.bf16 %v1150, %v1150
    %1153 = vrot.lane.b32.xlu0 %v211, 40
    %v1154 = vpop.permute.xlu0 %1153
    %v1156 = vsel %vm226, %v1151, 0
    %v1159 = vsel %vm351, %v1154, 0
    %1161 = vmatprep.subr.bf16.mxu0 0
    %1162 = vmatpush1.bf16.msra.mxu0 0
    %1163 = vmatprep.subr.bf16.mxu0 0
    %1164 = vmatpush1.bf16.msra.mxu0 0
    %1165 = vmatprep.subr.bf16.mxu0 0
    %1166 = vmatpush1.bf16.msra.mxu0 0
    %1167 = vmatprep.subr.bf16.mxu0 0
    %1168 = vmatpush1.bf16.msra.mxu0 0
    %1169 = vmatprep.subr.bf16.mxu0 0
    %1170 = vmatpush1.bf16.msra.mxu0 0
    %1171 = vmatprep.subr.bf16.mxu0 0
    %1172 = vmatpush1.bf16.msra.mxu0 0
    %1173 = vmatprep.subr.bf16.mxu0 0
    %1174 = vmatpush1.bf16.msra.mxu0 0
    %1175 = vmatprep.subr.bf16.mxu0 0
    %1176 = vmatpush1.bf16.msra.mxu0 %v1159
    %1177 = vmatprep.subr.bf16.mxu0 0
    %1178 = vmatpush2.bf16.msra.mxu0 0
    %1179 = vmatprep.subr.bf16.mxu0 0
    %1180 = vmatpush2.bf16.msra.mxu0 0
    %1181 = vmatprep.subr.bf16.mxu0 0
    %1182 = vmatpush2.bf16.msra.mxu0 0
    %1183 = vmatprep.subr.bf16.mxu0 0
    %1184 = vmatpush2.bf16.msra.mxu0 0
    %1185 = vmatprep.subr.bf16.mxu0 0
    %1186 = vmatpush2.bf16.msra.mxu0 0
    %1187 = vmatprep.subr.bf16.mxu0 0
    %1188 = vmatpush2.bf16.msra.mxu0 0
    %1189 = vmatprep.subr.bf16.mxu0 0
    %1190 = vmatpush2.bf16.msra.mxu0 0
    %1191 = vmatprep.subr.bf16.mxu0 0
    %1192 = vmatpush2.bf16.msra.mxu0 0
    %1193 = vmatprep.mubr.bf16.mxu0 0
    %1194 = vmatmul.mubr.bf16.gmra.mxu0 %v1156
    %v1195 = vpop.f32.mrf.mxu0
    %v1196 = vadd.f32 0.0, %v1195
    %v1197 = vpop.f32.mrf.mxu0
    %v1198 = vpop.f32.mrf.mxu0
    %v1199 = vpop.f32.mrf.mxu0
    %1200 = vdwg.mxu0
    %1201 = vrot.lane.b32.xlu0 %v212, 40
    %v1202 = vpop.permute.xlu0 %1201
    %v1204 = vsel %vm226, %v1152, 0
    %v1207 = vsel %vm351, %v1202, 0
    %1209 = vmatprep.subr.bf16.mxu0 0
    %1210 = vmatpush1.bf16.msra.mxu0 0
    %1211 = vmatprep.subr.bf16.mxu0 0
    %1212 = vmatpush1.bf16.msra.mxu0 0
    %1213 = vmatprep.subr.bf16.mxu0 0
    %1214 = vmatpush1.bf16.msra.mxu0 0
    %1215 = vmatprep.subr.bf16.mxu0 0
    %1216 = vmatpush1.bf16.msra.mxu0 0
    %1217 = vmatprep.subr.bf16.mxu0 0
    %1218 = vmatpush1.bf16.msra.mxu0 0
    %1219 = vmatprep.subr.bf16.mxu0 0
    %1220 = vmatpush1.bf16.msra.mxu0 0
    %1221 = vmatprep.subr.bf16.mxu0 0
    %1222 = vmatpush1.bf16.msra.mxu0 0
    %1223 = vmatprep.subr.bf16.mxu0 0
    %1224 = vmatpush1.bf16.msra.mxu0 %v1207
    %1225 = vmatprep.subr.bf16.mxu0 0
    %1226 = vmatpush2.bf16.msra.mxu0 0
    %1227 = vmatprep.subr.bf16.mxu0 0
    %1228 = vmatpush2.bf16.msra.mxu0 0
    %1229 = vmatprep.subr.bf16.mxu0 0
    %1230 = vmatpush2.bf16.msra.mxu0 0
    %1231 = vmatprep.subr.bf16.mxu0 0
    %1232 = vmatpush2.bf16.msra.mxu0 0
    %1233 = vmatprep.subr.bf16.mxu0 0
    %1234 = vmatpush2.bf16.msra.mxu0 0
    %1235 = vmatprep.subr.bf16.mxu0 0
    %1236 = vmatpush2.bf16.msra.mxu0 0
    %1237 = vmatprep.subr.bf16.mxu0 0
    %1238 = vmatpush2.bf16.msra.mxu0 0
    %1239 = vmatprep.subr.bf16.mxu0 0
    %1240 = vmatpush2.bf16.msra.mxu0 0
    %1241 = vmatprep.mubr.bf16.mxu0 0
    %1242 = vmatmul.mubr.bf16.gmra.mxu0 %v1204
    %v1243 = vpop.f32.mrf.mxu0
    %v1244 = vadd.f32 0.0, %v1243
    %v1245 = vpop.f32.mrf.mxu0
    %v1246 = vpop.f32.mrf.mxu0
    %v1247 = vpop.f32.mrf.mxu0
    %1248 = vdwg.mxu0
    %v1249 = vpack.c.bf16 %v1244, %v1196
    %v1251 = vsel %vm226, %v1249, 0
    %v1254 = vsel %vm351, %v210, 0
    %1256 = vmatprep.subr.bf16.mxu0 0
    %1257 = vmatpush1.bf16.msra.mxu0 0
    %1258 = vmatprep.subr.bf16.mxu0 0
    %1259 = vmatpush1.bf16.msra.mxu0 0
    %1260 = vmatprep.subr.bf16.mxu0 0
    %1261 = vmatpush1.bf16.msra.mxu0 0
    %1262 = vmatprep.subr.bf16.mxu0 0
    %1263 = vmatpush1.bf16.msra.mxu0 0
    %1264 = vmatprep.subr.bf16.mxu0 0
    %1265 = vmatpush1.bf16.msra.mxu0 0
    %1266 = vmatprep.subr.bf16.mxu0 0
    %1267 = vmatpush1.bf16.msra.mxu0 0
    %1268 = vmatprep.subr.bf16.mxu0 0
    %1269 = vmatpush1.bf16.msra.mxu0 0
    %1270 = vmatprep.subr.bf16.mxu0 0
    %1271 = vmatpush1.bf16.msra.mxu0 %v1254
    %1272 = vmatprep.subr.bf16.mxu0 0
    %1273 = vmatpush2.bf16.msra.mxu0 0
    %1274 = vmatprep.subr.bf16.mxu0 0
    %1275 = vmatpush2.bf16.msra.mxu0 0
    %1276 = vmatprep.subr.bf16.mxu0 0
    %1277 = vmatpush2.bf16.msra.mxu0 0
    %1278 = vmatprep.subr.bf16.mxu0 0
    %1279 = vmatpush2.bf16.msra.mxu0 0
    %1280 = vmatprep.subr.bf16.mxu0 0
    %1281 = vmatpush2.bf16.msra.mxu0 0
    %1282 = vmatprep.subr.bf16.mxu0 0
    %1283 = vmatpush2.bf16.msra.mxu0 0
    %1284 = vmatprep.subr.bf16.mxu0 0
    %1285 = vmatpush2.bf16.msra.mxu0 0
    %1286 = vmatprep.subr.bf16.mxu0 0
    %1287 = vmatpush2.bf16.msra.mxu0 0
    %1288 = vmatprep.mubr.bf16.mxu0 0
    %1289 = vmatmul.mubr.bf16.gmra.mxu0 %v1251
    %v1290 = vpop.f32.mrf.mxu0
    %v1291 = vadd.f32 0.0, %v1290
    %v1292 = vpop.f32.mrf.mxu0
    %v1293 = vpop.f32.mrf.mxu0
    %v1294 = vadd.f32 0.0, %v1293
    %v1295 = vpop.f32.mrf.mxu0
    %1296 = vdwg.mxu0
    %v1297 = vadd.f32 %v1027, %v1291
    %v1298 = vadd.f32 %v1028, %v1294
    %v1299 = vld [vmem:[%s7] sm:$0x1]
    %v1301 = vlaneseq
    %v1302 = vshrl.u32 %v1301, 7
    %v1303 = vsub.s32 0, %v1302
    %v1304 = vrot.slane %v1299, %v1303
    %v1306 = vadd.f32 %v1297, %v1304
    %v1307 = vadd.f32 %v1298, %v1304
    %v1308 = vadd.f32 %v1306, %v113
    %v1309 = vadd.f32 %v1307, %v114
    %v1310 = vld [vmem:[%s8] sm:$0x1]
    %v1311 = vld [vmem:[%s9] sm:$0x1]
    %v1312 = vsel %vm71, %v1308, 0.0
    %1313 = vadd.xlane.f32.xlu0 %v1312
    %v1314 = vpop.xlane.xlu0 %1313
    %v1315 = vsel %vm71, %v1309, 0.0
    %1316 = vadd.xlane.f32.xlu0 %v1315
    %v1317 = vpop.xlane.xlu0 %1316
    %v1318 = vmul.f32 %v1314, %v78
    %v1319 = vmul.f32 %v1317, %v78
    %v1320 = vsub.f32 %v1308, %v1318
    %v1321 = vsub.f32 %v1309, %v1319
    %v1322 = vmul.f32 %v1320, %v1320
    %v1323 = vmul.f32 %v1321, %v1321
    %v1324 = vsel %vm71, %v1322, 0.0
    %1325 = vadd.xlane.f32.xlu0 %v1324
    %v1326 = vpop.xlane.xlu0 %1325
    %v1327 = vsel %vm71, %v1323, 0.0
    %1328 = vadd.xlane.f32.xlu0 %v1327
    %v1329 = vpop.xlane.xlu0 %1328
    %v1330 = vmul.f32 %v1326, %v78
    %v1331 = vmul.f32 %v1329, %v78
    %v1332 = vadd.f32 %v1330, 1e-12
    %v1333 = vadd.f32 %v1331, 1e-12
    %v1334 = vrsqrt.pop %v1332
    %v1335 = vrsqrt.pop %v1333
    %v1336 = vmul.f32 %v1320, %v1334
    %v1337 = vmul.f32 %v1321, %v1335
    %v1339 = vlaneseq
    %v1340 = vshrl.u32 %v1339, 7
    %v1341 = vsub.s32 0, %v1340
    %v1342 = vrot.slane %v1310, %v1341
    %v1344 = vmul.f32 %v1336, %v1342
    %v1345 = vmul.f32 %v1337, %v1342
    %v1347 = vlaneseq
    %v1348 = vshrl.u32 %v1347, 7
    %v1349 = vsub.s32 0, %v1348
    %v1350 = vrot.slane %v1311, %v1349
    %v1352 = vadd.f32 %v1344, %v1350
    %v1353 = vadd.f32 %v1345, %v1350
    %v1354 = vld [vmem:[%s10] sm:$0xf]
    %v1355 = vld [vmem:[%s10 + $0x4] sm:$0xf]
    %v1356 = vld [vmem:[%s10 + $0x8] sm:$0xf]
    %v1357 = vld [vmem:[%s10 + $0xc] sm:$0xf]
    %v1358 = vpack.c.bf16 %v1353, %v1352
    %v1359 = vld [vmem:[%s11] sm:$0x1]
    %v1361 = vlaneseq
    %v1362 = vshrl.u32 %v1361, 7
    %v1363 = vsub.s32 0, %v1362
    %v1364 = vrot.slane %v1359, %v1363
    %v1370 = vunpack.c.l.b16 %v1354
    %v1371 = vunpack.c.l.b16 %v1355
    %v1372 = vunpack.c.l.b16 %v1356
    %v1373 = vunpack.c.l.b16 %v1357
    %v1374 = vpack.c.b16 %v1371, %v1370
    %v1375 = vpack.c.b16 %v1373, %v1372
    %v1379 = vsel %vm71, %v1358, 0
    %1381 = vmatprep.subr.bf16.mxu0 0
    %1382 = vmatpush1.bf16.msra.mxu0 0
    %1383 = vmatprep.subr.bf16.mxu0 0
    %1384 = vmatpush1.bf16.msra.mxu0 0
    %1385 = vmatprep.subr.bf16.mxu0 0
    %1386 = vmatpush1.bf16.msra.mxu0 0
    %1387 = vmatprep.subr.bf16.mxu0 0
    %1388 = vmatpush1.bf16.msra.mxu0 0
    %1389 = vmatprep.subr.bf16.mxu0 0
    %1390 = vmatpush1.bf16.msra.mxu0 0
    %1391 = vmatprep.subr.bf16.mxu0 0
    %1392 = vmatpush1.bf16.msra.mxu0 0
    %1393 = vmatprep.subr.bf16.mxu0 0
    %1394 = vmatpush1.bf16.msra.mxu0 %v1375
    %1395 = vmatprep.subr.bf16.mxu0 0
    %1396 = vmatpush1.bf16.msra.mxu0 %v1374
    %1397 = vmatprep.subr.bf16.mxu0 0
    %1398 = vmatpush2.bf16.msra.mxu0 0
    %1399 = vmatprep.subr.bf16.mxu0 0
    %1400 = vmatpush2.bf16.msra.mxu0 0
    %1401 = vmatprep.subr.bf16.mxu0 0
    %1402 = vmatpush2.bf16.msra.mxu0 0
    %1403 = vmatprep.subr.bf16.mxu0 0
    %1404 = vmatpush2.bf16.msra.mxu0 0
    %1405 = vmatprep.subr.bf16.mxu0 0
    %1406 = vmatpush2.bf16.msra.mxu0 0
    %1407 = vmatprep.subr.bf16.mxu0 0
    %1408 = vmatpush2.bf16.msra.mxu0 0
    %1409 = vmatprep.subr.bf16.mxu0 0
    %1410 = vmatpush2.bf16.msra.mxu0 0
    %1411 = vmatprep.subr.bf16.mxu0 0
    %1412 = vmatpush2.bf16.msra.mxu0 0
    %1413 = vmatprep.mubr.bf16.mxu0 0
    %1414 = vmatmul.mubr.bf16.gmra.mxu0 %v1379
    %v1415 = vpop.f32.mrf.mxu0
    %v1416 = vadd.f32 %v1364, %v1415
    %v1417 = vpop.f32.mrf.mxu0
    %v1418 = vpop.f32.mrf.mxu0
    %v1419 = vadd.f32 %v1364, %v1418
    %v1420 = vpop.f32.mrf.mxu0
    %1421 = vdwg.mxu0
    %v1422 = vmul.f32 %v1416, 0.5
    %v1423 = vmul.f32 %v1419, 0.5
    %v1424 = vmul.f32 %v1416, 0.70710677
    %v1425 = vmul.f32 %v1419, 0.70710677
    %v1426 = verf.f32.pop %v1424
    %v1427 = verf.f32.pop %v1425
    %v1428 = vadd.f32 %v1426, 1.0
    %v1429 = vadd.f32 %v1427, 1.0
    %v1430 = vmul.f32 %v1422, %v1428
    %v1431 = vmul.f32 %v1423, %v1429
    %v1432 = vld [vmem:[%s12] sm:$0xf]
    %v1433 = vld [vmem:[%s12 + $0x4] sm:$0xf]
    %v1434 = vld [vmem:[%s12 + $0x8] sm:$0xf]
    %v1435 = vld [vmem:[%s12 + $0xc] sm:$0xf]
    %v1436 = vld [vmem:[%s12 + $0x10] sm:$0xf]
    %v1437 = vld [vmem:[%s12 + $0x14] sm:$0xf]
    %v1438 = vld [vmem:[%s12 + $0x18] sm:$0xf]
    %v1439 = vld [vmem:[%s12 + $0x1c] sm:$0xf]
    %v1440 = vpack.c.bf16 %v1431, %v1430
    %v1441 = vld [vmem:[%s13] sm:$0x1]
    %v1443 = vlaneseq
    %v1444 = vshrl.u32 %v1443, 7
    %v1445 = vsub.s32 0, %v1444
    %v1446 = vrot.slane %v1441, %v1445
    %v1456 = vunpack.c.l.b16 %v1432
    %v1457 = vunpack.c.l.b16 %v1433
    %v1458 = vunpack.c.l.b16 %v1434
    %v1459 = vunpack.c.l.b16 %v1435
    %v1460 = vunpack.c.l.b16 %v1436
    %v1461 = vunpack.c.l.b16 %v1437
    %v1462 = vunpack.c.l.b16 %v1438
    %v1463 = vunpack.c.l.b16 %v1439
    %v1464 = vpack.c.b16 %v1457, %v1456
    %v1465 = vpack.c.b16 %v1459, %v1458
    %v1466 = vpack.c.b16 %v1461, %v1460
    %v1467 = vpack.c.b16 %v1463, %v1462
    %vm1472 = vcmask 523264
    %v1474 = vsel %vm1472, %v1440, 0
    %1476 = vmatprep.subr.bf16.mxu0 0
    %1477 = vmatpush1.bf16.msra.mxu0 0
    %1478 = vmatprep.subr.bf16.mxu0 0
    %1479 = vmatpush1.bf16.msra.mxu0 0
    %1480 = vmatprep.subr.bf16.mxu0 0
    %1481 = vmatpush1.bf16.msra.mxu0 0
    %1482 = vmatprep.subr.bf16.mxu0 0
    %1483 = vmatpush1.bf16.msra.mxu0 0
    %1484 = vmatprep.subr.bf16.mxu0 0
    %1485 = vmatpush1.bf16.msra.mxu0 %v1467
    %1486 = vmatprep.subr.bf16.mxu0 0
    %1487 = vmatpush1.bf16.msra.mxu0 %v1466
    %1488 = vmatprep.subr.bf16.mxu0 0
    %1489 = vmatpush1.bf16.msra.mxu0 %v1465
    %1490 = vmatprep.subr.bf16.mxu0 0
    %1491 = vmatpush1.bf16.msra.mxu0 %v1464
    %1492 = vmatprep.subr.bf16.mxu0 0
    %1493 = vmatpush2.bf16.msra.mxu0 0
    %1494 = vmatprep.subr.bf16.mxu0 0
    %1495 = vmatpush2.bf16.msra.mxu0 0
    %1496 = vmatprep.subr.bf16.mxu0 0
    %1497 = vmatpush2.bf16.msra.mxu0 0
    %1498 = vmatprep.subr.bf16.mxu0 0
    %1499 = vmatpush2.bf16.msra.mxu0 0
    %1500 = vmatprep.subr.bf16.mxu0 0
    %1501 = vmatpush2.bf16.msra.mxu0 0
    %1502 = vmatprep.subr.bf16.mxu0 0
    %1503 = vmatpush2.bf16.msra.mxu0 0
    %1504 = vmatprep.subr.bf16.mxu0 0
    %1505 = vmatpush2.bf16.msra.mxu0 0
    %1506 = vmatprep.subr.bf16.mxu0 0
    %1507 = vmatpush2.bf16.msra.mxu0 0
    %1508 = vmatprep.mubr.bf16.mxu0 0
    %1509 = vmatmul.mubr.bf16.gmra.mxu0 %v1474
    %v1510 = vpop.f32.mrf.mxu0
    %v1511 = vadd.f32 %v1446, %v1510
    %v1512 = vpop.f32.mrf.mxu0
    %v1513 = vpop.f32.mrf.mxu0
    %v1514 = vadd.f32 %v1446, %v1513
    %v1515 = vpop.f32.mrf.mxu0
    %1516 = vdwg.mxu0
    %v1517 = vadd.f32 %v1511, %v1352
    %v1518 = vadd.f32 %v1514, %v1353
    %v1519 = vld [vmem:[%s14] sm:$0x1]
    %v1520 = vld [vmem:[%s15] sm:$0x1]
    %v1521 = vsel %vm71, %v1517, 0.0
    %1522 = vadd.xlane.f32.xlu0 %v1521
    %v1523 = vpop.xlane.xlu0 %1522
    %v1524 = vsel %vm71, %v1518, 0.0
    %1525 = vadd.xlane.f32.xlu0 %v1524
    %v1526 = vpop.xlane.xlu0 %1525
    %v1527 = vmul.f32 %v1523, %v78
    %v1528 = vmul.f32 %v1526, %v78
    %v1529 = vsub.f32 %v1517, %v1527
    %v1530 = vsub.f32 %v1518, %v1528
    %v1531 = vmul.f32 %v1529, %v1529
    %v1532 = vmul.f32 %v1530, %v1530
    %v1533 = vsel %vm71, %v1531, 0.0
    %1534 = vadd.xlane.f32.xlu0 %v1533
    %v1535 = vpop.xlane.xlu0 %1534
    %v1536 = vsel %vm71, %v1532, 0.0
    %1537 = vadd.xlane.f32.xlu0 %v1536
    %v1538 = vpop.xlane.xlu0 %1537
    %v1539 = vmul.f32 %v1535, %v78
    %v1540 = vmul.f32 %v1538, %v78
    %v1541 = vadd.f32 %v1539, 1e-12
    %v1542 = vadd.f32 %v1540, 1e-12
    %v1543 = vrsqrt.pop %v1541
    %v1544 = vrsqrt.pop %v1542
    %v1545 = vmul.f32 %v1529, %v1543
    %v1546 = vmul.f32 %v1530, %v1544
    %v1548 = vlaneseq
    %v1549 = vshrl.u32 %v1548, 7
    %v1550 = vsub.s32 0, %v1549
    %v1551 = vrot.slane %v1519, %v1550
    %v1553 = vmul.f32 %v1545, %v1551
    %v1554 = vmul.f32 %v1546, %v1551
    %v1556 = vlaneseq
    %v1557 = vshrl.u32 %v1556, 7
    %v1558 = vsub.s32 0, %v1557
    %v1559 = vrot.slane %v1520, %v1558
    %v1561 = vadd.f32 %v1553, %v1559
    %v1562 = vadd.f32 %v1554, %v1559
    %s1563 = scalar_lea.vmem %s4, 16
    %v1564 = vld [vmem:[%s1563] sm:$0xf]
    %v1565 = vld [vmem:[%s1563 + $0x4] sm:$0xf]
    %v1566 = vld [vmem:[%s1563 + $0x8] sm:$0xf]
    %v1567 = vld [vmem:[%s1563 + $0xc] sm:$0xf]
    %v1568 = vpack.c.bf16 %v1562, %v1561
    %s1569 = scalar_lea.vmem %s5, 1
    %v1570 = vld [vmem:[%s1569] sm:$0x1]
    %v1572 = vlaneseq
    %v1573 = vshrl.u32 %v1572, 7
    %v1574 = vsub.s32 0, %v1573
    %v1575 = vrot.slane %v1570, %v1574
    %v1581 = vunpack.c.l.b16 %v1564
    %v1582 = vunpack.c.l.b16 %v1565
    %v1583 = vunpack.c.l.b16 %v1566
    %v1584 = vunpack.c.l.b16 %v1567
    %v1585 = vpack.c.b16 %v1582, %v1581
    %v1586 = vpack.c.b16 %v1584, %v1583
    %v1590 = vsel %vm71, %v1568, 0
    %1592 = vmatprep.subr.bf16.mxu0 0
    %1593 = vmatpush1.bf16.msra.mxu0 0
    %1594 = vmatprep.subr.bf16.mxu0 0
    %1595 = vmatpush1.bf16.msra.mxu0 0
    %1596 = vmatprep.subr.bf16.mxu0 0
    %1597 = vmatpush1.bf16.msra.mxu0 0
    %1598 = vmatprep.subr.bf16.mxu0 0
    %1599 = vmatpush1.bf16.msra.mxu0 0
    %1600 = vmatprep.subr.bf16.mxu0 0
    %1601 = vmatpush1.bf16.msra.mxu0 0
    %1602 = vmatprep.subr.bf16.mxu0 0
    %1603 = vmatpush1.bf16.msra.mxu0 0
    %1604 = vmatprep.subr.bf16.mxu0 0
    %1605 = vmatpush1.bf16.msra.mxu0 %v1586
    %1606 = vmatprep.subr.bf16.mxu0 0
    %1607 = vmatpush1.bf16.msra.mxu0 %v1585
    %1608 = vmatprep.subr.bf16.mxu0 0
    %1609 = vmatpush2.bf16.msra.mxu0 0
    %1610 = vmatprep.subr.bf16.mxu0 0
    %1611 = vmatpush2.bf16.msra.mxu0 0
    %1612 = vmatprep.subr.bf16.mxu0 0
    %1613 = vmatpush2.bf16.msra.mxu0 0
    %1614 = vmatprep.subr.bf16.mxu0 0
    %1615 = vmatpush2.bf16.msra.mxu0 0
    %1616 = vmatprep.subr.bf16.mxu0 0
    %1617 = vmatpush2.bf16.msra.mxu0 0
    %1618 = vmatprep.subr.bf16.mxu0 0
    %1619 = vmatpush2.bf16.msra.mxu0 0
    %1620 = vmatprep.subr.bf16.mxu0 0
    %1621 = vmatpush2.bf16.msra.mxu0 0
    %1622 = vmatprep.subr.bf16.mxu0 0
    %1623 = vmatpush2.bf16.msra.mxu0 0
    %1624 = vmatprep.mubr.bf16.mxu0 0
    %1625 = vmatmul.mubr.bf16.gmra.mxu0 %v1590
    %v1626 = vpop.f32.mrf.mxu0
    %v1627 = vadd.f32 %v1575, %v1626
    %v1628 = vpop.f32.mrf.mxu0
    %v1629 = vpop.f32.mrf.mxu0
    %v1630 = vadd.f32 %v1575, %v1629
    %v1631 = vpop.f32.mrf.mxu0
    %1632 = vdwg.mxu0
    %s1633 = scalar_lea.vmem %s6, 16
    %v1634 = vld [vmem:[%s1633] sm:$0xf]
    %v1635 = vld [vmem:[%s1633 + $0x4] sm:$0xf]
    %v1636 = vld [vmem:[%s1633 + $0x8] sm:$0xf]
    %v1637 = vld [vmem:[%s1633 + $0xc] sm:$0xf]
    %v1638 = vpack.c.bf16 %v1627, %v1627
    %v1639 = vpack.c.bf16 %v1630, %v1630
    %1641 = vrot.lane.b32.xlu0 %v1638, 96
    %v1642 = vpop.permute.xlu0 %1641
    %v1644 = vsel %vm226, %v1638, 0
    %v1647 = vsel %vm226, %v1642, 0
    %1649 = vmatprep.subr.bf16.mxu0 0
    %1650 = vmatpush1.bf16.xpose.msra.mxu0 0
    %1651 = vmatprep.subr.bf16.mxu0 0
    %1652 = vmatpush1.bf16.xpose.msra.mxu0 0
    %1653 = vmatprep.subr.bf16.mxu0 0
    %1654 = vmatpush1.bf16.xpose.msra.mxu0 0
    %1655 = vmatprep.subr.bf16.mxu0 0
    %1656 = vmatpush1.bf16.xpose.msra.mxu0 0
    %1657 = vmatprep.subr.bf16.mxu0 0
    %1658 = vmatpush1.bf16.xpose.msra.mxu0 0
    %1659 = vmatprep.subr.bf16.mxu0 0
    %1660 = vmatpush1.bf16.xpose.msra.mxu0 0
    %1661 = vmatprep.subr.bf16.mxu0 0
    %1662 = vmatpush1.bf16.xpose.msra.mxu0 0
    %1663 = vmatprep.subr.bf16.mxu0 0
    %1664 = vmatpush1.bf16.xpose.msra.mxu0 %v1647
    %1665 = vmatprep.subr.bf16.mxu0 0
    %1666 = vmatpush2.bf16.xpose.msra.mxu0 0
    %1667 = vmatprep.subr.bf16.mxu0 0
    %1668 = vmatpush2.bf16.xpose.msra.mxu0 0
    %1669 = vmatprep.subr.bf16.mxu0 0
    %1670 = vmatpush2.bf16.xpose.msra.mxu0 0
    %1671 = vmatprep.subr.bf16.mxu0 0
    %1672 = vmatpush2.bf16.xpose.msra.mxu0 0
    %1673 = vmatprep.subr.bf16.mxu0 0
    %1674 = vmatpush2.bf16.xpose.msra.mxu0 0
    %1675 = vmatprep.subr.bf16.mxu0 0
    %1676 = vmatpush2.bf16.xpose.msra.mxu0 0
    %1677 = vmatprep.subr.bf16.mxu0 0
    %1678 = vmatpush2.bf16.xpose.msra.mxu0 0
    %1679 = vmatprep.subr.bf16.mxu0 0
    %1680 = vmatpush2.bf16.xpose.msra.mxu0 0
    %1681 = vmatprep.mubr.bf16.mxu0 0
    %1682 = vmatmul.mubr.bf16.gmra.mxu0 %v1644
    %v1683 = vpop.f32.mrf.mxu0
    %v1684 = vadd.f32 %v216, %v1683
    %v1685 = vpop.f32.mrf.mxu0
    %v1686 = vpop.f32.mrf.mxu0
    %v1687 = vpop.f32.mrf.mxu0
    %1688 = vdwg.mxu0
    %1690 = vrot.lane.b32.xlu0 %v1639, 96
    %v1691 = vpop.permute.xlu0 %1690
    %v1693 = vsel %vm226, %v1639, 0
    %v1696 = vsel %vm226, %v1691, 0
    %1698 = vmatprep.subr.bf16.mxu0 0
    %1699 = vmatpush1.bf16.xpose.msra.mxu0 0
    %1700 = vmatprep.subr.bf16.mxu0 0
    %1701 = vmatpush1.bf16.xpose.msra.mxu0 0
    %1702 = vmatprep.subr.bf16.mxu0 0
    %1703 = vmatpush1.bf16.xpose.msra.mxu0 0
    %1704 = vmatprep.subr.bf16.mxu0 0
    %1705 = vmatpush1.bf16.xpose.msra.mxu0 0
    %1706 = vmatprep.subr.bf16.mxu0 0
    %1707 = vmatpush1.bf16.xpose.msra.mxu0 0
    %1708 = vmatprep.subr.bf16.mxu0 0
    %1709 = vmatpush1.bf16.xpose.msra.mxu0 0
    %1710 = vmatprep.subr.bf16.mxu0 0
    %1711 = vmatpush1.bf16.xpose.msra.mxu0 0
    %1712 = vmatprep.subr.bf16.mxu0 0
    %1713 = vmatpush1.bf16.xpose.msra.mxu0 %v1696
    %1714 = vmatprep.subr.bf16.mxu0 0
    %1715 = vmatpush2.bf16.xpose.msra.mxu0 0
    %1716 = vmatprep.subr.bf16.mxu0 0
    %1717 = vmatpush2.bf16.xpose.msra.mxu0 0
    %1718 = vmatprep.subr.bf16.mxu0 0
    %1719 = vmatpush2.bf16.xpose.msra.mxu0 0
    %1720 = vmatprep.subr.bf16.mxu0 0
    %1721 = vmatpush2.bf16.xpose.msra.mxu0 0
    %1722 = vmatprep.subr.bf16.mxu0 0
    %1723 = vmatpush2.bf16.xpose.msra.mxu0 0
    %1724 = vmatprep.subr.bf16.mxu0 0
    %1725 = vmatpush2.bf16.xpose.msra.mxu0 0
    %1726 = vmatprep.subr.bf16.mxu0 0
    %1727 = vmatpush2.bf16.xpose.msra.mxu0 0
    %1728 = vmatprep.subr.bf16.mxu0 0
    %1729 = vmatpush2.bf16.xpose.msra.mxu0 0
    %1730 = vmatprep.mubr.bf16.mxu0 0
    %1731 = vmatmul.mubr.bf16.gmra.mxu0 %v1693
    %v1732 = vpop.f32.mrf.mxu0
    %v1733 = vadd.f32 %v220, %v1732
    %v1734 = vpop.f32.mrf.mxu0
    %v1735 = vpop.f32.mrf.mxu0
    %v1736 = vpop.f32.mrf.mxu0
    %1737 = vdwg.mxu0
    %v1738 = vsel %vm226, %v1684, -inf
    %1739 = vmax.xlane.f32.xlu0 %v1738
    %v1740 = vpop.xlane.xlu0 %1739
    %v1741 = vsel %vm226, %v1733, -inf
    %1742 = vmax.xlane.f32.xlu0 %v1741
    %v1743 = vpop.xlane.xlu0 %1742
    %v1744 = vsub.f32 %v1684, %v1740
    %v1745 = vsub.f32 %v1733, %v1743
    %v1746 = vmul.f32 %v1744, 1.442695
    %v1747 = vpow.pop %v1746
    %v1748 = vmul.f32 %v1745, 1.442695
    %v1749 = vpow.pop %v1748
    %v1750 = vsel %vm226, %v1747, 0.0
    %1751 = vadd.xlane.f32.xlu0 %v1750
    %v1752 = vpop.xlane.xlu0 %1751
    %v1753 = vsel %vm226, %v1749, 0.0
    %1754 = vadd.xlane.f32.xlu0 %v1753
    %v1755 = vpop.xlane.xlu0 %1754
    %v1756 = vrcp.pop %v1752
    %v1757 = vrcp.pop %v1755
    %v1758 = vmul.f32 %v1747, %v1756
    %v1759 = vmul.f32 %v1749, %v1757
    %v1760 = vpack.c.bf16 %v1758, %v1758
    %v1761 = vpack.c.bf16 %v1759, %v1759
    %1762 = vrot.lane.b32.xlu0 %v1638, 64
    %v1763 = vpop.permute.xlu0 %1762
    %v1765 = vsel %vm226, %v1760, 0
    %v1768 = vsel %vm351, %v1763, 0
    %1770 = vmatprep.subr.bf16.mxu0 0
    %1771 = vmatpush1.bf16.msra.mxu0 0
    %1772 = vmatprep.subr.bf16.mxu0 0
    %1773 = vmatpush1.bf16.msra.mxu0 0
    %1774 = vmatprep.subr.bf16.mxu0 0
    %1775 = vmatpush1.bf16.msra.mxu0 0
    %1776 = vmatprep.subr.bf16.mxu0 0
    %1777 = vmatpush1.bf16.msra.mxu0 0
    %1778 = vmatprep.subr.bf16.mxu0 0
    %1779 = vmatpush1.bf16.msra.mxu0 0
    %1780 = vmatprep.subr.bf16.mxu0 0
    %1781 = vmatpush1.bf16.msra.mxu0 0
    %1782 = vmatprep.subr.bf16.mxu0 0
    %1783 = vmatpush1.bf16.msra.mxu0 0
    %1784 = vmatprep.subr.bf16.mxu0 0
    %1785 = vmatpush1.bf16.msra.mxu0 %v1768
    %1786 = vmatprep.subr.bf16.mxu0 0
    %1787 = vmatpush2.bf16.msra.mxu0 0
    %1788 = vmatprep.subr.bf16.mxu0 0
    %1789 = vmatpush2.bf16.msra.mxu0 0
    %1790 = vmatprep.subr.bf16.mxu0 0
    %1791 = vmatpush2.bf16.msra.mxu0 0
    %1792 = vmatprep.subr.bf16.mxu0 0
    %1793 = vmatpush2.bf16.msra.mxu0 0
    %1794 = vmatprep.subr.bf16.mxu0 0
    %1795 = vmatpush2.bf16.msra.mxu0 0
    %1796 = vmatprep.subr.bf16.mxu0 0
    %1797 = vmatpush2.bf16.msra.mxu0 0
    %1798 = vmatprep.subr.bf16.mxu0 0
    %1799 = vmatpush2.bf16.msra.mxu0 0
    %1800 = vmatprep.subr.bf16.mxu0 0
    %1801 = vmatpush2.bf16.msra.mxu0 0
    %1802 = vmatprep.mubr.bf16.mxu0 0
    %1803 = vmatmul.mubr.bf16.gmra.mxu0 %v1765
    %v1804 = vpop.f32.mrf.mxu0
    %v1805 = vadd.f32 0.0, %v1804
    %v1806 = vpop.f32.mrf.mxu0
    %v1807 = vpop.f32.mrf.mxu0
    %v1808 = vpop.f32.mrf.mxu0
    %1809 = vdwg.mxu0
    %1810 = vrot.lane.b32.xlu0 %v1639, 64
    %v1811 = vpop.permute.xlu0 %1810
    %v1813 = vsel %vm226, %v1761, 0
    %v1816 = vsel %vm351, %v1811, 0
    %1818 = vmatprep.subr.bf16.mxu0 0
    %1819 = vmatpush1.bf16.msra.mxu0 0
    %1820 = vmatprep.subr.bf16.mxu0 0
    %1821 = vmatpush1.bf16.msra.mxu0 0
    %1822 = vmatprep.subr.bf16.mxu0 0
    %1823 = vmatpush1.bf16.msra.mxu0 0
    %1824 = vmatprep.subr.bf16.mxu0 0
    %1825 = vmatpush1.bf16.msra.mxu0 0
    %1826 = vmatprep.subr.bf16.mxu0 0
    %1827 = vmatpush1.bf16.msra.mxu0 0
    %1828 = vmatprep.subr.bf16.mxu0 0
    %1829 = vmatpush1.bf16.msra.mxu0 0
    %1830 = vmatprep.subr.bf16.mxu0 0
    %1831 = vmatpush1.bf16.msra.mxu0 0
    %1832 = vmatprep.subr.bf16.mxu0 0
    %1833 = vmatpush1.bf16.msra.mxu0 %v1816
    %1834 = vmatprep.subr.bf16.mxu0 0
    %1835 = vmatpush2.bf16.msra.mxu0 0
    %1836 = vmatprep.subr.bf16.mxu0 0
    %1837 = vmatpush2.bf16.msra.mxu0 0
    %1838 = vmatprep.subr.bf16.mxu0 0
    %1839 = vmatpush2.bf16.msra.mxu0 0
    %1840 = vmatprep.subr.bf16.mxu0 0
    %1841 = vmatpush2.bf16.msra.mxu0 0
    %1842 = vmatprep.subr.bf16.mxu0 0
    %1843 = vmatpush2.bf16.msra.mxu0 0
    %1844 = vmatprep.subr.bf16.mxu0 0
    %1845 = vmatpush2.bf16.msra.mxu0 0
    %1846 = vmatprep.subr.bf16.mxu0 0
    %1847 = vmatpush2.bf16.msra.mxu0 0
    %1848 = vmatprep.subr.bf16.mxu0 0
    %1849 = vmatpush2.bf16.msra.mxu0 0
    %1850 = vmatprep.mubr.bf16.mxu0 0
    %1851 = vmatmul.mubr.bf16.gmra.mxu0 %v1813
    %v1852 = vpop.f32.mrf.mxu0
    %v1853 = vadd.f32 0.0, %v1852
    %v1854 = vpop.f32.mrf.mxu0
    %v1855 = vpop.f32.mrf.mxu0
    %v1856 = vpop.f32.mrf.mxu0
    %1857 = vdwg.mxu0
    %v1858 = vpack.c.bf16 %v1853, %v1805
    %1859 = vrot.lane.b32.xlu0 %v1638, 120
    %v1860 = vpop.permute.xlu0 %1859
    %1861 = vrot.lane.b32.xlu0 %v1638, 88
    %v1862 = vpop.permute.xlu0 %1861
    %v1864 = vsel %vm226, %v1860, 0
    %v1867 = vsel %vm226, %v1862, 0
    %1869 = vmatprep.subr.bf16.mxu0 0
    %1870 = vmatpush1.bf16.xpose.msra.mxu0 0
    %1871 = vmatprep.subr.bf16.mxu0 0
    %1872 = vmatpush1.bf16.xpose.msra.mxu0 0
    %1873 = vmatprep.subr.bf16.mxu0 0
    %1874 = vmatpush1.bf16.xpose.msra.mxu0 0
    %1875 = vmatprep.subr.bf16.mxu0 0
    %1876 = vmatpush1.bf16.xpose.msra.mxu0 0
    %1877 = vmatprep.subr.bf16.mxu0 0
    %1878 = vmatpush1.bf16.xpose.msra.mxu0 0
    %1879 = vmatprep.subr.bf16.mxu0 0
    %1880 = vmatpush1.bf16.xpose.msra.mxu0 0
    %1881 = vmatprep.subr.bf16.mxu0 0
    %1882 = vmatpush1.bf16.xpose.msra.mxu0 0
    %1883 = vmatprep.subr.bf16.mxu0 0
    %1884 = vmatpush1.bf16.xpose.msra.mxu0 %v1867
    %1885 = vmatprep.subr.bf16.mxu0 0
    %1886 = vmatpush2.bf16.xpose.msra.mxu0 0
    %1887 = vmatprep.subr.bf16.mxu0 0
    %1888 = vmatpush2.bf16.xpose.msra.mxu0 0
    %1889 = vmatprep.subr.bf16.mxu0 0
    %1890 = vmatpush2.bf16.xpose.msra.mxu0 0
    %1891 = vmatprep.subr.bf16.mxu0 0
    %1892 = vmatpush2.bf16.xpose.msra.mxu0 0
    %1893 = vmatprep.subr.bf16.mxu0 0
    %1894 = vmatpush2.bf16.xpose.msra.mxu0 0
    %1895 = vmatprep.subr.bf16.mxu0 0
    %1896 = vmatpush2.bf16.xpose.msra.mxu0 0
    %1897 = vmatprep.subr.bf16.mxu0 0
    %1898 = vmatpush2.bf16.xpose.msra.mxu0 0
    %1899 = vmatprep.subr.bf16.mxu0 0
    %1900 = vmatpush2.bf16.xpose.msra.mxu0 0
    %1901 = vmatprep.mubr.bf16.mxu0 0
    %1902 = vmatmul.mubr.bf16.gmra.mxu0 %v1864
    %v1903 = vpop.f32.mrf.mxu0
    %v1904 = vadd.f32 %v216, %v1903
    %v1905 = vpop.f32.mrf.mxu0
    %v1906 = vpop.f32.mrf.mxu0
    %v1907 = vpop.f32.mrf.mxu0
    %1908 = vdwg.mxu0
    %1909 = vrot.lane.b32.xlu0 %v1639, 120
    %v1910 = vpop.permute.xlu0 %1909
    %1911 = vrot.lane.b32.xlu0 %v1639, 88
    %v1912 = vpop.permute.xlu0 %1911
    %v1914 = vsel %vm226, %v1910, 0
    %v1917 = vsel %vm226, %v1912, 0
    %1919 = vmatprep.subr.bf16.mxu0 0
    %1920 = vmatpush1.bf16.xpose.msra.mxu0 0
    %1921 = vmatprep.subr.bf16.mxu0 0
    %1922 = vmatpush1.bf16.xpose.msra.mxu0 0
    %1923 = vmatprep.subr.bf16.mxu0 0
    %1924 = vmatpush1.bf16.xpose.msra.mxu0 0
    %1925 = vmatprep.subr.bf16.mxu0 0
    %1926 = vmatpush1.bf16.xpose.msra.mxu0 0
    %1927 = vmatprep.subr.bf16.mxu0 0
    %1928 = vmatpush1.bf16.xpose.msra.mxu0 0
    %1929 = vmatprep.subr.bf16.mxu0 0
    %1930 = vmatpush1.bf16.xpose.msra.mxu0 0
    %1931 = vmatprep.subr.bf16.mxu0 0
    %1932 = vmatpush1.bf16.xpose.msra.mxu0 0
    %1933 = vmatprep.subr.bf16.mxu0 0
    %1934 = vmatpush1.bf16.xpose.msra.mxu0 %v1917
    %1935 = vmatprep.subr.bf16.mxu0 0
    %1936 = vmatpush2.bf16.xpose.msra.mxu0 0
    %1937 = vmatprep.subr.bf16.mxu0 0
    %1938 = vmatpush2.bf16.xpose.msra.mxu0 0
    %1939 = vmatprep.subr.bf16.mxu0 0
    %1940 = vmatpush2.bf16.xpose.msra.mxu0 0
    %1941 = vmatprep.subr.bf16.mxu0 0
    %1942 = vmatpush2.bf16.xpose.msra.mxu0 0
    %1943 = vmatprep.subr.bf16.mxu0 0
    %1944 = vmatpush2.bf16.xpose.msra.mxu0 0
    %1945 = vmatprep.subr.bf16.mxu0 0
    %1946 = vmatpush2.bf16.xpose.msra.mxu0 0
    %1947 = vmatprep.subr.bf16.mxu0 0
    %1948 = vmatpush2.bf16.xpose.msra.mxu0 0
    %1949 = vmatprep.subr.bf16.mxu0 0
    %1950 = vmatpush2.bf16.xpose.msra.mxu0 0
    %1951 = vmatprep.mubr.bf16.mxu0 0
    %1952 = vmatmul.mubr.bf16.gmra.mxu0 %v1914
    %v1953 = vpop.f32.mrf.mxu0
    %v1954 = vadd.f32 %v220, %v1953
    %v1955 = vpop.f32.mrf.mxu0
    %v1956 = vpop.f32.mrf.mxu0
    %v1957 = vpop.f32.mrf.mxu0
    %1958 = vdwg.mxu0
    %v1959 = vsel %vm226, %v1904, -inf
    %1960 = vmax.xlane.f32.xlu0 %v1959
    %v1961 = vpop.xlane.xlu0 %1960
    %v1962 = vsel %vm226, %v1954, -inf
    %1963 = vmax.xlane.f32.xlu0 %v1962
    %v1964 = vpop.xlane.xlu0 %1963
    %v1965 = vsub.f32 %v1904, %v1961
    %v1966 = vsub.f32 %v1954, %v1964
    %v1967 = vmul.f32 %v1965, 1.442695
    %v1968 = vpow.pop %v1967
    %v1969 = vmul.f32 %v1966, 1.442695
    %v1970 = vpow.pop %v1969
    %v1971 = vsel %vm226, %v1968, 0.0
    %1972 = vadd.xlane.f32.xlu0 %v1971
    %v1973 = vpop.xlane.xlu0 %1972
    %v1974 = vsel %vm226, %v1970, 0.0
    %1975 = vadd.xlane.f32.xlu0 %v1974
    %v1976 = vpop.xlane.xlu0 %1975
    %v1977 = vrcp.pop %v1973
    %v1978 = vrcp.pop %v1976
    %v1979 = vmul.f32 %v1968, %v1977
    %v1980 = vmul.f32 %v1970, %v1978
    %v1981 = vpack.c.bf16 %v1979, %v1979
    %v1982 = vpack.c.bf16 %v1980, %v1980
    %1983 = vrot.lane.b32.xlu0 %v1638, 56
    %v1984 = vpop.permute.xlu0 %1983
    %v1986 = vsel %vm226, %v1981, 0
    %v1989 = vsel %vm351, %v1984, 0
    %1991 = vmatprep.subr.bf16.mxu0 0
    %1992 = vmatpush1.bf16.msra.mxu0 0
    %1993 = vmatprep.subr.bf16.mxu0 0
    %1994 = vmatpush1.bf16.msra.mxu0 0
    %1995 = vmatprep.subr.bf16.mxu0 0
    %1996 = vmatpush1.bf16.msra.mxu0 0
    %1997 = vmatprep.subr.bf16.mxu0 0
    %1998 = vmatpush1.bf16.msra.mxu0 0
    %1999 = vmatprep.subr.bf16.mxu0 0
    %2000 = vmatpush1.bf16.msra.mxu0 0
    %2001 = vmatprep.subr.bf16.mxu0 0
    %2002 = vmatpush1.bf16.msra.mxu0 0
    %2003 = vmatprep.subr.bf16.mxu0 0
    %2004 = vmatpush1.bf16.msra.mxu0 0
    %2005 = vmatprep.subr.bf16.mxu0 0
    %2006 = vmatpush1.bf16.msra.mxu0 %v1989
    %2007 = vmatprep.subr.bf16.mxu0 0
    %2008 = vmatpush2.bf16.msra.mxu0 0
    %2009 = vmatprep.subr.bf16.mxu0 0
    %2010 = vmatpush2.bf16.msra.mxu0 0
    %2011 = vmatprep.subr.bf16.mxu0 0
    %2012 = vmatpush2.bf16.msra.mxu0 0
    %2013 = vmatprep.subr.bf16.mxu0 0
    %2014 = vmatpush2.bf16.msra.mxu0 0
    %2015 = vmatprep.subr.bf16.mxu0 0
    %2016 = vmatpush2.bf16.msra.mxu0 0
    %2017 = vmatprep.subr.bf16.mxu0 0
    %2018 = vmatpush2.bf16.msra.mxu0 0
    %2019 = vmatprep.subr.bf16.mxu0 0
    %2020 = vmatpush2.bf16.msra.mxu0 0
    %2021 = vmatprep.subr.bf16.mxu0 0
    %2022 = vmatpush2.bf16.msra.mxu0 0
    %2023 = vmatprep.mubr.bf16.mxu0 0
    %2024 = vmatmul.mubr.bf16.gmra.mxu0 %v1986
    %v2025 = vpop.f32.mrf.mxu0
    %v2026 = vadd.f32 0.0, %v2025
    %v2027 = vpop.f32.mrf.mxu0
    %v2028 = vpop.f32.mrf.mxu0
    %v2029 = vpop.f32.mrf.mxu0
    %2030 = vdwg.mxu0
    %2031 = vrot.lane.b32.xlu0 %v1639, 56
    %v2032 = vpop.permute.xlu0 %2031
    %v2034 = vsel %vm226, %v1982, 0
    %v2037 = vsel %vm351, %v2032, 0
    %2039 = vmatprep.subr.bf16.mxu0 0
    %2040 = vmatpush1.bf16.msra.mxu0 0
    %2041 = vmatprep.subr.bf16.mxu0 0
    %2042 = vmatpush1.bf16.msra.mxu0 0
    %2043 = vmatprep.subr.bf16.mxu0 0
    %2044 = vmatpush1.bf16.msra.mxu0 0
    %2045 = vmatprep.subr.bf16.mxu0 0
    %2046 = vmatpush1.bf16.msra.mxu0 0
    %2047 = vmatprep.subr.bf16.mxu0 0
    %2048 = vmatpush1.bf16.msra.mxu0 0
    %2049 = vmatprep.subr.bf16.mxu0 0
    %2050 = vmatpush1.bf16.msra.mxu0 0
    %2051 = vmatprep.subr.bf16.mxu0 0
    %2052 = vmatpush1.bf16.msra.mxu0 0
    %2053 = vmatprep.subr.bf16.mxu0 0
    %2054 = vmatpush1.bf16.msra.mxu0 %v2037
    %2055 = vmatprep.subr.bf16.mxu0 0
    %2056 = vmatpush2.bf16.msra.mxu0 0
    %2057 = vmatprep.subr.bf16.mxu0 0
    %2058 = vmatpush2.bf16.msra.mxu0 0
    %2059 = vmatprep.subr.bf16.mxu0 0
    %2060 = vmatpush2.bf16.msra.mxu0 0
    %2061 = vmatprep.subr.bf16.mxu0 0
    %2062 = vmatpush2.bf16.msra.mxu0 0
    %2063 = vmatprep.subr.bf16.mxu0 0
    %2064 = vmatpush2.bf16.msra.mxu0 0
    %2065 = vmatprep.subr.bf16.mxu0 0
    %2066 = vmatpush2.bf16.msra.mxu0 0
    %2067 = vmatprep.subr.bf16.mxu0 0
    %2068 = vmatpush2.bf16.msra.mxu0 0
    %2069 = vmatprep.subr.bf16.mxu0 0
    %2070 = vmatpush2.bf16.msra.mxu0 0
    %2071 = vmatprep.mubr.bf16.mxu0 0
    %2072 = vmatmul.mubr.bf16.gmra.mxu0 %v2034
    %v2073 = vpop.f32.mrf.mxu0
    %v2074 = vadd.f32 0.0, %v2073
    %v2075 = vpop.f32.mrf.mxu0
    %v2076 = vpop.f32.mrf.mxu0
    %v2077 = vpop.f32.mrf.mxu0
    %2078 = vdwg.mxu0
    %v2079 = vpack.c.bf16 %v2074, %v2026
    %v2081 = vsel %vm226, %v2079, 0
    %v2084 = vsel %vm351, %v1635, 0
    %2086 = vmatprep.subr.bf16.mxu0 0
    %2087 = vmatpush1.bf16.msra.mxu0 0
    %2088 = vmatprep.subr.bf16.mxu0 0
    %2089 = vmatpush1.bf16.msra.mxu0 0
    %2090 = vmatprep.subr.bf16.mxu0 0
    %2091 = vmatpush1.bf16.msra.mxu0 0
    %2092 = vmatprep.subr.bf16.mxu0 0
    %2093 = vmatpush1.bf16.msra.mxu0 0
    %2094 = vmatprep.subr.bf16.mxu0 0
    %2095 = vmatpush1.bf16.msra.mxu0 0
    %2096 = vmatprep.subr.bf16.mxu0 0
    %2097 = vmatpush1.bf16.msra.mxu0 0
    %2098 = vmatprep.subr.bf16.mxu0 0
    %2099 = vmatpush1.bf16.msra.mxu0 0
    %2100 = vmatprep.subr.bf16.mxu0 0
    %2101 = vmatpush1.bf16.msra.mxu0 %v2084
    %2102 = vmatprep.subr.bf16.mxu0 0
    %2103 = vmatpush2.bf16.msra.mxu0 0
    %2104 = vmatprep.subr.bf16.mxu0 0
    %2105 = vmatpush2.bf16.msra.mxu0 0
    %2106 = vmatprep.subr.bf16.mxu0 0
    %2107 = vmatpush2.bf16.msra.mxu0 0
    %2108 = vmatprep.subr.bf16.mxu0 0
    %2109 = vmatpush2.bf16.msra.mxu0 0
    %2110 = vmatprep.subr.bf16.mxu0 0
    %2111 = vmatpush2.bf16.msra.mxu0 0
    %2112 = vmatprep.subr.bf16.mxu0 0
    %2113 = vmatpush2.bf16.msra.mxu0 0
    %2114 = vmatprep.subr.bf16.mxu0 0
    %2115 = vmatpush2.bf16.msra.mxu0 0
    %2116 = vmatprep.subr.bf16.mxu0 0
    %2117 = vmatpush2.bf16.msra.mxu0 0
    %2118 = vmatprep.mubr.bf16.mxu0 0
    %2119 = vmatmul.mubr.bf16.gmra.mxu0 %v2081
    %v2120 = vpop.f32.mrf.mxu0
    %v2121 = vadd.f32 0.0, %v2120
    %v2122 = vpop.f32.mrf.mxu0
    %v2123 = vpop.f32.mrf.mxu0
    %v2124 = vadd.f32 0.0, %v2123
    %v2125 = vpop.f32.mrf.mxu0
    %2126 = vdwg.mxu0
    %v2128 = vsel %vm226, %v1858, 0
    %v2131 = vsel %vm351, %v1634, 0
    %2133 = vmatprep.subr.bf16.mxu0 0
    %2134 = vmatpush1.bf16.msra.mxu0 0
    %2135 = vmatprep.subr.bf16.mxu0 0
    %2136 = vmatpush1.bf16.msra.mxu0 0
    %2137 = vmatprep.subr.bf16.mxu0 0
    %2138 = vmatpush1.bf16.msra.mxu0 0
    %2139 = vmatprep.subr.bf16.mxu0 0
    %2140 = vmatpush1.bf16.msra.mxu0 0
    %2141 = vmatprep.subr.bf16.mxu0 0
    %2142 = vmatpush1.bf16.msra.mxu0 0
    %2143 = vmatprep.subr.bf16.mxu0 0
    %2144 = vmatpush1.bf16.msra.mxu0 0
    %2145 = vmatprep.subr.bf16.mxu0 0
    %2146 = vmatpush1.bf16.msra.mxu0 0
    %2147 = vmatprep.subr.bf16.mxu0 0
    %2148 = vmatpush1.bf16.msra.mxu0 %v2131
    %2149 = vmatprep.subr.bf16.mxu0 0
    %2150 = vmatpush2.bf16.msra.mxu0 0
    %2151 = vmatprep.subr.bf16.mxu0 0
    %2152 = vmatpush2.bf16.msra.mxu0 0
    %2153 = vmatprep.subr.bf16.mxu0 0
    %2154 = vmatpush2.bf16.msra.mxu0 0
    %2155 = vmatprep.subr.bf16.mxu0 0
    %2156 = vmatpush2.bf16.msra.mxu0 0
    %2157 = vmatprep.subr.bf16.mxu0 0
    %2158 = vmatpush2.bf16.msra.mxu0 0
    %2159 = vmatprep.subr.bf16.mxu0 0
    %2160 = vmatpush2.bf16.msra.mxu0 0
    %2161 = vmatprep.subr.bf16.mxu0 0
    %2162 = vmatpush2.bf16.msra.mxu0 0
    %2163 = vmatprep.subr.bf16.mxu0 0
    %2164 = vmatpush2.bf16.msra.mxu0 0
    %2165 = vmatprep.mubr.bf16.mxu0 0
    %2166 = vmatmul.mubr.bf16.gmra.mxu0 %v2128
    %v2167 = vpop.f32.mrf.mxu0
    %v2168 = vadd.f32 %v2121, %v2167
    %v2169 = vpop.f32.mrf.mxu0
    %v2170 = vpop.f32.mrf.mxu0
    %v2171 = vadd.f32 %v2124, %v2170
    %v2172 = vpop.f32.mrf.mxu0
    %2173 = vdwg.mxu0
    %2174 = vrot.lane.b32.xlu0 %v1638, 112
    %v2175 = vpop.permute.xlu0 %2174
    %2176 = vrot.lane.b32.xlu0 %v1638, 80
    %v2177 = vpop.permute.xlu0 %2176
    %v2179 = vsel %vm226, %v2175, 0
    %v2182 = vsel %vm226, %v2177, 0
    %2184 = vmatprep.subr.bf16.mxu0 0
    %2185 = vmatpush1.bf16.xpose.msra.mxu0 0
    %2186 = vmatprep.subr.bf16.mxu0 0
    %2187 = vmatpush1.bf16.xpose.msra.mxu0 0
    %2188 = vmatprep.subr.bf16.mxu0 0
    %2189 = vmatpush1.bf16.xpose.msra.mxu0 0
    %2190 = vmatprep.subr.bf16.mxu0 0
    %2191 = vmatpush1.bf16.xpose.msra.mxu0 0
    %2192 = vmatprep.subr.bf16.mxu0 0
    %2193 = vmatpush1.bf16.xpose.msra.mxu0 0
    %2194 = vmatprep.subr.bf16.mxu0 0
    %2195 = vmatpush1.bf16.xpose.msra.mxu0 0
    %2196 = vmatprep.subr.bf16.mxu0 0
    %2197 = vmatpush1.bf16.xpose.msra.mxu0 0
    %2198 = vmatprep.subr.bf16.mxu0 0
    %2199 = vmatpush1.bf16.xpose.msra.mxu0 %v2182
    %2200 = vmatprep.subr.bf16.mxu0 0
    %2201 = vmatpush2.bf16.xpose.msra.mxu0 0
    %2202 = vmatprep.subr.bf16.mxu0 0
    %2203 = vmatpush2.bf16.xpose.msra.mxu0 0
    %2204 = vmatprep.subr.bf16.mxu0 0
    %2205 = vmatpush2.bf16.xpose.msra.mxu0 0
    %2206 = vmatprep.subr.bf16.mxu0 0
    %2207 = vmatpush2.bf16.xpose.msra.mxu0 0
    %2208 = vmatprep.subr.bf16.mxu0 0
    %2209 = vmatpush2.bf16.xpose.msra.mxu0 0
    %2210 = vmatprep.subr.bf16.mxu0 0
    %2211 = vmatpush2.bf16.xpose.msra.mxu0 0
    %2212 = vmatprep.subr.bf16.mxu0 0
    %2213 = vmatpush2.bf16.xpose.msra.mxu0 0
    %2214 = vmatprep.subr.bf16.mxu0 0
    %2215 = vmatpush2.bf16.xpose.msra.mxu0 0
    %2216 = vmatprep.mubr.bf16.mxu0 0
    %2217 = vmatmul.mubr.bf16.gmra.mxu0 %v2179
    %v2218 = vpop.f32.mrf.mxu0
    %v2219 = vadd.f32 %v216, %v2218
    %v2220 = vpop.f32.mrf.mxu0
    %v2221 = vpop.f32.mrf.mxu0
    %v2222 = vpop.f32.mrf.mxu0
    %2223 = vdwg.mxu0
    %2224 = vrot.lane.b32.xlu0 %v1639, 112
    %v2225 = vpop.permute.xlu0 %2224
    %2226 = vrot.lane.b32.xlu0 %v1639, 80
    %v2227 = vpop.permute.xlu0 %2226
    %v2229 = vsel %vm226, %v2225, 0
    %v2232 = vsel %vm226, %v2227, 0
    %2234 = vmatprep.subr.bf16.mxu0 0
    %2235 = vmatpush1.bf16.xpose.msra.mxu0 0
    %2236 = vmatprep.subr.bf16.mxu0 0
    %2237 = vmatpush1.bf16.xpose.msra.mxu0 0
    %2238 = vmatprep.subr.bf16.mxu0 0
    %2239 = vmatpush1.bf16.xpose.msra.mxu0 0
    %2240 = vmatprep.subr.bf16.mxu0 0
    %2241 = vmatpush1.bf16.xpose.msra.mxu0 0
    %2242 = vmatprep.subr.bf16.mxu0 0
    %2243 = vmatpush1.bf16.xpose.msra.mxu0 0
    %2244 = vmatprep.subr.bf16.mxu0 0
    %2245 = vmatpush1.bf16.xpose.msra.mxu0 0
    %2246 = vmatprep.subr.bf16.mxu0 0
    %2247 = vmatpush1.bf16.xpose.msra.mxu0 0
    %2248 = vmatprep.subr.bf16.mxu0 0
    %2249 = vmatpush1.bf16.xpose.msra.mxu0 %v2232
    %2250 = vmatprep.subr.bf16.mxu0 0
    %2251 = vmatpush2.bf16.xpose.msra.mxu0 0
    %2252 = vmatprep.subr.bf16.mxu0 0
    %2253 = vmatpush2.bf16.xpose.msra.mxu0 0
    %2254 = vmatprep.subr.bf16.mxu0 0
    %2255 = vmatpush2.bf16.xpose.msra.mxu0 0
    %2256 = vmatprep.subr.bf16.mxu0 0
    %2257 = vmatpush2.bf16.xpose.msra.mxu0 0
    %2258 = vmatprep.subr.bf16.mxu0 0
    %2259 = vmatpush2.bf16.xpose.msra.mxu0 0
    %2260 = vmatprep.subr.bf16.mxu0 0
    %2261 = vmatpush2.bf16.xpose.msra.mxu0 0
    %2262 = vmatprep.subr.bf16.mxu0 0
    %2263 = vmatpush2.bf16.xpose.msra.mxu0 0
    %2264 = vmatprep.subr.bf16.mxu0 0
    %2265 = vmatpush2.bf16.xpose.msra.mxu0 0
    %2266 = vmatprep.mubr.bf16.mxu0 0
    %2267 = vmatmul.mubr.bf16.gmra.mxu0 %v2229
    %v2268 = vpop.f32.mrf.mxu0
    %v2269 = vadd.f32 %v220, %v2268
    %v2270 = vpop.f32.mrf.mxu0
    %v2271 = vpop.f32.mrf.mxu0
    %v2272 = vpop.f32.mrf.mxu0
    %2273 = vdwg.mxu0
    %v2274 = vsel %vm226, %v2219, -inf
    %2275 = vmax.xlane.f32.xlu0 %v2274
    %v2276 = vpop.xlane.xlu0 %2275
    %v2277 = vsel %vm226, %v2269, -inf
    %2278 = vmax.xlane.f32.xlu0 %v2277
    %v2279 = vpop.xlane.xlu0 %2278
    %v2280 = vsub.f32 %v2219, %v2276
    %v2281 = vsub.f32 %v2269, %v2279
    %v2282 = vmul.f32 %v2280, 1.442695
    %v2283 = vpow.pop %v2282
    %v2284 = vmul.f32 %v2281, 1.442695
    %v2285 = vpow.pop %v2284
    %v2286 = vsel %vm226, %v2283, 0.0
    %2287 = vadd.xlane.f32.xlu0 %v2286
    %v2288 = vpop.xlane.xlu0 %2287
    %v2289 = vsel %vm226, %v2285, 0.0
    %2290 = vadd.xlane.f32.xlu0 %v2289
    %v2291 = vpop.xlane.xlu0 %2290
    %v2292 = vrcp.pop %v2288
    %v2293 = vrcp.pop %v2291
    %v2294 = vmul.f32 %v2283, %v2292
    %v2295 = vmul.f32 %v2285, %v2293
    %v2296 = vpack.c.bf16 %v2294, %v2294
    %v2297 = vpack.c.bf16 %v2295, %v2295
    %2298 = vrot.lane.b32.xlu0 %v1638, 48
    %v2299 = vpop.permute.xlu0 %2298
    %v2301 = vsel %vm226, %v2296, 0
    %v2304 = vsel %vm351, %v2299, 0
    %2306 = vmatprep.subr.bf16.mxu0 0
    %2307 = vmatpush1.bf16.msra.mxu0 0
    %2308 = vmatprep.subr.bf16.mxu0 0
    %2309 = vmatpush1.bf16.msra.mxu0 0
    %2310 = vmatprep.subr.bf16.mxu0 0
    %2311 = vmatpush1.bf16.msra.mxu0 0
    %2312 = vmatprep.subr.bf16.mxu0 0
    %2313 = vmatpush1.bf16.msra.mxu0 0
    %2314 = vmatprep.subr.bf16.mxu0 0
    %2315 = vmatpush1.bf16.msra.mxu0 0
    %2316 = vmatprep.subr.bf16.mxu0 0
    %2317 = vmatpush1.bf16.msra.mxu0 0
    %2318 = vmatprep.subr.bf16.mxu0 0
    %2319 = vmatpush1.bf16.msra.mxu0 0
    %2320 = vmatprep.subr.bf16.mxu0 0
    %2321 = vmatpush1.bf16.msra.mxu0 %v2304
    %2322 = vmatprep.subr.bf16.mxu0 0
    %2323 = vmatpush2.bf16.msra.mxu0 0
    %2324 = vmatprep.subr.bf16.mxu0 0
    %2325 = vmatpush2.bf16.msra.mxu0 0
    %2326 = vmatprep.subr.bf16.mxu0 0
    %2327 = vmatpush2.bf16.msra.mxu0 0
    %2328 = vmatprep.subr.bf16.mxu0 0
    %2329 = vmatpush2.bf16.msra.mxu0 0
    %2330 = vmatprep.subr.bf16.mxu0 0
    %2331 = vmatpush2.bf16.msra.mxu0 0
    %2332 = vmatprep.subr.bf16.mxu0 0
    %2333 = vmatpush2.bf16.msra.mxu0 0
    %2334 = vmatprep.subr.bf16.mxu0 0
    %2335 = vmatpush2.bf16.msra.mxu0 0
    %2336 = vmatprep.subr.bf16.mxu0 0
    %2337 = vmatpush2.bf16.msra.mxu0 0
    %2338 = vmatprep.mubr.bf16.mxu0 0
    %2339 = vmatmul.mubr.bf16.gmra.mxu0 %v2301
    %v2340 = vpop.f32.mrf.mxu0
    %v2341 = vadd.f32 0.0, %v2340
    %v2342 = vpop.f32.mrf.mxu0
    %v2343 = vpop.f32.mrf.mxu0
    %v2344 = vpop.f32.mrf.mxu0
    %2345 = vdwg.mxu0
    %2346 = vrot.lane.b32.xlu0 %v1639, 48
    %v2347 = vpop.permute.xlu0 %2346
    %v2349 = vsel %vm226, %v2297, 0
    %v2352 = vsel %vm351, %v2347, 0
    %2354 = vmatprep.subr.bf16.mxu0 0
    %2355 = vmatpush1.bf16.msra.mxu0 0
    %2356 = vmatprep.subr.bf16.mxu0 0
    %2357 = vmatpush1.bf16.msra.mxu0 0
    %2358 = vmatprep.subr.bf16.mxu0 0
    %2359 = vmatpush1.bf16.msra.mxu0 0
    %2360 = vmatprep.subr.bf16.mxu0 0
    %2361 = vmatpush1.bf16.msra.mxu0 0
    %2362 = vmatprep.subr.bf16.mxu0 0
    %2363 = vmatpush1.bf16.msra.mxu0 0
    %2364 = vmatprep.subr.bf16.mxu0 0
    %2365 = vmatpush1.bf16.msra.mxu0 0
    %2366 = vmatprep.subr.bf16.mxu0 0
    %2367 = vmatpush1.bf16.msra.mxu0 0
    %2368 = vmatprep.subr.bf16.mxu0 0
    %2369 = vmatpush1.bf16.msra.mxu0 %v2352
    %2370 = vmatprep.subr.bf16.mxu0 0
    %2371 = vmatpush2.bf16.msra.mxu0 0
    %2372 = vmatprep.subr.bf16.mxu0 0
    %2373 = vmatpush2.bf16.msra.mxu0 0
    %2374 = vmatprep.subr.bf16.mxu0 0
    %2375 = vmatpush2.bf16.msra.mxu0 0
    %2376 = vmatprep.subr.bf16.mxu0 0
    %2377 = vmatpush2.bf16.msra.mxu0 0
    %2378 = vmatprep.subr.bf16.mxu0 0
    %2379 = vmatpush2.bf16.msra.mxu0 0
    %2380 = vmatprep.subr.bf16.mxu0 0
    %2381 = vmatpush2.bf16.msra.mxu0 0
    %2382 = vmatprep.subr.bf16.mxu0 0
    %2383 = vmatpush2.bf16.msra.mxu0 0
    %2384 = vmatprep.subr.bf16.mxu0 0
    %2385 = vmatpush2.bf16.msra.mxu0 0
    %2386 = vmatprep.mubr.bf16.mxu0 0
    %2387 = vmatmul.mubr.bf16.gmra.mxu0 %v2349
    %v2388 = vpop.f32.mrf.mxu0
    %v2389 = vadd.f32 0.0, %v2388
    %v2390 = vpop.f32.mrf.mxu0
    %v2391 = vpop.f32.mrf.mxu0
    %v2392 = vpop.f32.mrf.mxu0
    %2393 = vdwg.mxu0
    %v2394 = vpack.c.bf16 %v2389, %v2341
    %v2396 = vsel %vm226, %v2394, 0
    %v2399 = vsel %vm351, %v1636, 0
    %2401 = vmatprep.subr.bf16.mxu0 0
    %2402 = vmatpush1.bf16.msra.mxu0 0
    %2403 = vmatprep.subr.bf16.mxu0 0
    %2404 = vmatpush1.bf16.msra.mxu0 0
    %2405 = vmatprep.subr.bf16.mxu0 0
    %2406 = vmatpush1.bf16.msra.mxu0 0
    %2407 = vmatprep.subr.bf16.mxu0 0
    %2408 = vmatpush1.bf16.msra.mxu0 0
    %2409 = vmatprep.subr.bf16.mxu0 0
    %2410 = vmatpush1.bf16.msra.mxu0 0
    %2411 = vmatprep.subr.bf16.mxu0 0
    %2412 = vmatpush1.bf16.msra.mxu0 0
    %2413 = vmatprep.subr.bf16.mxu0 0
    %2414 = vmatpush1.bf16.msra.mxu0 0
    %2415 = vmatprep.subr.bf16.mxu0 0
    %2416 = vmatpush1.bf16.msra.mxu0 %v2399
    %2417 = vmatprep.subr.bf16.mxu0 0
    %2418 = vmatpush2.bf16.msra.mxu0 0
    %2419 = vmatprep.subr.bf16.mxu0 0
    %2420 = vmatpush2.bf16.msra.mxu0 0
    %2421 = vmatprep.subr.bf16.mxu0 0
    %2422 = vmatpush2.bf16.msra.mxu0 0
    %2423 = vmatprep.subr.bf16.mxu0 0
    %2424 = vmatpush2.bf16.msra.mxu0 0
    %2425 = vmatprep.subr.bf16.mxu0 0
    %2426 = vmatpush2.bf16.msra.mxu0 0
    %2427 = vmatprep.subr.bf16.mxu0 0
    %2428 = vmatpush2.bf16.msra.mxu0 0
    %2429 = vmatprep.subr.bf16.mxu0 0
    %2430 = vmatpush2.bf16.msra.mxu0 0
    %2431 = vmatprep.subr.bf16.mxu0 0
    %2432 = vmatpush2.bf16.msra.mxu0 0
    %2433 = vmatprep.mubr.bf16.mxu0 0
    %2434 = vmatmul.mubr.bf16.gmra.mxu0 %v2396
    %v2435 = vpop.f32.mrf.mxu0
    %v2436 = vadd.f32 0.0, %v2435
    %v2437 = vpop.f32.mrf.mxu0
    %v2438 = vpop.f32.mrf.mxu0
    %v2439 = vadd.f32 0.0, %v2438
    %v2440 = vpop.f32.mrf.mxu0
    %2441 = vdwg.mxu0
    %v2442 = vadd.f32 %v2168, %v2436
    %v2443 = vadd.f32 %v2171, %v2439
    %2444 = vrot.lane.b32.xlu0 %v1638, 104
    %v2445 = vpop.permute.xlu0 %2444
    %2446 = vrot.lane.b32.xlu0 %v1638, 72
    %v2447 = vpop.permute.xlu0 %2446
    %v2449 = vsel %vm226, %v2445, 0
    %v2452 = vsel %vm226, %v2447, 0
    %2454 = vmatprep.subr.bf16.mxu0 0
    %2455 = vmatpush1.bf16.xpose.msra.mxu0 0
    %2456 = vmatprep.subr.bf16.mxu0 0
    %2457 = vmatpush1.bf16.xpose.msra.mxu0 0
    %2458 = vmatprep.subr.bf16.mxu0 0
    %2459 = vmatpush1.bf16.xpose.msra.mxu0 0
    %2460 = vmatprep.subr.bf16.mxu0 0
    %2461 = vmatpush1.bf16.xpose.msra.mxu0 0
    %2462 = vmatprep.subr.bf16.mxu0 0
    %2463 = vmatpush1.bf16.xpose.msra.mxu0 0
    %2464 = vmatprep.subr.bf16.mxu0 0
    %2465 = vmatpush1.bf16.xpose.msra.mxu0 0
    %2466 = vmatprep.subr.bf16.mxu0 0
    %2467 = vmatpush1.bf16.xpose.msra.mxu0 0
    %2468 = vmatprep.subr.bf16.mxu0 0
    %2469 = vmatpush1.bf16.xpose.msra.mxu0 %v2452
    %2470 = vmatprep.subr.bf16.mxu0 0
    %2471 = vmatpush2.bf16.xpose.msra.mxu0 0
    %2472 = vmatprep.subr.bf16.mxu0 0
    %2473 = vmatpush2.bf16.xpose.msra.mxu0 0
    %2474 = vmatprep.subr.bf16.mxu0 0
    %2475 = vmatpush2.bf16.xpose.msra.mxu0 0
    %2476 = vmatprep.subr.bf16.mxu0 0
    %2477 = vmatpush2.bf16.xpose.msra.mxu0 0
    %2478 = vmatprep.subr.bf16.mxu0 0
    %2479 = vmatpush2.bf16.xpose.msra.mxu0 0
    %2480 = vmatprep.subr.bf16.mxu0 0
    %2481 = vmatpush2.bf16.xpose.msra.mxu0 0
    %2482 = vmatprep.subr.bf16.mxu0 0
    %2483 = vmatpush2.bf16.xpose.msra.mxu0 0
    %2484 = vmatprep.subr.bf16.mxu0 0
    %2485 = vmatpush2.bf16.xpose.msra.mxu0 0
    %2486 = vmatprep.mubr.bf16.mxu0 0
    %2487 = vmatmul.mubr.bf16.gmra.mxu0 %v2449
    %v2488 = vpop.f32.mrf.mxu0
    %v2489 = vadd.f32 %v216, %v2488
    %v2490 = vpop.f32.mrf.mxu0
    %v2491 = vpop.f32.mrf.mxu0
    %v2492 = vpop.f32.mrf.mxu0
    %2493 = vdwg.mxu0
    %2494 = vrot.lane.b32.xlu0 %v1639, 104
    %v2495 = vpop.permute.xlu0 %2494
    %2496 = vrot.lane.b32.xlu0 %v1639, 72
    %v2497 = vpop.permute.xlu0 %2496
    %v2499 = vsel %vm226, %v2495, 0
    %v2502 = vsel %vm226, %v2497, 0
    %2504 = vmatprep.subr.bf16.mxu0 0
    %2505 = vmatpush1.bf16.xpose.msra.mxu0 0
    %2506 = vmatprep.subr.bf16.mxu0 0
    %2507 = vmatpush1.bf16.xpose.msra.mxu0 0
    %2508 = vmatprep.subr.bf16.mxu0 0
    %2509 = vmatpush1.bf16.xpose.msra.mxu0 0
    %2510 = vmatprep.subr.bf16.mxu0 0
    %2511 = vmatpush1.bf16.xpose.msra.mxu0 0
    %2512 = vmatprep.subr.bf16.mxu0 0
    %2513 = vmatpush1.bf16.xpose.msra.mxu0 0
    %2514 = vmatprep.subr.bf16.mxu0 0
    %2515 = vmatpush1.bf16.xpose.msra.mxu0 0
    %2516 = vmatprep.subr.bf16.mxu0 0
    %2517 = vmatpush1.bf16.xpose.msra.mxu0 0
    %2518 = vmatprep.subr.bf16.mxu0 0
    %2519 = vmatpush1.bf16.xpose.msra.mxu0 %v2502
    %2520 = vmatprep.subr.bf16.mxu0 0
    %2521 = vmatpush2.bf16.xpose.msra.mxu0 0
    %2522 = vmatprep.subr.bf16.mxu0 0
    %2523 = vmatpush2.bf16.xpose.msra.mxu0 0
    %2524 = vmatprep.subr.bf16.mxu0 0
    %2525 = vmatpush2.bf16.xpose.msra.mxu0 0
    %2526 = vmatprep.subr.bf16.mxu0 0
    %2527 = vmatpush2.bf16.xpose.msra.mxu0 0
    %2528 = vmatprep.subr.bf16.mxu0 0
    %2529 = vmatpush2.bf16.xpose.msra.mxu0 0
    %2530 = vmatprep.subr.bf16.mxu0 0
    %2531 = vmatpush2.bf16.xpose.msra.mxu0 0
    %2532 = vmatprep.subr.bf16.mxu0 0
    %2533 = vmatpush2.bf16.xpose.msra.mxu0 0
    %2534 = vmatprep.subr.bf16.mxu0 0
    %2535 = vmatpush2.bf16.xpose.msra.mxu0 0
    %2536 = vmatprep.mubr.bf16.mxu0 0
    %2537 = vmatmul.mubr.bf16.gmra.mxu0 %v2499
    %v2538 = vpop.f32.mrf.mxu0
    %v2539 = vadd.f32 %v220, %v2538
    %v2540 = vpop.f32.mrf.mxu0
    %v2541 = vpop.f32.mrf.mxu0
    %v2542 = vpop.f32.mrf.mxu0
    %2543 = vdwg.mxu0
    %v2544 = vsel %vm226, %v2489, -inf
    %2545 = vmax.xlane.f32.xlu0 %v2544
    %v2546 = vpop.xlane.xlu0 %2545
    %v2547 = vsel %vm226, %v2539, -inf
    %2548 = vmax.xlane.f32.xlu0 %v2547
    %v2549 = vpop.xlane.xlu0 %2548
    %v2550 = vsub.f32 %v2489, %v2546
    %v2551 = vsub.f32 %v2539, %v2549
    %v2552 = vmul.f32 %v2550, 1.442695
    %v2553 = vpow.pop %v2552
    %v2554 = vmul.f32 %v2551, 1.442695
    %v2555 = vpow.pop %v2554
    %v2556 = vsel %vm226, %v2553, 0.0
    %2557 = vadd.xlane.f32.xlu0 %v2556
    %v2558 = vpop.xlane.xlu0 %2557
    %v2559 = vsel %vm226, %v2555, 0.0
    %2560 = vadd.xlane.f32.xlu0 %v2559
    %v2561 = vpop.xlane.xlu0 %2560
    %v2562 = vrcp.pop %v2558
    %v2563 = vrcp.pop %v2561
    %v2564 = vmul.f32 %v2553, %v2562
    %v2565 = vmul.f32 %v2555, %v2563
    %v2566 = vpack.c.bf16 %v2564, %v2564
    %v2567 = vpack.c.bf16 %v2565, %v2565
    %2568 = vrot.lane.b32.xlu0 %v1638, 40
    %v2569 = vpop.permute.xlu0 %2568
    %v2571 = vsel %vm226, %v2566, 0
    %v2574 = vsel %vm351, %v2569, 0
    %2576 = vmatprep.subr.bf16.mxu0 0
    %2577 = vmatpush1.bf16.msra.mxu0 0
    %2578 = vmatprep.subr.bf16.mxu0 0
    %2579 = vmatpush1.bf16.msra.mxu0 0
    %2580 = vmatprep.subr.bf16.mxu0 0
    %2581 = vmatpush1.bf16.msra.mxu0 0
    %2582 = vmatprep.subr.bf16.mxu0 0
    %2583 = vmatpush1.bf16.msra.mxu0 0
    %2584 = vmatprep.subr.bf16.mxu0 0
    %2585 = vmatpush1.bf16.msra.mxu0 0
    %2586 = vmatprep.subr.bf16.mxu0 0
    %2587 = vmatpush1.bf16.msra.mxu0 0
    %2588 = vmatprep.subr.bf16.mxu0 0
    %2589 = vmatpush1.bf16.msra.mxu0 0
    %2590 = vmatprep.subr.bf16.mxu0 0
    %2591 = vmatpush1.bf16.msra.mxu0 %v2574
    %2592 = vmatprep.subr.bf16.mxu0 0
    %2593 = vmatpush2.bf16.msra.mxu0 0
    %2594 = vmatprep.subr.bf16.mxu0 0
    %2595 = vmatpush2.bf16.msra.mxu0 0
    %2596 = vmatprep.subr.bf16.mxu0 0
    %2597 = vmatpush2.bf16.msra.mxu0 0
    %2598 = vmatprep.subr.bf16.mxu0 0
    %2599 = vmatpush2.bf16.msra.mxu0 0
    %2600 = vmatprep.subr.bf16.mxu0 0
    %2601 = vmatpush2.bf16.msra.mxu0 0
    %2602 = vmatprep.subr.bf16.mxu0 0
    %2603 = vmatpush2.bf16.msra.mxu0 0
    %2604 = vmatprep.subr.bf16.mxu0 0
    %2605 = vmatpush2.bf16.msra.mxu0 0
    %2606 = vmatprep.subr.bf16.mxu0 0
    %2607 = vmatpush2.bf16.msra.mxu0 0
    %2608 = vmatprep.mubr.bf16.mxu0 0
    %2609 = vmatmul.mubr.bf16.gmra.mxu0 %v2571
    %v2610 = vpop.f32.mrf.mxu0
    %v2611 = vadd.f32 0.0, %v2610
    %v2612 = vpop.f32.mrf.mxu0
    %v2613 = vpop.f32.mrf.mxu0
    %v2614 = vpop.f32.mrf.mxu0
    %2615 = vdwg.mxu0
    %2616 = vrot.lane.b32.xlu0 %v1639, 40
    %v2617 = vpop.permute.xlu0 %2616
    %v2619 = vsel %vm226, %v2567, 0
    %v2622 = vsel %vm351, %v2617, 0
    %2624 = vmatprep.subr.bf16.mxu0 0
    %2625 = vmatpush1.bf16.msra.mxu0 0
    %2626 = vmatprep.subr.bf16.mxu0 0
    %2627 = vmatpush1.bf16.msra.mxu0 0
    %2628 = vmatprep.subr.bf16.mxu0 0
    %2629 = vmatpush1.bf16.msra.mxu0 0
    %2630 = vmatprep.subr.bf16.mxu0 0
    %2631 = vmatpush1.bf16.msra.mxu0 0
    %2632 = vmatprep.subr.bf16.mxu0 0
    %2633 = vmatpush1.bf16.msra.mxu0 0
    %2634 = vmatprep.subr.bf16.mxu0 0
    %2635 = vmatpush1.bf16.msra.mxu0 0
    %2636 = vmatprep.subr.bf16.mxu0 0
    %2637 = vmatpush1.bf16.msra.mxu0 0
    %2638 = vmatprep.subr.bf16.mxu0 0
    %2639 = vmatpush1.bf16.msra.mxu0 %v2622
    %2640 = vmatprep.subr.bf16.mxu0 0
    %2641 = vmatpush2.bf16.msra.mxu0 0
    %2642 = vmatprep.subr.bf16.mxu0 0
    %2643 = vmatpush2.bf16.msra.mxu0 0
    %2644 = vmatprep.subr.bf16.mxu0 0
    %2645 = vmatpush2.bf16.msra.mxu0 0
    %2646 = vmatprep.subr.bf16.mxu0 0
    %2647 = vmatpush2.bf16.msra.mxu0 0
    %2648 = vmatprep.subr.bf16.mxu0 0
    %2649 = vmatpush2.bf16.msra.mxu0 0
    %2650 = vmatprep.subr.bf16.mxu0 0
    %2651 = vmatpush2.bf16.msra.mxu0 0
    %2652 = vmatprep.subr.bf16.mxu0 0
    %2653 = vmatpush2.bf16.msra.mxu0 0
    %2654 = vmatprep.subr.bf16.mxu0 0
    %2655 = vmatpush2.bf16.msra.mxu0 0
    %2656 = vmatprep.mubr.bf16.mxu0 0
    %2657 = vmatmul.mubr.bf16.gmra.mxu0 %v2619
    %v2658 = vpop.f32.mrf.mxu0
    %v2659 = vadd.f32 0.0, %v2658
    %v2660 = vpop.f32.mrf.mxu0
    %v2661 = vpop.f32.mrf.mxu0
    %v2662 = vpop.f32.mrf.mxu0
    %2663 = vdwg.mxu0
    %v2664 = vpack.c.bf16 %v2659, %v2611
    %v2666 = vsel %vm226, %v2664, 0
    %v2669 = vsel %vm351, %v1637, 0
    %2671 = vmatprep.subr.bf16.mxu0 0
    %2672 = vmatpush1.bf16.msra.mxu0 0
    %2673 = vmatprep.subr.bf16.mxu0 0
    %2674 = vmatpush1.bf16.msra.mxu0 0
    %2675 = vmatprep.subr.bf16.mxu0 0
    %2676 = vmatpush1.bf16.msra.mxu0 0
    %2677 = vmatprep.subr.bf16.mxu0 0
    %2678 = vmatpush1.bf16.msra.mxu0 0
    %2679 = vmatprep.subr.bf16.mxu0 0
    %2680 = vmatpush1.bf16.msra.mxu0 0
    %2681 = vmatprep.subr.bf16.mxu0 0
    %2682 = vmatpush1.bf16.msra.mxu0 0
    %2683 = vmatprep.subr.bf16.mxu0 0
    %2684 = vmatpush1.bf16.msra.mxu0 0
    %2685 = vmatprep.subr.bf16.mxu0 0
    %2686 = vmatpush1.bf16.msra.mxu0 %v2669
    %2687 = vmatprep.subr.bf16.mxu0 0
    %2688 = vmatpush2.bf16.msra.mxu0 0
    %2689 = vmatprep.subr.bf16.mxu0 0
    %2690 = vmatpush2.bf16.msra.mxu0 0
    %2691 = vmatprep.subr.bf16.mxu0 0
    %2692 = vmatpush2.bf16.msra.mxu0 0
    %2693 = vmatprep.subr.bf16.mxu0 0
    %2694 = vmatpush2.bf16.msra.mxu0 0
    %2695 = vmatprep.subr.bf16.mxu0 0
    %2696 = vmatpush2.bf16.msra.mxu0 0
    %2697 = vmatprep.subr.bf16.mxu0 0
    %2698 = vmatpush2.bf16.msra.mxu0 0
    %2699 = vmatprep.subr.bf16.mxu0 0
    %2700 = vmatpush2.bf16.msra.mxu0 0
    %2701 = vmatprep.subr.bf16.mxu0 0
    %2702 = vmatpush2.bf16.msra.mxu0 0
    %2703 = vmatprep.mubr.bf16.mxu0 0
    %2704 = vmatmul.mubr.bf16.gmra.mxu0 %v2666
    %v2705 = vpop.f32.mrf.mxu0
    %v2706 = vadd.f32 0.0, %v2705
    %v2707 = vpop.f32.mrf.mxu0
    %v2708 = vpop.f32.mrf.mxu0
    %v2709 = vadd.f32 0.0, %v2708
    %v2710 = vpop.f32.mrf.mxu0
    %2711 = vdwg.mxu0
    %v2712 = vadd.f32 %v2442, %v2706
    %v2713 = vadd.f32 %v2443, %v2709
    %s2714 = scalar_lea.vmem %s7, 1
    %v2715 = vld [vmem:[%s2714] sm:$0x1]
    %v2717 = vlaneseq
    %v2718 = vshrl.u32 %v2717, 7
    %v2719 = vsub.s32 0, %v2718
    %v2720 = vrot.slane %v2715, %v2719
    %v2722 = vadd.f32 %v2712, %v2720
    %v2723 = vadd.f32 %v2713, %v2720
    %v2724 = vadd.f32 %v2722, %v1561
    %v2725 = vadd.f32 %v2723, %v1562
    %s2726 = scalar_lea.vmem %s8, 1
    %v2727 = vld [vmem:[%s2726] sm:$0x1]
    %s2728 = scalar_lea.vmem %s9, 1
    %v2729 = vld [vmem:[%s2728] sm:$0x1]
    %v2730 = vsel %vm71, %v2724, 0.0
    %2731 = vadd.xlane.f32.xlu0 %v2730
    %v2732 = vpop.xlane.xlu0 %2731
    %v2733 = vsel %vm71, %v2725, 0.0
    %2734 = vadd.xlane.f32.xlu0 %v2733
    %v2735 = vpop.xlane.xlu0 %2734
    %v2736 = vmul.f32 %v2732, %v78
    %v2737 = vmul.f32 %v2735, %v78
    %v2738 = vsub.f32 %v2724, %v2736
    %v2739 = vsub.f32 %v2725, %v2737
    %v2740 = vmul.f32 %v2738, %v2738
    %v2741 = vmul.f32 %v2739, %v2739
    %v2742 = vsel %vm71, %v2740, 0.0
    %2743 = vadd.xlane.f32.xlu0 %v2742
    %v2744 = vpop.xlane.xlu0 %2743
    %v2745 = vsel %vm71, %v2741, 0.0
    %2746 = vadd.xlane.f32.xlu0 %v2745
    %v2747 = vpop.xlane.xlu0 %2746
    %v2748 = vmul.f32 %v2744, %v78
    %v2749 = vmul.f32 %v2747, %v78
    %v2750 = vadd.f32 %v2748, 1e-12
    %v2751 = vadd.f32 %v2749, 1e-12
    %v2752 = vrsqrt.pop %v2750
    %v2753 = vrsqrt.pop %v2751
    %v2754 = vmul.f32 %v2738, %v2752
    %v2755 = vmul.f32 %v2739, %v2753
    %v2757 = vlaneseq
    %v2758 = vshrl.u32 %v2757, 7
    %v2759 = vsub.s32 0, %v2758
    %v2760 = vrot.slane %v2727, %v2759
    %v2762 = vmul.f32 %v2754, %v2760
    %v2763 = vmul.f32 %v2755, %v2760
    %v2765 = vlaneseq
    %v2766 = vshrl.u32 %v2765, 7
    %v2767 = vsub.s32 0, %v2766
    %v2768 = vrot.slane %v2729, %v2767
    %v2770 = vadd.f32 %v2762, %v2768
    %v2771 = vadd.f32 %v2763, %v2768
    %s2772 = scalar_lea.vmem %s10, 16
    %v2773 = vld [vmem:[%s2772] sm:$0xf]
    %v2774 = vld [vmem:[%s2772 + $0x4] sm:$0xf]
    %v2775 = vld [vmem:[%s2772 + $0x8] sm:$0xf]
    %v2776 = vld [vmem:[%s2772 + $0xc] sm:$0xf]
    %v2777 = vpack.c.bf16 %v2771, %v2770
    %s2778 = scalar_lea.vmem %s11, 1
    %v2779 = vld [vmem:[%s2778] sm:$0x1]
    %v2781 = vlaneseq
    %v2782 = vshrl.u32 %v2781, 7
    %v2783 = vsub.s32 0, %v2782
    %v2784 = vrot.slane %v2779, %v2783
    %v2790 = vunpack.c.l.b16 %v2773
    %v2791 = vunpack.c.l.b16 %v2774
    %v2792 = vunpack.c.l.b16 %v2775
    %v2793 = vunpack.c.l.b16 %v2776
    %v2794 = vpack.c.b16 %v2791, %v2790
    %v2795 = vpack.c.b16 %v2793, %v2792
    %v2799 = vsel %vm71, %v2777, 0
    %2801 = vmatprep.subr.bf16.mxu0 0
    %2802 = vmatpush1.bf16.msra.mxu0 0
    %2803 = vmatprep.subr.bf16.mxu0 0
    %2804 = vmatpush1.bf16.msra.mxu0 0
    %2805 = vmatprep.subr.bf16.mxu0 0
    %2806 = vmatpush1.bf16.msra.mxu0 0
    %2807 = vmatprep.subr.bf16.mxu0 0
    %2808 = vmatpush1.bf16.msra.mxu0 0
    %2809 = vmatprep.subr.bf16.mxu0 0
    %2810 = vmatpush1.bf16.msra.mxu0 0
    %2811 = vmatprep.subr.bf16.mxu0 0
    %2812 = vmatpush1.bf16.msra.mxu0 0
    %2813 = vmatprep.subr.bf16.mxu0 0
    %2814 = vmatpush1.bf16.msra.mxu0 %v2795
    %2815 = vmatprep.subr.bf16.mxu0 0
    %2816 = vmatpush1.bf16.msra.mxu0 %v2794
    %2817 = vmatprep.subr.bf16.mxu0 0
    %2818 = vmatpush2.bf16.msra.mxu0 0
    %2819 = vmatprep.subr.bf16.mxu0 0
    %2820 = vmatpush2.bf16.msra.mxu0 0
    %2821 = vmatprep.subr.bf16.mxu0 0
    %2822 = vmatpush2.bf16.msra.mxu0 0
    %2823 = vmatprep.subr.bf16.mxu0 0
    %2824 = vmatpush2.bf16.msra.mxu0 0
    %2825 = vmatprep.subr.bf16.mxu0 0
    %2826 = vmatpush2.bf16.msra.mxu0 0
    %2827 = vmatprep.subr.bf16.mxu0 0
    %2828 = vmatpush2.bf16.msra.mxu0 0
    %2829 = vmatprep.subr.bf16.mxu0 0
    %2830 = vmatpush2.bf16.msra.mxu0 0
    %2831 = vmatprep.subr.bf16.mxu0 0
    %2832 = vmatpush2.bf16.msra.mxu0 0
    %2833 = vmatprep.mubr.bf16.mxu0 0
    %2834 = vmatmul.mubr.bf16.gmra.mxu0 %v2799
    %v2835 = vpop.f32.mrf.mxu0
    %v2836 = vadd.f32 %v2784, %v2835
    %v2837 = vpop.f32.mrf.mxu0
    %v2838 = vpop.f32.mrf.mxu0
    %v2839 = vadd.f32 %v2784, %v2838
    %v2840 = vpop.f32.mrf.mxu0
    %2841 = vdwg.mxu0
    %v2842 = vmul.f32 %v2836, 0.5
    %v2843 = vmul.f32 %v2839, 0.5
    %v2844 = vmul.f32 %v2836, 0.70710677
    %v2845 = vmul.f32 %v2839, 0.70710677
    %v2846 = verf.f32.pop %v2844
    %v2847 = verf.f32.pop %v2845
    %v2848 = vadd.f32 %v2846, 1.0
    %v2849 = vadd.f32 %v2847, 1.0
    %v2850 = vmul.f32 %v2842, %v2848
    %v2851 = vmul.f32 %v2843, %v2849
    %s2852 = scalar_lea.vmem %s12, 32
    %v2853 = vld [vmem:[%s2852] sm:$0xf]
    %v2854 = vld [vmem:[%s2852 + $0x4] sm:$0xf]
    %v2855 = vld [vmem:[%s2852 + $0x8] sm:$0xf]
    %v2856 = vld [vmem:[%s2852 + $0xc] sm:$0xf]
    %v2857 = vld [vmem:[%s2852 + $0x10] sm:$0xf]
    %v2858 = vld [vmem:[%s2852 + $0x14] sm:$0xf]
    %v2859 = vld [vmem:[%s2852 + $0x18] sm:$0xf]
    %v2860 = vld [vmem:[%s2852 + $0x1c] sm:$0xf]
    %v2861 = vpack.c.bf16 %v2851, %v2850
    %s2862 = scalar_lea.vmem %s13, 1
    %v2863 = vld [vmem:[%s2862] sm:$0x1]
    %v2865 = vlaneseq
    %v2866 = vshrl.u32 %v2865, 7
    %v2867 = vsub.s32 0, %v2866
    %v2868 = vrot.slane %v2863, %v2867
    %v2878 = vunpack.c.l.b16 %v2853
    %v2879 = vunpack.c.l.b16 %v2854
    %v2880 = vunpack.c.l.b16 %v2855
    %v2881 = vunpack.c.l.b16 %v2856
    %v2882 = vunpack.c.l.b16 %v2857
    %v2883 = vunpack.c.l.b16 %v2858
    %v2884 = vunpack.c.l.b16 %v2859
    %v2885 = vunpack.c.l.b16 %v2860
    %v2886 = vpack.c.b16 %v2879, %v2878
    %v2887 = vpack.c.b16 %v2881, %v2880
    %v2888 = vpack.c.b16 %v2883, %v2882
    %v2889 = vpack.c.b16 %v2885, %v2884
    %v2895 = vsel %vm1472, %v2861, 0
    %2897 = vmatprep.subr.bf16.mxu0 0
    %2898 = vmatpush1.bf16.msra.mxu0 0
    %2899 = vmatprep.subr.bf16.mxu0 0
    %2900 = vmatpush1.bf16.msra.mxu0 0
    %2901 = vmatprep.subr.bf16.mxu0 0
    %2902 = vmatpush1.bf16.msra.mxu0 0
    %2903 = vmatprep.subr.bf16.mxu0 0
    %2904 = vmatpush1.bf16.msra.mxu0 0
    %2905 = vmatprep.subr.bf16.mxu0 0
    %2906 = vmatpush1.bf16.msra.mxu0 %v2889
    %2907 = vmatprep.subr.bf16.mxu0 0
    %2908 = vmatpush1.bf16.msra.mxu0 %v2888
    %2909 = vmatprep.subr.bf16.mxu0 0
    %2910 = vmatpush1.bf16.msra.mxu0 %v2887
    %2911 = vmatprep.subr.bf16.mxu0 0
    %2912 = vmatpush1.bf16.msra.mxu0 %v2886
    %2913 = vmatprep.subr.bf16.mxu0 0
    %2914 = vmatpush2.bf16.msra.mxu0 0
    %2915 = vmatprep.subr.bf16.mxu0 0
    %2916 = vmatpush2.bf16.msra.mxu0 0
    %2917 = vmatprep.subr.bf16.mxu0 0
    %2918 = vmatpush2.bf16.msra.mxu0 0
    %2919 = vmatprep.subr.bf16.mxu0 0
    %2920 = vmatpush2.bf16.msra.mxu0 0
    %2921 = vmatprep.subr.bf16.mxu0 0
    %2922 = vmatpush2.bf16.msra.mxu0 0
    %2923 = vmatprep.subr.bf16.mxu0 0
    %2924 = vmatpush2.bf16.msra.mxu0 0
    %2925 = vmatprep.subr.bf16.mxu0 0
    %2926 = vmatpush2.bf16.msra.mxu0 0
    %2927 = vmatprep.subr.bf16.mxu0 0
    %2928 = vmatpush2.bf16.msra.mxu0 0
    %2929 = vmatprep.mubr.bf16.mxu0 0
    %2930 = vmatmul.mubr.bf16.gmra.mxu0 %v2895
    %v2931 = vpop.f32.mrf.mxu0
    %v2932 = vadd.f32 %v2868, %v2931
    %v2933 = vpop.f32.mrf.mxu0
    %v2934 = vpop.f32.mrf.mxu0
    %v2935 = vadd.f32 %v2868, %v2934
    %v2936 = vpop.f32.mrf.mxu0
    %2937 = vdwg.mxu0
    %v2938 = vadd.f32 %v2932, %v2770
    %v2939 = vadd.f32 %v2935, %v2771
    %s2940 = scalar_lea.vmem %s14, 1
    %v2941 = vld [vmem:[%s2940] sm:$0x1]
    %s2942 = scalar_lea.vmem %s15, 1
    %v2943 = vld [vmem:[%s2942] sm:$0x1]
    %v2944 = vsel %vm71, %v2938, 0.0
    %2945 = vadd.xlane.f32.xlu0 %v2944
    %v2946 = vpop.xlane.xlu0 %2945
    %v2947 = vsel %vm71, %v2939, 0.0
    %2948 = vadd.xlane.f32.xlu0 %v2947
    %v2949 = vpop.xlane.xlu0 %2948
    %v2950 = vmul.f32 %v2946, %v78
    %v2951 = vmul.f32 %v2949, %v78
    %v2952 = vsub.f32 %v2938, %v2950
    %v2953 = vsub.f32 %v2939, %v2951
    %v2954 = vmul.f32 %v2952, %v2952
    %v2955 = vmul.f32 %v2953, %v2953
    %v2956 = vsel %vm71, %v2954, 0.0
    %2957 = vadd.xlane.f32.xlu0 %v2956
    %v2958 = vpop.xlane.xlu0 %2957
    %v2959 = vsel %vm71, %v2955, 0.0
    %2960 = vadd.xlane.f32.xlu0 %v2959
    %v2961 = vpop.xlane.xlu0 %2960
    %v2962 = vmul.f32 %v2958, %v78
    %v2963 = vmul.f32 %v2961, %v78
    %v2964 = vadd.f32 %v2962, 1e-12
    %v2965 = vadd.f32 %v2963, 1e-12
    %v2966 = vrsqrt.pop %v2964
    %v2967 = vrsqrt.pop %v2965
    %v2968 = vmul.f32 %v2952, %v2966
    %v2969 = vmul.f32 %v2953, %v2967
    %v2971 = vlaneseq
    %v2972 = vshrl.u32 %v2971, 7
    %v2973 = vsub.s32 0, %v2972
    %v2974 = vrot.slane %v2941, %v2973
    %v2976 = vmul.f32 %v2968, %v2974
    %v2977 = vmul.f32 %v2969, %v2974
    %v2979 = vlaneseq
    %v2980 = vshrl.u32 %v2979, 7
    %v2981 = vsub.s32 0, %v2980
    %v2982 = vrot.slane %v2943, %v2981
    %v2984 = vadd.f32 %v2976, %v2982
    %v2985 = vadd.f32 %v2977, %v2982
    %v2986 = vld [vmem:[%s16] sm:$0xf]
    %v2987 = vld [vmem:[%s16 + $0x4] sm:$0xf]
    %v2988 = vld [vmem:[%s16 + $0x8] sm:$0xf]
    %v2989 = vld [vmem:[%s16 + $0xc] sm:$0xf]
    %v2990 = vpack.c.bf16 %v2984, %v2984
    %v2991 = vpack.c.bf16 %v2985, %v2985
    %v2992 = vld [vmem:[%s17] sm:$0x1]
    %v2994 = vlaneseq
    %v2995 = vshrl.u32 %v2994, 7
    %v2996 = vsub.s32 0, %v2995
    %v2997 = vrot.slane %v2992, %v2996
    %v3001 = vunpack.c.l.b16 %v2990
    %v3002 = vunpack.c.l.b16 %v2991
    %v3003 = vrot.slane %v3002, 7
    %vm3004 = vcmask 1041409
    %v3005 = vsel %vm3004, %v3003, %v3001
    %v3006 = vpack.c.b16 %v3005, %v3005
    %v3011 = vunpack.c.l.b16 %v2986
    %v3012 = vunpack.c.l.b16 %v2987
    %v3013 = vunpack.c.l.b16 %v2988
    %v3014 = vunpack.c.l.b16 %v2989
    %v3015 = vpack.c.b16 %v3012, %v3011
    %v3016 = vpack.c.b16 %v3014, %v3013
    %v3020 = vsel %vm71, %v3006, 0
    %3022 = vmatprep.subr.bf16.mxu0 0
    %3023 = vmatpush1.bf16.msra.mxu0 0
    %3024 = vmatprep.subr.bf16.mxu0 0
    %3025 = vmatpush1.bf16.msra.mxu0 0
    %3026 = vmatprep.subr.bf16.mxu0 0
    %3027 = vmatpush1.bf16.msra.mxu0 0
    %3028 = vmatprep.subr.bf16.mxu0 0
    %3029 = vmatpush1.bf16.msra.mxu0 0
    %3030 = vmatprep.subr.bf16.mxu0 0
    %3031 = vmatpush1.bf16.msra.mxu0 0
    %3032 = vmatprep.subr.bf16.mxu0 0
    %3033 = vmatpush1.bf16.msra.mxu0 0
    %3034 = vmatprep.subr.bf16.mxu0 0
    %3035 = vmatpush1.bf16.msra.mxu0 %v3016
    %3036 = vmatprep.subr.bf16.mxu0 0
    %3037 = vmatpush1.bf16.msra.mxu0 %v3015
    %3038 = vmatprep.subr.bf16.mxu0 0
    %3039 = vmatpush2.bf16.msra.mxu0 0
    %3040 = vmatprep.subr.bf16.mxu0 0
    %3041 = vmatpush2.bf16.msra.mxu0 0
    %3042 = vmatprep.subr.bf16.mxu0 0
    %3043 = vmatpush2.bf16.msra.mxu0 0
    %3044 = vmatprep.subr.bf16.mxu0 0
    %3045 = vmatpush2.bf16.msra.mxu0 0
    %3046 = vmatprep.subr.bf16.mxu0 0
    %3047 = vmatpush2.bf16.msra.mxu0 0
    %3048 = vmatprep.subr.bf16.mxu0 0
    %3049 = vmatpush2.bf16.msra.mxu0 0
    %3050 = vmatprep.subr.bf16.mxu0 0
    %3051 = vmatpush2.bf16.msra.mxu0 0
    %3052 = vmatprep.subr.bf16.mxu0 0
    %3053 = vmatpush2.bf16.msra.mxu0 0
    %3054 = vmatprep.mubr.bf16.mxu0 0
    %3055 = vmatmul.mubr.bf16.gmra.mxu0 %v3020
    %v3056 = vpop.f32.mrf.mxu0
    %v3057 = vadd.f32 %v2997, %v3056
    %v3058 = vpop.f32.mrf.mxu0
    %v3059 = vpop.f32.mrf.mxu0
    %v3060 = vpop.f32.mrf.mxu0
    %3061 = vdwg.mxu0
    %v3062 = vtanh.pop %v3057
    %v3063 = vld [vmem:[%s18] sm:$0xf]
    %v3064 = vld [vmem:[%s18 + $0x4] sm:$0xf]
    %v3065 = vld [vmem:[%s18 + $0x8] sm:$0xf]
    %v3066 = vld [vmem:[%s18 + $0xc] sm:$0xf]
    %v3067 = vpack.c.bf16 %v3062, %v3062
    %v3068 = vld [vmem:[%s19] sm:$0x1]
    %v3070 = vlaneseq
    %v3071 = vshrl.u32 %v3070, 7
    %v3072 = vsub.s32 0, %v3071
    %v3073 = vrot.slane %v3068, %v3072
    %v3079 = vunpack.c.l.b16 %v3063
    %v3080 = vunpack.c.l.b16 %v3064
    %v3081 = vunpack.c.l.b16 %v3065
    %v3082 = vunpack.c.l.b16 %v3066
    %v3083 = vpack.c.b16 %v3080, %v3079
    %v3084 = vpack.c.b16 %v3082, %v3081
    %v3088 = vsel %vm71, %v3067, 0
    %3090 = vmatprep.subr.bf16.mxu0 0
    %3091 = vmatpush1.bf16.msra.mxu0 0
    %3092 = vmatprep.subr.bf16.mxu0 0
    %3093 = vmatpush1.bf16.msra.mxu0 0
    %3094 = vmatprep.subr.bf16.mxu0 0
    %3095 = vmatpush1.bf16.msra.mxu0 0
    %3096 = vmatprep.subr.bf16.mxu0 0
    %3097 = vmatpush1.bf16.msra.mxu0 0
    %3098 = vmatprep.subr.bf16.mxu0 0
    %3099 = vmatpush1.bf16.msra.mxu0 0
    %3100 = vmatprep.subr.bf16.mxu0 0
    %3101 = vmatpush1.bf16.msra.mxu0 0
    %3102 = vmatprep.subr.bf16.mxu0 0
    %3103 = vmatpush1.bf16.msra.mxu0 %v3084
    %3104 = vmatprep.subr.bf16.mxu0 0
    %3105 = vmatpush1.bf16.msra.mxu0 %v3083
    %3106 = vmatprep.subr.bf16.mxu0 0
    %3107 = vmatpush2.bf16.msra.mxu0 0
    %3108 = vmatprep.subr.bf16.mxu0 0
    %3109 = vmatpush2.bf16.msra.mxu0 0
    %3110 = vmatprep.subr.bf16.mxu0 0
    %3111 = vmatpush2.bf16.msra.mxu0 0
    %3112 = vmatprep.subr.bf16.mxu0 0
    %3113 = vmatpush2.bf16.msra.mxu0 0
    %3114 = vmatprep.subr.bf16.mxu0 0
    %3115 = vmatpush2.bf16.msra.mxu0 0
    %3116 = vmatprep.subr.bf16.mxu0 0
    %3117 = vmatpush2.bf16.msra.mxu0 0
    %3118 = vmatprep.subr.bf16.mxu0 0
    %3119 = vmatpush2.bf16.msra.mxu0 0
    %3120 = vmatprep.subr.bf16.mxu0 0
    %3121 = vmatpush2.bf16.msra.mxu0 0
    %3122 = vmatprep.mubr.bf16.mxu0 0
    %3123 = vmatmul.mubr.bf16.gmra.mxu0 %v3088
    %v3124 = vpop.f32.mrf.mxu0
    %v3125 = vadd.f32 %v3073, %v3124
    %v3126 = vpop.f32.mrf.mxu0
    %v3127 = vpop.f32.mrf.mxu0
    %v3128 = vpop.f32.mrf.mxu0
    %3129 = vdwg.mxu0
    %3130 = vst [vmem:[#allocation2] sm:$0x3] %v3125
    // Predicated region
    $region82: #{_lambda_.1} parent=1 // pred_check
      _
    $region83: #{_lambda_.1} parent=1 // pred_check_branch
      %3132 = sbr.rel (0) target = $region85
    $region84: #{_lambda_.1} parent=1 // pred_region
      %s3134 = ssub.s32 32, 32
      %3135 = vsyncadd [#allocation3], %s3134
      %s3137 = sshll.u32 [#allocation2], 4
      %s3138 = int_to_ptr.vmem [resolvable:$true] %s3137
      %3140 = dma.vmem_to_hbm [thread:$0]  %s3138, 32, %s20, [#allocation3]
    $region85: #{_lambda_.1} parent=1 // pred_fallthru
      _
    // Predicated region
    $region86: #{_lambda_.1} parent=1 // pred_check
      _
    $region87: #{_lambda_.1} parent=1 // pred_check_branch
      %3142 = sbr.rel (0) target = $region89
    $region88: #{_lambda_.1} parent=1 // pred_region
      %3143 = dma.done [#allocation3], 32
    $region89: #{_lambda_.1} parent=1 // pred_fallthru
      _
    %3144 = vsyncpa [#allocation3], 1

</llo_original>
